<compile_context>
chip_gen: v7x
topology: tpu7x:2x2x1
jax: 0.10.0
libtpu: 0.0.40
codegen_flags: <defaults>
</compile_context>

<pallas_src>
import functools

import numpy as np
import jax
import jax.numpy as jnp
from jax import lax
from jax.experimental import pallas as pl
from jax.experimental.pallas import tpu as pltpu


# ---------------------------------------------------------------------------
# Kernel 1: fused 3x3 conv (9 accumulated shifted-window matmuls) + BN epilogue
# ---------------------------------------------------------------------------
def _make_conv3x3_kernel(n_in, H, W):
    def kernel(*refs):
        x_refs = refs[:n_in]                       # each (H+2, W+2, Cin_i)
        w_refs = refs[n_in:2 * n_in]               # each (9, Cin_i, Cout)
        s_ref = refs[2 * n_in]                     # (1, Cout)
        b_ref = refs[2 * n_in + 1]                 # (1, Cout)
        o_ref = refs[2 * n_in + 2]                 # (H, W, Cout)
        cout = o_ref.shape[-1]
        acc = jnp.zeros((H * W, cout), jnp.float32)
        for xr, wr in zip(x_refs, w_refs):
            cin = xr.shape[-1]
            for t in range(9):                     # static unrolled taps
                dh, dw = t // 3, t % 3
                patch = xr[dh:dh + H, dw:dw + W, :].reshape(H * W, cin)
                acc = acc + jnp.dot(patch, wr[t],
                                    preferred_element_type=jnp.float32)
        o_ref[...] = (acc * s_ref[...] + b_ref[...]).reshape(H, W, cout)
    return kernel


def conv3x3(xs, ws, scale=None, bias=None):
    """3x3 conv, stride 1, padding 1, no conv bias; optional fused BN scale/bias.

    xs: list of NHWC inputs (implicit channel concatenation);
    ws: matching HWIO weights, all with the same Cout.
    """
    B, H, W, _ = xs[0].shape
    Cout = ws[0].shape[-1]
    xps = [jnp.pad(x.astype(jnp.float32), ((0, 0), (1, 1), (1, 1), (0, 0)))
           for x in xs]
    wrs = [w.astype(jnp.float32).reshape(9, w.shape[2], Cout) for w in ws]
    if scale is None:
        scale = jnp.ones((Cout,), jnp.float32)
    if bias is None:
        bias = jnp.zeros((Cout,), jnp.float32)
    in_specs = (
        [pl.BlockSpec((None, H + 2, W + 2, xp.shape[-1]),
                      lambda b: (b, 0, 0, 0)) for xp in xps]
        + [pl.BlockSpec(wr.shape, lambda b: (0, 0, 0)) for wr in wrs]
        + [pl.BlockSpec((1, Cout), lambda b: (0, 0)),
           pl.BlockSpec((1, Cout), lambda b: (0, 0))]
    )
    return pl.pallas_call(
        _make_conv3x3_kernel(len(xs), H, W),
        out_shape=jax.ShapeDtypeStruct((B, H, W, Cout), jnp.float32),
        grid_spec=pltpu.PrefetchScalarGridSpec(
            num_scalar_prefetch=0,
            grid=(B,),
            in_specs=in_specs,
            out_specs=pl.BlockSpec((None, H, W, Cout), lambda b: (b, 0, 0, 0)),
        ),
        compiler_params=pltpu.CompilerParams(dimension_semantics=("parallel",)),
    )(*xps, *wrs,
      scale.reshape(1, Cout).astype(jnp.float32),
      bias.reshape(1, Cout).astype(jnp.float32))


# ---------------------------------------------------------------------------
# Kernel 2: tiled matmul + bias (backs the 1x1 classifier conv)
# ---------------------------------------------------------------------------
def _matmul_bias_kernel(a_ref, w_ref, b_ref, o_ref):
    o_ref[...] = (jnp.dot(a_ref[...], w_ref[...],
                          preferred_element_type=jnp.float32) + b_ref[...])


def conv1x1(x, w_io, bias=None):
    """Pointwise conv as a lane-dense, M-tiled matmul + bias."""
    B, H, W, Cin = x.shape
    Cout = w_io.shape[-1]
    M = B * H * W
    a = x.reshape(M, Cin).astype(jnp.float32)
    if bias is None:
        bias = jnp.zeros((Cout,), jnp.float32)
    tm = 512 if M >= 512 else M        # partial last block handled by Pallas
    grid = (pl.cdiv(M, tm),)
    out = pl.pallas_call(
        _matmul_bias_kernel,
        out_shape=jax.ShapeDtypeStruct((M, Cout), jnp.float32),
        grid_spec=pltpu.PrefetchScalarGridSpec(
            num_scalar_prefetch=0,
            grid=grid,
            in_specs=[
                pl.BlockSpec((tm, Cin), lambda i: (i, 0)),
                pl.BlockSpec((Cin, Cout), lambda i: (0, 0)),
                pl.BlockSpec((1, Cout), lambda i: (0, 0)),
            ],
            out_specs=pl.BlockSpec((tm, Cout), lambda i: (i, 0)),
        ),
        compiler_params=pltpu.CompilerParams(dimension_semantics=("parallel",)),
    )(a, w_io.astype(jnp.float32), bias.reshape(1, Cout).astype(jnp.float32))
    return out.reshape(B, H, W, Cout)


# ---------------------------------------------------------------------------
# Kernel 3: fused CrissCrossAttention step (q/k/v projection + attention)
# ---------------------------------------------------------------------------
def _cca_kernel(feat_ref, w_ref, b_ref, gamma_ref, o_ref):
    H, W, C = feat_ref.shape
    N = w_ref.shape[1]
    cq = (N - C) // 2
    gamma = gamma_ref[0]

    feat = feat_ref[...]                                           # (H, W, C)

    # fused q|k|v projection — one lane-dense matmul, feat read once
    qkv = jnp.dot(feat.reshape(H * W, C), w_ref[...],
                  preferred_element_type=jnp.float32) + b_ref[...]
    q = qkv[:, :cq].reshape(H, W, cq)
    k = qkv[:, cq:2 * cq].reshape(H, W, cq)
    v = qkv[:, 2 * cq:].reshape(H, W, C)

    # row (W-direction) energies, batched over rows i (leading batch dim)
    e_w = jnp.einsum('hwc,hvc->hwv', q, k,
                     preferred_element_type=jnp.float32)           # (H, W, W)

    # column (H-direction) energies, batched over columns j; only the small
    # cq-channel q/k are transposed
    q_t = jnp.transpose(q, (1, 0, 2))                              # (W, H, cq)
    k_t = jnp.transpose(k, (1, 0, 2))
    e_h = jnp.einsum('whc,wgc->whg', q_t, k_t,
                     preferred_element_type=jnp.float32)           # (W, H, H) [j,i,i']
    row = lax.broadcasted_iota(jnp.int32, (W, H, H), 1)
    col = lax.broadcasted_iota(jnp.int32, (W, H, H), 2)
    e_h = jnp.where(row == col, jnp.float32(-1e30), e_h)           # -inf on i==i'

    # joint softmax over the (H + W) candidates per pixel, without concat
    m_w = jnp.max(e_w, axis=2)                                     # (H, W)
    m_h = jnp.max(e_h, axis=2)                                     # (W, H)
    m_hw = jnp.maximum(m_w, m_h.T)                                 # (H, W)
    m_wh = m_hw.T                                                  # (W, H)
    p_w = jnp.exp(e_w - m_hw[:, :, None])
    p_h = jnp.exp(e_h - m_wh[:, :, None])
    denom = jnp.sum(p_w, axis=2) + jnp.sum(p_h, axis=2).T          # (H, W)
    inv_hw = pl.reciprocal(denom, approx=True)
    inv_wh = inv_hw.T
    att_w = p_w * inv_hw[:, :, None]                               # (H, W, W)
    att_h = p_h * inv_wh[:, :, None]                               # (W, H, H)

    # W-direction output (leading batch over rows)
    out_w = jnp.einsum('hwv,hvc->hwc', att_w, v,
                       preferred_element_type=jnp.float32)         # (H, W, C)
    # H-direction output (TODO(synk): still transposes the C-channel value)
    v_t = jnp.transpose(v, (1, 0, 2))                              # (W, H, C)
    out_h_t = jnp.einsum('whg,wgc->whc', att_h, v_t,
                         preferred_element_type=jnp.float32)       # (W, H, C)
    out_h = jnp.transpose(out_h_t, (1, 0, 2))                      # (H, W, C)

    o_ref[...] = feat + gamma * (out_h + out_w)


def criss_cross_attention(feat, wqkv, bqkv, gamma):
    """One CCA step: residual + gamma * (column-attn + row-attn) of feat."""
    B, H, W, C = feat.shape
    N = wqkv.shape[1]
    gamma_arr = jnp.reshape(jnp.asarray(gamma, jnp.float32), (1,))
    return pl.pallas_call(
        _cca_kernel,
        out_shape=jax.ShapeDtypeStruct((B, H, W, C), jnp.float32),
        grid_spec=pltpu.PrefetchScalarGridSpec(
            num_scalar_prefetch=0,
            grid=(B,),
            in_specs=[
                pl.BlockSpec((None, H, W, C), lambda b: (b, 0, 0, 0)),
                pl.BlockSpec((C, N), lambda b: (0, 0)),
                pl.BlockSpec((1, N), lambda b: (0, 0)),
                pl.BlockSpec(memory_space=pltpu.MemorySpace.SMEM),
            ],
            out_specs=pl.BlockSpec((None, H, W, C), lambda b: (b, 0, 0, 0)),
        ),
        compiler_params=pltpu.CompilerParams(dimension_semantics=("parallel",)),
    )(feat.astype(jnp.float32), wqkv.astype(jnp.float32),
      bqkv.reshape(1, N).astype(jnp.float32), gamma_arr)


# ---------------------------------------------------------------------------
# Kernel 4: 8x bilinear upsample (align_corners=True), channels kept in lanes
# ---------------------------------------------------------------------------
def _upsample_kernel(x_ref, mh_ref, mw_ref, o_ref, t_ref):
    H, W, C = x_ref.shape
    Ho = mh_ref.shape[0]
    Wo = mw_ref.shape[0]
    mw = mw_ref[...]                                    # (Wo, W)
    for h in range(H):                                  # static, small loop
        t_ref[h] = jnp.dot(mw, x_ref[h],
                           preferred_element_type=jnp.float32)   # (Wo, C)
    u = t_ref[...].reshape(H, Wo * C)
    out = jnp.dot(mh_ref[...], u, preferred_element_type=jnp.float32)  # (Ho, Wo*C)
    o_ref[...] = out.reshape(Ho, Wo, C)


def _interp_matrix(n_in, n_out):
    """1-D bilinear interpolation matrix, align_corners=True (rows sum to 1)."""
    m = np.zeros((n_out, n_in), np.float32)
    for o in range(n_out):
        pos = o * (n_in - 1) / (n_out - 1) if n_out > 1 else 0.0
        i0 = int(np.floor(pos))
        f = pos - i0
        if i0 + 1 < n_in:
            m[o, i0] += 1.0 - f
            m[o, i0 + 1] += f
        else:
            m[o, i0] += 1.0
    return jnp.asarray(m)


def upsample8_bilinear(x):
    """Upsample(scale_factor=8, mode='bilinear', align_corners=True)."""
    B, H, W, C = x.shape
    Ho, Wo = 8 * H, 8 * W
    mh = _interp_matrix(H, Ho)
    mw = _interp_matrix(W, Wo)
    return pl.pallas_call(
        _upsample_kernel,
        out_shape=jax.ShapeDtypeStruct((B, Ho, Wo, C), jnp.float32),
        grid_spec=pltpu.PrefetchScalarGridSpec(
            num_scalar_prefetch=0,
            grid=(B,),
            in_specs=[
                pl.BlockSpec((None, H, W, C), lambda b: (b, 0, 0, 0)),
                pl.BlockSpec((Ho, H), lambda b: (0, 0)),
                pl.BlockSpec((Wo, W), lambda b: (0, 0)),
            ],
            out_specs=pl.BlockSpec((None, Ho, Wo, C), lambda b: (b, 0, 0, 0)),
            scratch_shapes=[pltpu.VMEM((H, Wo, C), jnp.float32)],
        ),
        compiler_params=pltpu.CompilerParams(dimension_semantics=("parallel",)),
    )(x.astype(jnp.float32), mh, mw)


# ---------------------------------------------------------------------------
# Glue: BN folding + RCCAModule forward
# ---------------------------------------------------------------------------
def bn_fold(bn, eps=1e-5):
    # TODO(synk): BatchNorm2d implemented in eval mode (running statistics);
    # a freshly-constructed train-mode PyTorch module would use batch stats.
    scale = bn["gamma"] / jnp.sqrt(bn["var"] + eps)
    bias = bn["beta"] - bn["mean"] * scale
    return scale, bias


def rcca_forward(x, params, recurrence=2):
    # conv_in: 3x3 (no bias) + BN (folded)
    s1, b1 = bn_fold(params["bn1"])
    feat = conv3x3([x], [params["conv_in_w"]], s1, b1)

    # recurrent criss-cross attention (shared weights), fused q|k|v projection
    cca = params["cca"]
    wqkv = jnp.concatenate([cca["wq"], cca["wk"], cca["wv"]], axis=1)
    bqkv = jnp.concatenate([cca["bq"], cca["bk"], cca["bv"]])
    for _ in range(recurrence):
        feat = criss_cross_attention(feat, wqkv, bqkv, cca["gamma"])

    # conv_out: 3x3 (no bias)
    feat = conv3x3([feat], [params["conv_out_w"]])

    # cls_seg: [x, feat] -> 3x3+BN -> 1x1 classifier -> 8x bilinear upsample.
    # The channel concat is realized as two K-blocks inside the conv kernel,
    # and the pointwise classifier is applied before the upsample (it commutes
    # exactly with align_corners bilinear interpolation).
    s2, b2 = bn_fold(params["bn2"])
    cin = x.shape[-1]
    w1 = params["cls_w1"]
    z = conv3x3([x, feat], [w1[:, :, :cin, :], w1[:, :, cin:, :]], s2, b2)
    z = conv1x1(z, params["cls_w2"], params["cls_b2"])
    z = upsample8_bilinear(z)
    return z


# ---------------------------------------------------------------------------
# Pure-jnp reference for the CCA step (sanity check only)
# ---------------------------------------------------------------------------
def cca_reference(q, k, v, x, gamma):
    B, H, W, Cq = q.shape
    e_h = jnp.einsum('bijc,bkjc->bijk', q, k)                       # [b, i, j, i']
    mask = jnp.eye(H, dtype=bool)[None, :, None, :]
    e_h = jnp.where(mask, -1e30, e_h)
    e_w = jnp.einsum('bijc,bikc->bijk', q, k)                       # [b, i, j, j']
    att = jax.nn.softmax(jnp.concatenate([e_h, e_w], axis=-1), axis=-1)
    att_h, att_w = att[..., :H], att[..., H:]
    out_h = jnp.einsum('bijk,bkjc->bijc', att_h, v)
    out_w = jnp.einsum('bijk,bikc->bijc', att_w, v)
    return gamma * (out_h + out_w) + x


# ---------------------------------------------------------------------------
# Deterministic parameter init (shapes from RCCAModule.__init__)
# ---------------------------------------------------------------------------
def init_params(key, cin, inter, num_classes):
    cq = inter // 8
    ks = jax.random.split(key, 13)

    def w(k, shape, s=0.1):
        return jax.random.normal(k, shape, jnp.float32) * s

    return {
        "conv_in_w": w(ks[0], (3, 3, cin, inter)),
        "bn1": {"gamma": jnp.linspace(0.5, 1.5, inter, dtype=jnp.float32),
                "beta": w(ks[1], (inter,), 0.05),
                "mean": jnp.zeros((inter,), jnp.float32),
                "var": jnp.ones((inter,), jnp.float32)},
        "cca": {"wq": w(ks[2], (inter, cq)), "bq": w(ks[3], (cq,), 0.05),
                "wk": w(ks[4], (inter, cq)), "bk": w(ks[5], (cq,), 0.05),
                "wv": w(ks[6], (inter, inter)), "bv": w(ks[7], (inter,), 0.05),
                # PyTorch inits gamma to 0; use a nonzero value so the
                # attention path is actually exercised.
                "gamma": jnp.float32(0.1)},
        "conv_out_w": w(ks[8], (3, 3, inter, inter)),
        "cls_w1": w(ks[9], (3, 3, cin + inter, inter)),
        "bn2": {"gamma": jnp.linspace(0.8, 1.2, inter, dtype=jnp.float32),
                "beta": w(ks[10], (inter,), 0.05),
                "mean": jnp.zeros((inter,), jnp.float32),
                "var": jnp.ones((inter,), jnp.float32)},
        "cls_w2": w(ks[11], (inter, num_classes)),
        "cls_b2": w(ks[12], (num_classes,), 0.05),
    }


if __name__ == "__main__":
    B, CIN, H, W = 2, 64, 8, 8           # in_channels=64 -> inter=16, q/k ch=2
    NUM_CLASSES = 5
    RECURRENCE = 2
    INTER = CIN // 4

    key = jax.random.PRNGKey(0)
    kx, kp, kf = jax.random.split(key, 3)
    x = jax.random.normal(kx, (B, H, W, CIN), jnp.float32)
    params = init_params(kp, CIN, INTER, NUM_CLASSES)

    # --- sanity check 1: fused CCA kernel vs pure-jnp reference ---
    feat = jax.random.normal(kf, (B, H, W, INTER), jnp.float32)
    cca = params["cca"]
    q = feat @ cca["wq"] + cca["bq"]
    k = feat @ cca["wk"] + cca["bk"]
    v = feat @ cca["wv"] + cca["bv"]
    want = cca_reference(q, k, v, feat, cca["gamma"])
    wqkv = jnp.concatenate([cca["wq"], cca["wk"], cca["wv"]], axis=1)
    bqkv = jnp.concatenate([cca["bq"], cca["bk"], cca["bv"]])
    got = criss_cross_attention(feat, wqkv, bqkv, cca["gamma"])
    np.testing.assert_allclose(np.asarray(got), np.asarray(want),
                               rtol=2e-2, atol=2e-2)

    # --- sanity check 2: fused 3x3 conv kernel vs lax.conv ---
    s1, b1 = bn_fold(params["bn1"])
    got_c = conv3x3([x], [params["conv_in_w"]], s1, b1)
    want_c = lax.conv_general_dilated(
        x, params["conv_in_w"], window_strides=(1, 1),
        padding=((1, 1), (1, 1)),
        dimension_numbers=("NHWC", "HWIO", "NHWC"),
        precision=lax.Precision.HIGHEST) * s1 + b1
    np.testing.assert_allclose(np.asarray(got_c), np.asarray(want_c),
                               rtol=2e-2, atol=2e-2)

    # --- sanity check 3: upsample kernel vs separable-matrix reference ---
    zc = jax.random.normal(jax.random.PRNGKey(3), (B, H, W, NUM_CLASSES),
                           jnp.float32)
    mh = _interp_matrix(H, 8 * H)
    mw = _interp_matrix(W, 8 * W)
    want_u = jnp.einsum("oh,pw,bhwc->bopc", mh, mw, zc,
                        precision=lax.Precision.HIGHEST)
    got_u = upsample8_bilinear(zc)
    np.testing.assert_allclose(np.asarray(got_u), np.asarray(want_u),
                               rtol=2e-2, atol=2e-2)

    # --- full RCCAModule forward ---
    fwd = jax.jit(functools.partial(rcca_forward, recurrence=RECURRENCE))
    out = jax.block_until_ready(fwd(x, params))
    assert out.shape == (B, 8 * H, 8 * W, NUM_CLASSES), out.shape
    assert bool(jnp.all(jnp.isfinite(out)))
    print("KERNEL_OK")
</pallas_src>

<mosaic_0001>
module attributes {stable_mosaic.version = 11 : i64} {
  func.func @_cca_kernel(%arg0: i32, %arg1: memref<1x8x8x16xf32, #tpu.memory_space<vmem>>, %arg2: memref<16x20xf32, #tpu.memory_space<vmem>>, %arg3: memref<1x20xf32, #tpu.memory_space<vmem>>, %arg4: memref<1xf32, #tpu.memory_space<smem>>, %arg5: memref<1x8x8x16xf32, #tpu.memory_space<vmem>>) attributes {dimension_semantics = [#tpu.dimension_semantics<parallel>], iteration_bounds = array<i64: 2>, scalar_prefetch = 0 : i64, scratch_operands = 0 : i64, tpu.core_type = #tpu.core_type<tc>, window_params = [{transform_indices = @transform_0, window_bounds = array<i64: 1, 8, 8, 16>}, {pipeline_mode = #tpu.pipeline_mode<synchronous>, transform_indices = @transform_1, window_bounds = array<i64: 16, 20>}, {pipeline_mode = #tpu.pipeline_mode<synchronous>, transform_indices = @transform_2, window_bounds = array<i64: 1, 20>}, {transform_indices = @transform_3, window_bounds = array<i64: 1>}, {transform_indices = @transform_4, window_bounds = array<i64: 1, 8, 8, 16>}]} {
    %c0 = arith.constant 0 : index
    %0 = memref.load %arg4[%c0] : memref<1xf32, #tpu.memory_space<smem>>
    %c0_0 = arith.constant 0 : index
    %c0_1 = arith.constant 0 : index
    %c0_2 = arith.constant 0 : index
    %c0_3 = arith.constant 0 : index
    %1 = vector.load %arg1[%c0_0, %c0_1, %c0_2, %c0_3] : memref<1x8x8x16xf32, #tpu.memory_space<vmem>>, vector<1x8x8x16xf32>
    %2 = vector.shape_cast %1 : vector<1x8x8x16xf32> to vector<8x8x16xf32>
    %3 = vector.shape_cast %2 : vector<8x8x16xf32> to vector<64x16xf32>
    %c0_4 = arith.constant 0 : index
    %c0_5 = arith.constant 0 : index
    %4 = vector.load %arg2[%c0_4, %c0_5] : memref<16x20xf32, #tpu.memory_space<vmem>>, vector<16x20xf32>
    %cst = arith.constant dense<0.000000e+00> : vector<64x20xf32>
    %5 = tpu.matmul %3, %4, %cst {dimension_numbers = #tpu.dot_dimension_numbers<[1], [0], [0], [1], [0, 0, 1, 1], [], []>} : vector<64x16xf32>, vector<16x20xf32>, vector<64x20xf32> -> vector<64x20xf32>
    %c0_6 = arith.constant 0 : index
    %c0_7 = arith.constant 0 : index
    %6 = vector.load %arg3[%c0_6, %c0_7] : memref<1x20xf32, #tpu.memory_space<vmem>>, vector<1x20xf32>
    %7 = vector.broadcast %6 : vector<1x20xf32> to vector<64x20xf32>
    %8 = arith.addf %5, %7 : vector<64x20xf32>
    %9 = vector.extract_strided_slice %8 {offsets = [0, 0], sizes = [64, 2], strides = [1, 1]} : vector<64x20xf32> to vector<64x2xf32>
    %10 = vector.shape_cast %9 : vector<64x2xf32> to vector<8x8x2xf32>
    %11 = vector.extract_strided_slice %8 {offsets = [0, 2], sizes = [64, 2], strides = [1, 1]} : vector<64x20xf32> to vector<64x2xf32>
    %12 = vector.shape_cast %11 : vector<64x2xf32> to vector<8x8x2xf32>
    %13 = vector.extract_strided_slice %8 {offsets = [0, 4], sizes = [64, 16], strides = [1, 1]} : vector<64x20xf32> to vector<64x16xf32>
    %14 = vector.shape_cast %13 : vector<64x16xf32> to vector<8x8x16xf32>
    "tpu.trace_start"() <{level = 10 : i32, message = "hwc,hvc->hwv"}> : () -> ()
    %cst_8 = arith.constant dense<0.000000e+00> : vector<8x8x8xf32>
    %15 = tpu.matmul %10, %12, %cst_8 {dimension_numbers = #tpu.dot_dimension_numbers<[2], [2], [1], [1], [0, 0, 0, 1, 1, 1], [0], [0]>} : vector<8x8x2xf32>, vector<8x8x2xf32>, vector<8x8x8xf32> -> vector<8x8x8xf32>
    "tpu.trace_stop"() : () -> ()
    %16 = tpu.transpose %10, [1, 0, 2] : vector<8x8x2xf32> -> vector<8x8x2xf32>
    %17 = tpu.transpose %12, [1, 0, 2] : vector<8x8x2xf32> -> vector<8x8x2xf32>
    "tpu.trace_start"() <{level = 10 : i32, message = "whc,wgc->whg"}> : () -> ()
    %cst_9 = arith.constant dense<0.000000e+00> : vector<8x8x8xf32>
    %18 = tpu.matmul %16, %17, %cst_9 {dimension_numbers = #tpu.dot_dimension_numbers<[2], [2], [1], [1], [0, 0, 0, 1, 1, 1], [0], [0]>} : vector<8x8x2xf32>, vector<8x8x2xf32>, vector<8x8x8xf32> -> vector<8x8x8xf32>
    "tpu.trace_stop"() : () -> ()
    %19 = tpu.iota {dimensions = array<i32: 1>} : vector<8x8x8xi32>
    %20 = tpu.iota {dimensions = array<i32: 2>} : vector<8x8x8xi32>
    %21 = arith.cmpi eq, %19, %20 : vector<8x8x8xi32>
    %cst_10 = arith.constant -1.000000e+30 : f32
    %22 = vector.broadcast %cst_10 : f32 to vector<8x8x8xf32>
    %23 = arith.select %21, %22, %18 : vector<8x8x8xi1>, vector<8x8x8xf32>
    %cst_11 = arith.constant dense<0xFF800000> : vector<8x8xf32>
    %24 = vector.multi_reduction <maximumf>, %15, %cst_11 [2] : vector<8x8x8xf32> to vector<8x8xf32>
    %cst_12 = arith.constant dense<0xFF800000> : vector<8x8xf32>
    %25 = vector.multi_reduction <maximumf>, %23, %cst_12 [2] : vector<8x8x8xf32> to vector<8x8xf32>
    %26 = tpu.transpose %25, [1, 0] : vector<8x8xf32> -> vector<8x8xf32>
    %27 = arith.maximumf %24, %26 : vector<8x8xf32>
    %28 = tpu.transpose %27, [1, 0] : vector<8x8xf32> -> vector<8x8xf32>
    %29 = vector.shape_cast %27 : vector<8x8xf32> to vector<8x8x1xf32>
    %30 = vector.broadcast %29 : vector<8x8x1xf32> to vector<8x8x8xf32>
    %31 = arith.subf %15, %30 : vector<8x8x8xf32>
    %32 = math.exp %31 : vector<8x8x8xf32>
    %33 = vector.shape_cast %28 : vector<8x8xf32> to vector<8x8x1xf32>
    %34 = vector.broadcast %33 : vector<8x8x1xf32> to vector<8x8x8xf32>
    %35 = arith.subf %23, %34 : vector<8x8x8xf32>
    %36 = math.exp %35 : vector<8x8x8xf32>
    %cst_13 = arith.constant dense<0.000000e+00> : vector<8x8xf32>
    %37 = vector.multi_reduction <add>, %32, %cst_13 [2] : vector<8x8x8xf32> to vector<8x8xf32>
    %cst_14 = arith.constant dense<0.000000e+00> : vector<8x8xf32>
    %38 = vector.multi_reduction <add>, %36, %cst_14 [2] : vector<8x8x8xf32> to vector<8x8xf32>
    %39 = tpu.transpose %38, [1, 0] : vector<8x8xf32> -> vector<8x8xf32>
    %40 = arith.addf %37, %39 : vector<8x8xf32>
    %41 = tpu.reciprocal %40 {approx = true} : vector<8x8xf32> -> vector<8x8xf32>
    %42 = tpu.transpose %41, [1, 0] : vector<8x8xf32> -> vector<8x8xf32>
    %43 = vector.shape_cast %41 : vector<8x8xf32> to vector<8x8x1xf32>
    %44 = vector.broadcast %43 : vector<8x8x1xf32> to vector<8x8x8xf32>
    %45 = arith.mulf %32, %44 : vector<8x8x8xf32>
    %46 = vector.shape_cast %42 : vector<8x8xf32> to vector<8x8x1xf32>
    %47 = vector.broadcast %46 : vector<8x8x1xf32> to vector<8x8x8xf32>
    %48 = arith.mulf %36, %47 : vector<8x8x8xf32>
    "tpu.trace_start"() <{level = 10 : i32, message = "hwv,hvc->hwc"}> : () -> ()
    %cst_15 = arith.constant dense<0.000000e+00> : vector<8x8x16xf32>
    %49 = tpu.matmul %45, %14, %cst_15 {dimension_numbers = #tpu.dot_dimension_numbers<[2], [1], [1], [2], [0, 0, 0, 1, 1, 2], [0], [0]>} : vector<8x8x8xf32>, vector<8x8x16xf32>, vector<8x8x16xf32> -> vector<8x8x16xf32>
    "tpu.trace_stop"() : () -> ()
    %50 = tpu.transpose %14, [1, 0, 2] : vector<8x8x16xf32> -> vector<8x8x16xf32>
    "tpu.trace_start"() <{level = 10 : i32, message = "whg,wgc->whc"}> : () -> ()
    %cst_16 = arith.constant dense<0.000000e+00> : vector<8x8x16xf32>
    %51 = tpu.matmul %48, %50, %cst_16 {dimension_numbers = #tpu.dot_dimension_numbers<[2], [1], [1], [2], [0, 0, 0, 1, 1, 2], [0], [0]>} : vector<8x8x8xf32>, vector<8x8x16xf32>, vector<8x8x16xf32> -> vector<8x8x16xf32>
    "tpu.trace_stop"() : () -> ()
    %52 = tpu.transpose %51, [1, 0, 2] : vector<8x8x16xf32> -> vector<8x8x16xf32>
    %53 = arith.addf %52, %49 : vector<8x8x16xf32>
    %54 = vector.broadcast %0 : f32 to vector<8x8x16xf32>
    %55 = arith.mulf %54, %53 : vector<8x8x16xf32>
    %56 = arith.addf %2, %55 : vector<8x8x16xf32>
    %c0_17 = arith.constant 0 : index
    %c0_18 = arith.constant 0 : index
    %c0_19 = arith.constant 0 : index
    %c0_20 = arith.constant 0 : index
    %57 = vector.load %arg5[%c0_17, %c0_18, %c0_19, %c0_20] : memref<1x8x8x16xf32, #tpu.memory_space<vmem>>, vector<1x8x8x16xf32>
    %58 = vector.shape_cast %57 : vector<1x8x8x16xf32> to vector<8x8x16xf32>
    %59 = vector.shape_cast %56 : vector<8x8x16xf32> to vector<1x8x8x16xf32>
    tpu.vector_store %arg5[%c0_17, %c0_18, %c0_19, %c0_20], %59 {strides = array<i32>} : memref<1x8x8x16xf32, #tpu.memory_space<vmem>>, vector<1x8x8x16xf32>,
    return
  }
  func.func @transform_0(%arg0: i32) -> (i32, i32, i32, i32) {
    %c0_i32 = arith.constant 0 : i32
    %c0_i32_0 = arith.constant 0 : i32
    %c0_i32_1 = arith.constant 0 : i32
    %c0_i32_2 = arith.constant 0 : i32
    return %arg0, %c0_i32, %c0_i32_0, %c0_i32_1 : i32, i32, i32, i32
  }
  func.func @transform_1(%arg0: i32) -> (i32, i32) {
    %c0_i32 = arith.constant 0 : i32
    %c0_i32_0 = arith.constant 0 : i32
    %c0_i32_1 = arith.constant 0 : i32
    return %c0_i32, %c0_i32_0 : i32, i32
  }
  func.func @transform_2(%arg0: i32) -> (i32, i32) {
    %c0_i32 = arith.constant 0 : i32
    %c0_i32_0 = arith.constant 0 : i32
    %c0_i32_1 = arith.constant 0 : i32
    return %c0_i32, %c0_i32_0 : i32, i32
  }
  func.func @transform_3(%arg0: i32) -> i32 {
    %c0_i32 = arith.constant 0 : i32
    %c0_i32_0 = arith.constant 0 : i32
    return %c0_i32 : i32
  }
  func.func @transform_4(%arg0: i32) -> (i32, i32, i32, i32) {
    %c0_i32 = arith.constant 0 : i32
    %c0_i32_0 = arith.constant 0 : i32
    %c0_i32_1 = arith.constant 0 : i32
    %c0_i32_2 = arith.constant 0 : i32
    return %arg0, %c0_i32, %c0_i32_0, %c0_i32_1 : i32, i32, i32, i32
  }
}

</mosaic_0001>

<llo_original>
// kernel: tpu_custom_call.1
$region0: #{tpu_custom_call.1}
  #allocation0 [shape = 'u32[]', space=smem, size = 0x4, offset = 0x4, fixed_abs, tag = 'smem constant byte address 0x4 - core index']
  #allocation1 [shape = 'u32[144,128]{1,0:T(1,128)}', space=vmem, size = 0x12000, scoped, tag = 'internal scratch']
  #allocation2 [shape = 'f32[1]{0:T(128)S(6)}', space=smem, size = 0x200, scoped, tag = 'scoped memory for tpu_custom_call.1']
  %s0 = inlined_call_operand.hbm [shape: f32[2,8,8,16], index: 0, kind: input, shape index: {}]
  %s1 = inlined_call_operand.hbm [shape: f32[16,20], index: 1, kind: input, shape index: {}]
  %s2 = inlined_call_operand.vmem [shape: f32[1,20], index: 2, kind: input, shape index: {}]
  %s3 = inlined_call_operand.<no memory space> [shape: f32[1], index: 3, kind: input, shape index: {}]
  %s4 = inlined_call_operand.hbm [shape: f32[2,8,8,16], index: 4, kind: output, shape index: {}]
  %s5 = sld [smem:[#allocation0]]
  $region57: #{tpu_custom_call.1} parent=0
    _
  %s7 = ssub.s32 1, %s5
  %s8 = scalar_select 0, %s7, %s5
  %9 = sst [smem:[#allocation2]] %s3
  $region1: #{tpu_custom_call.1} parent=0
    #allocation3 [shape = 'u8[65536]{0}', space=vmem, size = 0x10000, scoped, tag = 'input window, operand 0']
    #allocation4 [shape = 's32[2]{0}', space=sflag, size = 0x8, scoped, tag = 'scoped memory for tpu_custom_call.1']
    #allocation5 [shape = 's32[2]{0}', space=sflag, size = 0x8, scoped, tag = 'scoped memory for tpu_custom_call.1']
    #allocation6 [shape = 'u8[8192]{0}', space=vmem, size = 0x2000, scoped, tag = 'input window, operand 1, single buffered']
    #allocation7 [shape = 's32[1]{0}', space=sflag, size = 0x4, scoped, tag = 'scoped memory for tpu_custom_call.1']
    #allocation8 [shape = 'u8[65536]{0}', space=vmem, size = 0x10000, scoped, tag = 'output window, operand 0']
    %10 = vsyncpa [#allocation4], 0
    %s11 = scalar_lea.sflag [#allocation4], 1
    %12 = vsyncpa %s11, 0
    %13 = vsyncpa [#allocation7], 0
    %14 = vsyncpa [#allocation5], 0
    %s15 = scalar_lea.sflag [#allocation5], 1
    %16 = vsyncpa %s15, 0
    loop: start=0, step=1, limit=4
    $region2: #{tpu_custom_call.1} parent=1 // loop_pre_header
      _
    $region3: #{tpu_custom_call.1} parent=1 // loop_header
      %s18 = sphi 0, %s22
      %p19 = scmp.ge.s32.totalorder %s18, 4
      %s28 = sphi 0, %s30
      %s31 = sphi 0, %s28
      %s32 = sphi 0, %s31
      %s48 = sphi 0, %s32
      %s52 = sphi 0, %s52
      %s54 = sphi 0, %s52
      %s55 = sphi 0, %s54
      %s69 = sphi 0, %s55
      %s73 = sphi 0, %s73
      %s75 = sphi 0, %s73
      %s76 = sphi 0, %s75
      %s90 = sphi 0, %s76
      %s94 = sphi 0, %s94
      %s96 = sphi 0, %s94
      %s97 = sphi 0, %s96
      %s111 = sphi 0, %s97
      %s117 = sphi 0, %s119
      %s120 = sphi 0, %s117
      %s121 = sphi 0, %s120
      %s137 = sphi 0, %s121
    $region4: #{tpu_custom_call.1} parent=1 // loop_header_branch
      %21 = sbr.rel (%p19) target = $region8
    $region5: #{tpu_custom_call.1} parent=1 // loop_body
      %s23 = ssub.s32 %s18, 1
      %s24 = ssub.s32 %s18, 2
      %s25 = sadd.s32 %s18, 1
      %s26 = ssub.s32 %s18, %s25
      %p27 = scmp.eq.s32.totalorder %s26, 0
      %s29 = sadd.s32 %s28, 1
      %s30 = scalar_select %p27, %s28, %s29
      %p33 = pneg %p27
      %p34 = scmp.eq.s32.totalorder %s18, 1
      %p35 = por %p33, %p34
      %p36 = scmp.ne.s32.totalorder %s28, %s31
      %p37 = scmp.eq.s32.totalorder %s18, 0
      %p38 = por %p36, %p37
      %p39 = scmp.ne.s32.totalorder %s28, %s31
      %p40 = scmp.eq.s32.totalorder %s23, 1
      %p41 = por %p39, %p40
      %p42 = scmp.ne.s32.totalorder %s31, %s32
      %p43 = scmp.eq.s32.totalorder %s23, 0
      %p44 = por %p42, %p43
      %p45 = scmp.ne.s32.totalorder %s31, %s32
      %p46 = scmp.eq.s32.totalorder %s24, 1
      %p47 = por %p45, %p46
      %p49 = scmp.ne.s32.totalorder %s32, %s48
      %p50 = scmp.eq.s32.totalorder %s24, 0
      %p51 = por %p49, %p50
      %s53 = sadd.s32 %s52, 1
      %p56 = scmp.eq.s32.totalorder %s18, 1
      %p57 = scmp.ne.s32.totalorder %s52, %s54
      %p58 = scmp.eq.s32.totalorder %s18, 0
      %p59 = por %p57, %p58
      %p60 = scmp.ne.s32.totalorder %s52, %s54
      %p61 = scmp.eq.s32.totalorder %s23, 1
      %p62 = por %p60, %p61
      %p63 = scmp.ne.s32.totalorder %s54, %s55
      %p64 = scmp.eq.s32.totalorder %s23, 0
      %p65 = por %p63, %p64
      %p66 = scmp.ne.s32.totalorder %s54, %s55
      %p67 = scmp.eq.s32.totalorder %s24, 1
      %p68 = por %p66, %p67
      %p70 = scmp.ne.s32.totalorder %s55, %s69
      %p71 = scmp.eq.s32.totalorder %s24, 0
      %p72 = por %p70, %p71
      %s74 = sadd.s32 %s73, 1
      %p77 = scmp.eq.s32.totalorder %s18, 1
      %p78 = scmp.ne.s32.totalorder %s73, %s75
      %p79 = scmp.eq.s32.totalorder %s18, 0
      %p80 = por %p78, %p79
      %p81 = scmp.ne.s32.totalorder %s73, %s75
      %p82 = scmp.eq.s32.totalorder %s23, 1
      %p83 = por %p81, %p82
      %p84 = scmp.ne.s32.totalorder %s75, %s76
      %p85 = scmp.eq.s32.totalorder %s23, 0
      %p86 = por %p84, %p85
      %p87 = scmp.ne.s32.totalorder %s75, %s76
      %p88 = scmp.eq.s32.totalorder %s24, 1
      %p89 = por %p87, %p88
      %p91 = scmp.ne.s32.totalorder %s76, %s90
      %p92 = scmp.eq.s32.totalorder %s24, 0
      %p93 = por %p91, %p92
      %s95 = sadd.s32 %s94, 1
      %p98 = scmp.eq.s32.totalorder %s18, 1
      %p99 = scmp.ne.s32.totalorder %s94, %s96
      %p100 = scmp.eq.s32.totalorder %s18, 0
      %p101 = por %p99, %p100
      %p102 = scmp.ne.s32.totalorder %s94, %s96
      %p103 = scmp.eq.s32.totalorder %s23, 1
      %p104 = por %p102, %p103
      %p105 = scmp.ne.s32.totalorder %s96, %s97
      %p106 = scmp.eq.s32.totalorder %s23, 0
      %p107 = por %p105, %p106
      %p108 = scmp.ne.s32.totalorder %s96, %s97
      %p109 = scmp.eq.s32.totalorder %s24, 1
      %p110 = por %p108, %p109
      %p112 = scmp.ne.s32.totalorder %s97, %s111
      %p113 = scmp.eq.s32.totalorder %s24, 0
      %p114 = por %p112, %p113
      %s115 = ssub.s32 %s18, %s25
      %p116 = scmp.eq.s32.totalorder %s115, 0
      %s118 = sadd.s32 %s117, 1
      %s119 = scalar_select %p116, %s117, %s118
      %p122 = pneg %p116
      %p123 = scmp.eq.s32.totalorder %s18, 1
      %p124 = por %p122, %p123
      %p125 = scmp.ne.s32.totalorder %s117, %s120
      %p126 = scmp.eq.s32.totalorder %s18, 0
      %p127 = por %p125, %p126
      %p128 = scmp.ne.s32.totalorder %s117, %s120
      %p129 = scmp.eq.s32.totalorder %s23, 1
      %p130 = por %p128, %p129
      %p131 = scmp.ne.s32.totalorder %s120, %s121
      %p132 = scmp.eq.s32.totalorder %s23, 0
      %p133 = por %p131, %p132
      %p134 = scmp.ne.s32.totalorder %s120, %s121
      %p135 = scmp.eq.s32.totalorder %s24, 1
      %p136 = por %p134, %p135
      %p138 = scmp.ne.s32.totalorder %s121, %s137
      %p139 = scmp.eq.s32.totalorder %s24, 0
      %p140 = por %p138, %p139
      %p141 = scmp.le.s32.totalorder 1, %s18
      %p142 = scmp.lt.s32.totalorder %s18, 3
      %p143 = pnand %p141, %p142
      %p144 = pneg %p143
      // Predicated region
      $region9: #{tpu_custom_call.1} parent=5 // pred_check
        _
      $region10: #{tpu_custom_call.1} parent=5 // pred_check_branch
        %146 = sbr.rel (%p143) target = $region12
      $region11: #{tpu_custom_call.1} parent=5 // pred_region
        %s147 = ssub.s32 %s18, 1
        // Predicated region
        $region13: #{tpu_custom_call.1} parent=11 // pred_check
          %p148 = pneg %p65
        $region14: #{tpu_custom_call.1} parent=11 // pred_check_branch
          %150 = sbr.rel (%p148) target = $region16
        $region15: #{tpu_custom_call.1} parent=11 // pred_region
          %s152 = ssub.s32 256, 256
          %153 = vsyncadd [#allocation7], %s152
          %s154 = sshll.u32 [#allocation6], 4
          %s155 = int_to_ptr.vmem [resolvable:$true] %s154
          %160 = dma.hbm_to_vmem [thread:$0]  %s1, 256, %s155, [#allocation7], 128, 128, 8
        $region16: #{tpu_custom_call.1} parent=11 // pred_fallthru
          _
        // Predicated region
        $region17: #{tpu_custom_call.1} parent=11 // pred_check
          %p161 = pneg %p86
        $region18: #{tpu_custom_call.1} parent=11 // pred_check_branch
          %163 = sbr.rel (%p161) target = $region20
        $region19: #{tpu_custom_call.1} parent=11 // pred_region
          _
        $region20: #{tpu_custom_call.1} parent=11 // pred_fallthru
          _
        // Predicated region
        $region21: #{tpu_custom_call.1} parent=11 // pred_check
          %p164 = pneg %p107
        $region22: #{tpu_custom_call.1} parent=11 // pred_check_branch
          %166 = sbr.rel (%p164) target = $region24
        $region23: #{tpu_custom_call.1} parent=11 // pred_region
          _
        $region24: #{tpu_custom_call.1} parent=11 // pred_fallthru
          _
      $region12: #{tpu_custom_call.1} parent=5 // pred_fallthru
        _
      %p167 = scmp.lt.s32.totalorder %s18, 2
      // Predicated region
      $region25: #{tpu_custom_call.1} parent=5 // pred_check
        %p168 = pneg %p167
      $region26: #{tpu_custom_call.1} parent=5 // pred_check_branch
        %170 = sbr.rel (%p168) target = $region28
      $region27: #{tpu_custom_call.1} parent=5 // pred_region
        // Predicated region
        $region29: #{tpu_custom_call.1} parent=27 // pred_check
          %p171 = pneg %p38
        $region30: #{tpu_custom_call.1} parent=27 // pred_check_branch
          %173 = sbr.rel (%p171) target = $region32
        $region31: #{tpu_custom_call.1} parent=27 // pred_region
          %s174 = sand.u32 %s28, 1
          %s175 = scalar_lea.sflag [#allocation4], %s174
          %s176 = sand.u32 %s28, 1
          %s177 = smul.addr %s176, 64
          %s178 = scalar_lea.vmem [#allocation3], %s177
          %s180 = ssub.s32 1024, 1024
          %181 = vsyncadd %s175, %s180
          %s182 = smul.addr %s18, 8
          %s183 = smul.addr %s182, 128
          %s184 = scalar_lea.hbm %s0, %s183
          %s185 = sshll.u32 %s178, 4
          %s186 = int_to_ptr.vmem [resolvable:$true] %s185
          %191 = dma.hbm_to_vmem [thread:$0]  %s184, 1024, %s186, %s175, 128, 128, 8
        $region32: #{tpu_custom_call.1} parent=27 // pred_fallthru
          _
      $region28: #{tpu_custom_call.1} parent=5 // pred_fallthru
        _
      %p192 = scmp.le.s32.totalorder 1, %s18
      %p193 = scmp.lt.s32.totalorder %s18, 3
      %p194 = pnand %p192, %p193
      %p195 = pneg %p194
      // Predicated region
      $region33: #{tpu_custom_call.1} parent=5 // pred_check
        _
      $region34: #{tpu_custom_call.1} parent=5 // pred_check_branch
        %197 = sbr.rel (%p194) target = $region36
      $region35: #{tpu_custom_call.1} parent=5 // pred_region
        %s198 = ssub.s32 %s18, 1
        %s199 = sand.u32 %s31, 1
        %s200 = scalar_lea.sflag [#allocation4], %s199
        %s201 = sand.u32 %s31, 1
        %s202 = smul.addr %s201, 64
        %s203 = scalar_lea.vmem [#allocation3], %s202
        // Predicated region
        $region37: #{tpu_custom_call.1} parent=35 // pred_check
          %p204 = pneg %p44
        $region38: #{tpu_custom_call.1} parent=35 // pred_check_branch
          %206 = sbr.rel (%p204) target = $region40
        $region39: #{tpu_custom_call.1} parent=35 // pred_region
          %207 = dma.done %s200, 1024
        $region40: #{tpu_custom_call.1} parent=35 // pred_fallthru
          _
        // Predicated region
        $region41: #{tpu_custom_call.1} parent=35 // pred_check
          %p208 = pneg %p65
        $region42: #{tpu_custom_call.1} parent=35 // pred_check_branch
          %210 = sbr.rel (%p208) target = $region44
        $region43: #{tpu_custom_call.1} parent=35 // pred_region
          %211 = dma.done [#allocation7], 256
        $region44: #{tpu_custom_call.1} parent=35 // pred_fallthru
          _
        %s212 = sand.u32 %s31, 1
        %s213 = scalar_lea.sflag [#allocation4], %s212
        %s214 = sand.u32 %s31, 1
        %s215 = smul.addr %s214, 64
        %s216 = scalar_lea.vmem [#allocation3], %s215
        %p217 = pneg %p44
        %p218 = pneg %p41
        %p219 = pneg %p65
        %p220 = pneg %p62
        %p221 = pneg %p86
        %p222 = pneg %p83
        %p223 = pneg %p107
        %p224 = pneg %p104
        %p225 = pneg %p133
        %p226 = pneg %p130
        %s227 = sand.u32 %s120, 1
        %s228 = scalar_lea.sflag [#allocation5], %s227
        %s229 = sand.u32 %s120, 1
        %s230 = smul.addr %s229, 64
        %s231 = scalar_lea.vmem [#allocation8], %s230
        %s232 = sld [smem:[#allocation2]]
        %v233 = vld [vmem:[%s203] sm:$0xff]
        %v234 = vld [vmem:[%s203 + $0x8] sm:$0xff]
        %v235 = vld [vmem:[%s203 + $0x10] sm:$0xff]
        %v236 = vld [vmem:[%s203 + $0x18] sm:$0xff]
        %v237 = vld [vmem:[%s203 + $0x20] sm:$0xff]
        %v238 = vld [vmem:[%s203 + $0x28] sm:$0xff]
        %v239 = vld [vmem:[%s203 + $0x30] sm:$0xff]
        %v240 = vld [vmem:[%s203 + $0x38] sm:$0xff]
        %v241 = vld [vmem:[#allocation6] sm:$0xff]
        %v242 = vld [vmem:[#allocation6 + $0x8] sm:$0xff]
        %v243 = vld [vmem:[%s2] sm:$0x1]
        %v245 = vlaneseq
        %v246 = vshrl.u32 %v245, 7
        %v247 = vsub.s32 0, %v246
        %v248 = vrot.slane %v243, %v247
        %vm250 = vcmask 130048
        %v252 = vsel %vm250, %v233, 0
        %v255 = vsel %vm250, %v234, 0
        %v258 = vsel %vm250, %v235, 0
        %v261 = vsel %vm250, %v236, 0
        %v264 = vsel %vm250, %v237, 0
        %v267 = vsel %vm250, %v238, 0
        %v270 = vsel %vm250, %v239, 0
        %v273 = vsel %vm250, %v240, 0
        %275 = vmatprep.subr.mxu0 0.0
        %276 = vmatpush1.msra.mxu0 %v241
        %277 = vmatprep.subr.mxu0 0.0
        %278 = vmatpush1.msra.mxu0 %v242
        %279 = vmatprep.subr.mxu0 0.0
        %280 = vmatpush1.msra.mxu0 0.0
        %281 = vmatprep.subr.mxu0 0.0
        %282 = vmatpush1.msra.mxu0 0.0
        %283 = vmatprep.subr.mxu0 0.0
        %284 = vmatpush1.msra.mxu0 0.0
        %285 = vmatprep.subr.mxu0 0.0
        %286 = vmatpush1.msra.mxu0 0.0
        %287 = vmatprep.subr.mxu0 0.0
        %288 = vmatpush1.msra.mxu0 0.0
        %289 = vmatprep.subr.mxu0 0.0
        %290 = vmatpush1.msra.mxu0 0.0
        %291 = vmatprep.subr.mxu0 0.0
        %292 = vmatpush1.msra.mxu0 0.0
        %293 = vmatprep.subr.mxu0 0.0
        %294 = vmatpush1.msra.mxu0 0.0
        %295 = vmatprep.subr.mxu0 0.0
        %296 = vmatpush1.msra.mxu0 0.0
        %297 = vmatprep.subr.mxu0 0.0
        %298 = vmatpush1.msra.mxu0 0.0
        %299 = vmatprep.subr.mxu0 0.0
        %300 = vmatpush1.msra.mxu0 0.0
        %301 = vmatprep.subr.mxu0 0.0
        %302 = vmatpush1.msra.mxu0 0.0
        %303 = vmatprep.subr.mxu0 0.0
        %304 = vmatpush1.msra.mxu0 0.0
        %305 = vmatprep.subr.mxu0 0.0
        %306 = vmatpush1.msra.mxu0 0.0
        %307 = vmatprep.subr.mxu0 0.0
        %308 = vmatpush1.msra.mxu0 0.0
        %309 = vmatprep.subr.mxu0 0.0
        %310 = vmatpush1.msra.mxu0 0.0
        %311 = vmatprep.subr.mxu0 0.0
        %312 = vmatpush1.msra.mxu0 0.0
        %313 = vmatprep.subr.mxu0 0.0
        %314 = vmatpush1.msra.mxu0 0.0
        %315 = vmatprep.subr.mxu0 0.0
        %316 = vmatpush1.msra.mxu0 0.0
        %317 = vmatprep.subr.mxu0 0.0
        %318 = vmatpush1.msra.mxu0 0.0
        %319 = vmatprep.subr.mxu0 0.0
        %320 = vmatpush1.msra.mxu0 0.0
        %321 = vmatprep.subr.mxu0 0.0
        %322 = vmatpush1.msra.mxu0 0.0
        %323 = vmatprep.subr.mxu0 0.0
        %324 = vmatpush1.msra.mxu0 0.0
        %325 = vmatprep.subr.mxu0 0.0
        %326 = vmatpush1.msra.mxu0 0.0
        %327 = vmatprep.subr.mxu0 0.0
        %328 = vmatpush1.msra.mxu0 0.0
        %329 = vmatprep.subr.mxu0 0.0
        %330 = vmatpush1.msra.mxu0 0.0
        %331 = vmatprep.subr.mxu0 0.0
        %332 = vmatpush1.msra.mxu0 0.0
        %333 = vmatprep.subr.mxu0 0.0
        %334 = vmatpush1.msra.mxu0 0.0
        %335 = vmatprep.subr.mxu0 0.0
        %336 = vmatpush1.msra.mxu0 0.0
        %337 = vmatprep.subr.mxu0 0.0
        %338 = vmatpush1.msra.mxu0 0.0
        %339 = vmatprep.mubr.f32.mxu0 0.0
        %340 = vmatmul.mubr.f32.gmra.mrb[0].mxu0 %v252
        %v341 = vpop.f32.mrb[0].mxu0
        %v342 = vadd.f32 %v248, %v341
        %v343 = vpop.f32.mrb[0].mxu0
        %344 = vmatprep.mubr.f32.mxu0 0.0
        %345 = vmatmul.mubr.f32.gmra.mrb[0].mxu0 %v255
        %v346 = vpop.f32.mrb[0].mxu0
        %v347 = vadd.f32 %v248, %v346
        %v348 = vpop.f32.mrb[0].mxu0
        %349 = vmatprep.mubr.f32.mxu0 0.0
        %350 = vmatmul.mubr.f32.gmra.mrb[0].mxu0 %v258
        %v351 = vpop.f32.mrb[0].mxu0
        %v352 = vadd.f32 %v248, %v351
        %v353 = vpop.f32.mrb[0].mxu0
        %354 = vmatprep.mubr.f32.mxu0 0.0
        %355 = vmatmul.mubr.f32.gmra.mrb[0].mxu0 %v261
        %v356 = vpop.f32.mrb[0].mxu0
        %v357 = vadd.f32 %v248, %v356
        %v358 = vpop.f32.mrb[0].mxu0
        %359 = vmatprep.mubr.f32.mxu0 0.0
        %360 = vmatmul.mubr.f32.gmra.mrb[0].mxu0 %v264
        %v361 = vpop.f32.mrb[0].mxu0
        %v362 = vadd.f32 %v248, %v361
        %v363 = vpop.f32.mrb[0].mxu0
        %364 = vmatprep.mubr.f32.mxu0 0.0
        %365 = vmatmul.mubr.f32.gmra.mrb[0].mxu0 %v267
        %v366 = vpop.f32.mrb[0].mxu0
        %v367 = vadd.f32 %v248, %v366
        %v368 = vpop.f32.mrb[0].mxu0
        %369 = vmatprep.mubr.f32.mxu0 0.0
        %370 = vmatmul.mubr.f32.gmra.mrb[0].mxu0 %v270
        %v371 = vpop.f32.mrb[0].mxu0
        %v372 = vadd.f32 %v248, %v371
        %v373 = vpop.f32.mrb[0].mxu0
        %374 = vmatprep.mubr.f32.mxu0 0.0
        %375 = vmatmul.mubr.f32.gmra.mrb[0].mxu0 %v273
        %v376 = vpop.f32.mrb[0].mxu0
        %v377 = vadd.f32 %v248, %v376
        %v378 = vpop.f32.mrb[0].mxu0
        %379 = vdwg.mxu0
        %381 = vrot.lane.b32.xlu0 %v342, 126
        %v382 = vpop.permute.xlu0 %381
        %vm383 = vcmask 15360
        %v384 = vsel %vm383, %v342, 0
        %v386 = vsel %vm383, %v382, 0
        %388 = vmatprep.subr.mxu0 0.0
        %389 = vmatpush1.xpose.msra.mxu0 %v386
        %390 = vmatprep.subr.mxu0 0.0
        %391 = vmatpush1.xpose.msra.mxu0 0.0
        %392 = vmatprep.subr.mxu0 0.0
        %393 = vmatpush1.xpose.msra.mxu0 0.0
        %394 = vmatprep.subr.mxu0 0.0
        %395 = vmatpush1.xpose.msra.mxu0 0.0
        %396 = vmatprep.subr.mxu0 0.0
        %397 = vmatpush1.xpose.msra.mxu0 0.0
        %398 = vmatprep.subr.mxu0 0.0
        %399 = vmatpush1.xpose.msra.mxu0 0.0
        %400 = vmatprep.subr.mxu0 0.0
        %401 = vmatpush1.xpose.msra.mxu0 0.0
        %402 = vmatprep.subr.mxu0 0.0
        %403 = vmatpush1.xpose.msra.mxu0 0.0
        %404 = vmatprep.subr.mxu0 0.0
        %405 = vmatpush1.xpose.msra.mxu0 0.0
        %406 = vmatprep.subr.mxu0 0.0
        %407 = vmatpush1.xpose.msra.mxu0 0.0
        %408 = vmatprep.subr.mxu0 0.0
        %409 = vmatpush1.xpose.msra.mxu0 0.0
        %410 = vmatprep.subr.mxu0 0.0
        %411 = vmatpush1.xpose.msra.mxu0 0.0
        %412 = vmatprep.subr.mxu0 0.0
        %413 = vmatpush1.xpose.msra.mxu0 0.0
        %414 = vmatprep.subr.mxu0 0.0
        %415 = vmatpush1.xpose.msra.mxu0 0.0
        %416 = vmatprep.subr.mxu0 0.0
        %417 = vmatpush1.xpose.msra.mxu0 0.0
        %418 = vmatprep.subr.mxu0 0.0
        %419 = vmatpush1.xpose.msra.mxu0 0.0
        %420 = vmatprep.subr.mxu0 0.0
        %421 = vmatpush1.xpose.msra.mxu0 0.0
        %422 = vmatprep.subr.mxu0 0.0
        %423 = vmatpush1.xpose.msra.mxu0 0.0
        %424 = vmatprep.subr.mxu0 0.0
        %425 = vmatpush1.xpose.msra.mxu0 0.0
        %426 = vmatprep.subr.mxu0 0.0
        %427 = vmatpush1.xpose.msra.mxu0 0.0
        %428 = vmatprep.subr.mxu0 0.0
        %429 = vmatpush1.xpose.msra.mxu0 0.0
        %430 = vmatprep.subr.mxu0 0.0
        %431 = vmatpush1.xpose.msra.mxu0 0.0
        %432 = vmatprep.subr.mxu0 0.0
        %433 = vmatpush1.xpose.msra.mxu0 0.0
        %434 = vmatprep.subr.mxu0 0.0
        %435 = vmatpush1.xpose.msra.mxu0 0.0
        %436 = vmatprep.subr.mxu0 0.0
        %437 = vmatpush1.xpose.msra.mxu0 0.0
        %438 = vmatprep.subr.mxu0 0.0
        %439 = vmatpush1.xpose.msra.mxu0 0.0
        %440 = vmatprep.subr.mxu0 0.0
        %441 = vmatpush1.xpose.msra.mxu0 0.0
        %442 = vmatprep.subr.mxu0 0.0
        %443 = vmatpush1.xpose.msra.mxu0 0.0
        %444 = vmatprep.subr.mxu0 0.0
        %445 = vmatpush1.xpose.msra.mxu0 0.0
        %446 = vmatprep.subr.mxu0 0.0
        %447 = vmatpush1.xpose.msra.mxu0 0.0
        %448 = vmatprep.subr.mxu0 0.0
        %449 = vmatpush1.xpose.msra.mxu0 0.0
        %450 = vmatprep.subr.mxu0 0.0
        %451 = vmatpush1.xpose.msra.mxu0 0.0
        %452 = vmatprep.mubr.f32.mxu0 0.0
        %453 = vmatmul.mubr.f32.gmra.mrb[0].mxu0 %v384
        %v454 = vpop.f32.mrb[0].mxu0
        %v455 = vadd.f32 0.0, %v454
        %v456 = vpop.f32.mrb[0].mxu0
        %457 = vdwg.mxu0
        %459 = vrot.lane.b32.xlu0 %v347, 126
        %v460 = vpop.permute.xlu0 %459
        %v461 = vsel %vm383, %v347, 0
        %v463 = vsel %vm383, %v460, 0
        %465 = vmatprep.subr.mxu0 0.0
        %466 = vmatpush1.xpose.msra.mxu0 %v463
        %467 = vmatprep.subr.mxu0 0.0
        %468 = vmatpush1.xpose.msra.mxu0 0.0
        %469 = vmatprep.subr.mxu0 0.0
        %470 = vmatpush1.xpose.msra.mxu0 0.0
        %471 = vmatprep.subr.mxu0 0.0
        %472 = vmatpush1.xpose.msra.mxu0 0.0
        %473 = vmatprep.subr.mxu0 0.0
        %474 = vmatpush1.xpose.msra.mxu0 0.0
        %475 = vmatprep.subr.mxu0 0.0
        %476 = vmatpush1.xpose.msra.mxu0 0.0
        %477 = vmatprep.subr.mxu0 0.0
        %478 = vmatpush1.xpose.msra.mxu0 0.0
        %479 = vmatprep.subr.mxu0 0.0
        %480 = vmatpush1.xpose.msra.mxu0 0.0
        %481 = vmatprep.subr.mxu0 0.0
        %482 = vmatpush1.xpose.msra.mxu0 0.0
        %483 = vmatprep.subr.mxu0 0.0
        %484 = vmatpush1.xpose.msra.mxu0 0.0
        %485 = vmatprep.subr.mxu0 0.0
        %486 = vmatpush1.xpose.msra.mxu0 0.0
        %487 = vmatprep.subr.mxu0 0.0
        %488 = vmatpush1.xpose.msra.mxu0 0.0
        %489 = vmatprep.subr.mxu0 0.0
        %490 = vmatpush1.xpose.msra.mxu0 0.0
        %491 = vmatprep.subr.mxu0 0.0
        %492 = vmatpush1.xpose.msra.mxu0 0.0
        %493 = vmatprep.subr.mxu0 0.0
        %494 = vmatpush1.xpose.msra.mxu0 0.0
        %495 = vmatprep.subr.mxu0 0.0
        %496 = vmatpush1.xpose.msra.mxu0 0.0
        %497 = vmatprep.subr.mxu0 0.0
        %498 = vmatpush1.xpose.msra.mxu0 0.0
        %499 = vmatprep.subr.mxu0 0.0
        %500 = vmatpush1.xpose.msra.mxu0 0.0
        %501 = vmatprep.subr.mxu0 0.0
        %502 = vmatpush1.xpose.msra.mxu0 0.0
        %503 = vmatprep.subr.mxu0 0.0
        %504 = vmatpush1.xpose.msra.mxu0 0.0
        %505 = vmatprep.subr.mxu0 0.0
        %506 = vmatpush1.xpose.msra.mxu0 0.0
        %507 = vmatprep.subr.mxu0 0.0
        %508 = vmatpush1.xpose.msra.mxu0 0.0
        %509 = vmatprep.subr.mxu0 0.0
        %510 = vmatpush1.xpose.msra.mxu0 0.0
        %511 = vmatprep.subr.mxu0 0.0
        %512 = vmatpush1.xpose.msra.mxu0 0.0
        %513 = vmatprep.subr.mxu0 0.0
        %514 = vmatpush1.xpose.msra.mxu0 0.0
        %515 = vmatprep.subr.mxu0 0.0
        %516 = vmatpush1.xpose.msra.mxu0 0.0
        %517 = vmatprep.subr.mxu0 0.0
        %518 = vmatpush1.xpose.msra.mxu0 0.0
        %519 = vmatprep.subr.mxu0 0.0
        %520 = vmatpush1.xpose.msra.mxu0 0.0
        %521 = vmatprep.subr.mxu0 0.0
        %522 = vmatpush1.xpose.msra.mxu0 0.0
        %523 = vmatprep.subr.mxu0 0.0
        %524 = vmatpush1.xpose.msra.mxu0 0.0
        %525 = vmatprep.subr.mxu0 0.0
        %526 = vmatpush1.xpose.msra.mxu0 0.0
        %527 = vmatprep.subr.mxu0 0.0
        %528 = vmatpush1.xpose.msra.mxu0 0.0
        %529 = vmatprep.mubr.f32.mxu0 0.0
        %530 = vmatmul.mubr.f32.gmra.mrb[0].mxu0 %v461
        %v531 = vpop.f32.mrb[0].mxu0
        %v532 = vadd.f32 0.0, %v531
        %v533 = vpop.f32.mrb[0].mxu0
        %534 = vdwg.mxu0
        %536 = vrot.lane.b32.xlu0 %v352, 126
        %v537 = vpop.permute.xlu0 %536
        %v538 = vsel %vm383, %v352, 0
        %v540 = vsel %vm383, %v537, 0
        %542 = vmatprep.subr.mxu0 0.0
        %543 = vmatpush1.xpose.msra.mxu0 %v540
        %544 = vmatprep.subr.mxu0 0.0
        %545 = vmatpush1.xpose.msra.mxu0 0.0
        %546 = vmatprep.subr.mxu0 0.0
        %547 = vmatpush1.xpose.msra.mxu0 0.0
        %548 = vmatprep.subr.mxu0 0.0
        %549 = vmatpush1.xpose.msra.mxu0 0.0
        %550 = vmatprep.subr.mxu0 0.0
        %551 = vmatpush1.xpose.msra.mxu0 0.0
        %552 = vmatprep.subr.mxu0 0.0
        %553 = vmatpush1.xpose.msra.mxu0 0.0
        %554 = vmatprep.subr.mxu0 0.0
        %555 = vmatpush1.xpose.msra.mxu0 0.0
        %556 = vmatprep.subr.mxu0 0.0
        %557 = vmatpush1.xpose.msra.mxu0 0.0
        %558 = vmatprep.subr.mxu0 0.0
        %559 = vmatpush1.xpose.msra.mxu0 0.0
        %560 = vmatprep.subr.mxu0 0.0
        %561 = vmatpush1.xpose.msra.mxu0 0.0
        %562 = vmatprep.subr.mxu0 0.0
        %563 = vmatpush1.xpose.msra.mxu0 0.0
        %564 = vmatprep.subr.mxu0 0.0
        %565 = vmatpush1.xpose.msra.mxu0 0.0
        %566 = vmatprep.subr.mxu0 0.0
        %567 = vmatpush1.xpose.msra.mxu0 0.0
        %568 = vmatprep.subr.mxu0 0.0
        %569 = vmatpush1.xpose.msra.mxu0 0.0
        %570 = vmatprep.subr.mxu0 0.0
        %571 = vmatpush1.xpose.msra.mxu0 0.0
        %572 = vmatprep.subr.mxu0 0.0
        %573 = vmatpush1.xpose.msra.mxu0 0.0
        %574 = vmatprep.subr.mxu0 0.0
        %575 = vmatpush1.xpose.msra.mxu0 0.0
        %576 = vmatprep.subr.mxu0 0.0
        %577 = vmatpush1.xpose.msra.mxu0 0.0
        %578 = vmatprep.subr.mxu0 0.0
        %579 = vmatpush1.xpose.msra.mxu0 0.0
        %580 = vmatprep.subr.mxu0 0.0
        %581 = vmatpush1.xpose.msra.mxu0 0.0
        %582 = vmatprep.subr.mxu0 0.0
        %583 = vmatpush1.xpose.msra.mxu0 0.0
        %584 = vmatprep.subr.mxu0 0.0
        %585 = vmatpush1.xpose.msra.mxu0 0.0
        %586 = vmatprep.subr.mxu0 0.0
        %587 = vmatpush1.xpose.msra.mxu0 0.0
        %588 = vmatprep.subr.mxu0 0.0
        %589 = vmatpush1.xpose.msra.mxu0 0.0
        %590 = vmatprep.subr.mxu0 0.0
        %591 = vmatpush1.xpose.msra.mxu0 0.0
        %592 = vmatprep.subr.mxu0 0.0
        %593 = vmatpush1.xpose.msra.mxu0 0.0
        %594 = vmatprep.subr.mxu0 0.0
        %595 = vmatpush1.xpose.msra.mxu0 0.0
        %596 = vmatprep.subr.mxu0 0.0
        %597 = vmatpush1.xpose.msra.mxu0 0.0
        %598 = vmatprep.subr.mxu0 0.0
        %599 = vmatpush1.xpose.msra.mxu0 0.0
        %600 = vmatprep.subr.mxu0 0.0
        %601 = vmatpush1.xpose.msra.mxu0 0.0
        %602 = vmatprep.subr.mxu0 0.0
        %603 = vmatpush1.xpose.msra.mxu0 0.0
        %604 = vmatprep.subr.mxu0 0.0
        %605 = vmatpush1.xpose.msra.mxu0 0.0
        %606 = vmatprep.mubr.f32.mxu0 0.0
        %607 = vmatmul.mubr.f32.gmra.mrb[0].mxu0 %v538
        %v608 = vpop.f32.mrb[0].mxu0
        %v609 = vadd.f32 0.0, %v608
        %v610 = vpop.f32.mrb[0].mxu0
        %611 = vdwg.mxu0
        %613 = vrot.lane.b32.xlu0 %v357, 126
        %v614 = vpop.permute.xlu0 %613
        %v615 = vsel %vm383, %v357, 0
        %v617 = vsel %vm383, %v614, 0
        %619 = vmatprep.subr.mxu0 0.0
        %620 = vmatpush1.xpose.msra.mxu0 %v617
        %621 = vmatprep.subr.mxu0 0.0
        %622 = vmatpush1.xpose.msra.mxu0 0.0
        %623 = vmatprep.subr.mxu0 0.0
        %624 = vmatpush1.xpose.msra.mxu0 0.0
        %625 = vmatprep.subr.mxu0 0.0
        %626 = vmatpush1.xpose.msra.mxu0 0.0
        %627 = vmatprep.subr.mxu0 0.0
        %628 = vmatpush1.xpose.msra.mxu0 0.0
        %629 = vmatprep.subr.mxu0 0.0
        %630 = vmatpush1.xpose.msra.mxu0 0.0
        %631 = vmatprep.subr.mxu0 0.0
        %632 = vmatpush1.xpose.msra.mxu0 0.0
        %633 = vmatprep.subr.mxu0 0.0
        %634 = vmatpush1.xpose.msra.mxu0 0.0
        %635 = vmatprep.subr.mxu0 0.0
        %636 = vmatpush1.xpose.msra.mxu0 0.0
        %637 = vmatprep.subr.mxu0 0.0
        %638 = vmatpush1.xpose.msra.mxu0 0.0
        %639 = vmatprep.subr.mxu0 0.0
        %640 = vmatpush1.xpose.msra.mxu0 0.0
        %641 = vmatprep.subr.mxu0 0.0
        %642 = vmatpush1.xpose.msra.mxu0 0.0
        %643 = vmatprep.subr.mxu0 0.0
        %644 = vmatpush1.xpose.msra.mxu0 0.0
        %645 = vmatprep.subr.mxu0 0.0
        %646 = vmatpush1.xpose.msra.mxu0 0.0
        %647 = vmatprep.subr.mxu0 0.0
        %648 = vmatpush1.xpose.msra.mxu0 0.0
        %649 = vmatprep.subr.mxu0 0.0
        %650 = vmatpush1.xpose.msra.mxu0 0.0
        %651 = vmatprep.subr.mxu0 0.0
        %652 = vmatpush1.xpose.msra.mxu0 0.0
        %653 = vmatprep.subr.mxu0 0.0
        %654 = vmatpush1.xpose.msra.mxu0 0.0
        %655 = vmatprep.subr.mxu0 0.0
        %656 = vmatpush1.xpose.msra.mxu0 0.0
        %657 = vmatprep.subr.mxu0 0.0
        %658 = vmatpush1.xpose.msra.mxu0 0.0
        %659 = vmatprep.subr.mxu0 0.0
        %660 = vmatpush1.xpose.msra.mxu0 0.0
        %661 = vmatprep.subr.mxu0 0.0
        %662 = vmatpush1.xpose.msra.mxu0 0.0
        %663 = vmatprep.subr.mxu0 0.0
        %664 = vmatpush1.xpose.msra.mxu0 0.0
        %665 = vmatprep.subr.mxu0 0.0
        %666 = vmatpush1.xpose.msra.mxu0 0.0
        %667 = vmatprep.subr.mxu0 0.0
        %668 = vmatpush1.xpose.msra.mxu0 0.0
        %669 = vmatprep.subr.mxu0 0.0
        %670 = vmatpush1.xpose.msra.mxu0 0.0
        %671 = vmatprep.subr.mxu0 0.0
        %672 = vmatpush1.xpose.msra.mxu0 0.0
        %673 = vmatprep.subr.mxu0 0.0
        %674 = vmatpush1.xpose.msra.mxu0 0.0
        %675 = vmatprep.subr.mxu0 0.0
        %676 = vmatpush1.xpose.msra.mxu0 0.0
        %677 = vmatprep.subr.mxu0 0.0
        %678 = vmatpush1.xpose.msra.mxu0 0.0
        %679 = vmatprep.subr.mxu0 0.0
        %680 = vmatpush1.xpose.msra.mxu0 0.0
        %681 = vmatprep.subr.mxu0 0.0
        %682 = vmatpush1.xpose.msra.mxu0 0.0
        %683 = vmatprep.mubr.f32.mxu0 0.0
        %684 = vmatmul.mubr.f32.gmra.mrb[0].mxu0 %v615
        %v685 = vpop.f32.mrb[0].mxu0
        %v686 = vadd.f32 0.0, %v685
        %v687 = vpop.f32.mrb[0].mxu0
        %688 = vdwg.mxu0
        %690 = vrot.lane.b32.xlu0 %v362, 126
        %v691 = vpop.permute.xlu0 %690
        %v692 = vsel %vm383, %v362, 0
        %v694 = vsel %vm383, %v691, 0
        %696 = vmatprep.subr.mxu0 0.0
        %697 = vmatpush1.xpose.msra.mxu0 %v694
        %698 = vmatprep.subr.mxu0 0.0
        %699 = vmatpush1.xpose.msra.mxu0 0.0
        %700 = vmatprep.subr.mxu0 0.0
        %701 = vmatpush1.xpose.msra.mxu0 0.0
        %702 = vmatprep.subr.mxu0 0.0
        %703 = vmatpush1.xpose.msra.mxu0 0.0
        %704 = vmatprep.subr.mxu0 0.0
        %705 = vmatpush1.xpose.msra.mxu0 0.0
        %706 = vmatprep.subr.mxu0 0.0
        %707 = vmatpush1.xpose.msra.mxu0 0.0
        %708 = vmatprep.subr.mxu0 0.0
        %709 = vmatpush1.xpose.msra.mxu0 0.0
        %710 = vmatprep.subr.mxu0 0.0
        %711 = vmatpush1.xpose.msra.mxu0 0.0
        %712 = vmatprep.subr.mxu0 0.0
        %713 = vmatpush1.xpose.msra.mxu0 0.0
        %714 = vmatprep.subr.mxu0 0.0
        %715 = vmatpush1.xpose.msra.mxu0 0.0
        %716 = vmatprep.subr.mxu0 0.0
        %717 = vmatpush1.xpose.msra.mxu0 0.0
        %718 = vmatprep.subr.mxu0 0.0
        %719 = vmatpush1.xpose.msra.mxu0 0.0
        %720 = vmatprep.subr.mxu0 0.0
        %721 = vmatpush1.xpose.msra.mxu0 0.0
        %722 = vmatprep.subr.mxu0 0.0
        %723 = vmatpush1.xpose.msra.mxu0 0.0
        %724 = vmatprep.subr.mxu0 0.0
        %725 = vmatpush1.xpose.msra.mxu0 0.0
        %726 = vmatprep.subr.mxu0 0.0
        %727 = vmatpush1.xpose.msra.mxu0 0.0
        %728 = vmatprep.subr.mxu0 0.0
        %729 = vmatpush1.xpose.msra.mxu0 0.0
        %730 = vmatprep.subr.mxu0 0.0
        %731 = vmatpush1.xpose.msra.mxu0 0.0
        %732 = vmatprep.subr.mxu0 0.0
        %733 = vmatpush1.xpose.msra.mxu0 0.0
        %734 = vmatprep.subr.mxu0 0.0
        %735 = vmatpush1.xpose.msra.mxu0 0.0
        %736 = vmatprep.subr.mxu0 0.0
        %737 = vmatpush1.xpose.msra.mxu0 0.0
        %738 = vmatprep.subr.mxu0 0.0
        %739 = vmatpush1.xpose.msra.mxu0 0.0
        %740 = vmatprep.subr.mxu0 0.0
        %741 = vmatpush1.xpose.msra.mxu0 0.0
        %742 = vmatprep.subr.mxu0 0.0
        %743 = vmatpush1.xpose.msra.mxu0 0.0
        %744 = vmatprep.subr.mxu0 0.0
        %745 = vmatpush1.xpose.msra.mxu0 0.0
        %746 = vmatprep.subr.mxu0 0.0
        %747 = vmatpush1.xpose.msra.mxu0 0.0
        %748 = vmatprep.subr.mxu0 0.0
        %749 = vmatpush1.xpose.msra.mxu0 0.0
        %750 = vmatprep.subr.mxu0 0.0
        %751 = vmatpush1.xpose.msra.mxu0 0.0
        %752 = vmatprep.subr.mxu0 0.0
        %753 = vmatpush1.xpose.msra.mxu0 0.0
        %754 = vmatprep.subr.mxu0 0.0
        %755 = vmatpush1.xpose.msra.mxu0 0.0
        %756 = vmatprep.subr.mxu0 0.0
        %757 = vmatpush1.xpose.msra.mxu0 0.0
        %758 = vmatprep.subr.mxu0 0.0
        %759 = vmatpush1.xpose.msra.mxu0 0.0
        %760 = vmatprep.mubr.f32.mxu0 0.0
        %761 = vmatmul.mubr.f32.gmra.mrb[0].mxu0 %v692
        %v762 = vpop.f32.mrb[0].mxu0
        %v763 = vadd.f32 0.0, %v762
        %v764 = vpop.f32.mrb[0].mxu0
        %765 = vdwg.mxu0
        %767 = vrot.lane.b32.xlu0 %v367, 126
        %v768 = vpop.permute.xlu0 %767
        %v769 = vsel %vm383, %v367, 0
        %v771 = vsel %vm383, %v768, 0
        %773 = vmatprep.subr.mxu0 0.0
        %774 = vmatpush1.xpose.msra.mxu0 %v771
        %775 = vmatprep.subr.mxu0 0.0
        %776 = vmatpush1.xpose.msra.mxu0 0.0
        %777 = vmatprep.subr.mxu0 0.0
        %778 = vmatpush1.xpose.msra.mxu0 0.0
        %779 = vmatprep.subr.mxu0 0.0
        %780 = vmatpush1.xpose.msra.mxu0 0.0
        %781 = vmatprep.subr.mxu0 0.0
        %782 = vmatpush1.xpose.msra.mxu0 0.0
        %783 = vmatprep.subr.mxu0 0.0
        %784 = vmatpush1.xpose.msra.mxu0 0.0
        %785 = vmatprep.subr.mxu0 0.0
        %786 = vmatpush1.xpose.msra.mxu0 0.0
        %787 = vmatprep.subr.mxu0 0.0
        %788 = vmatpush1.xpose.msra.mxu0 0.0
        %789 = vmatprep.subr.mxu0 0.0
        %790 = vmatpush1.xpose.msra.mxu0 0.0
        %791 = vmatprep.subr.mxu0 0.0
        %792 = vmatpush1.xpose.msra.mxu0 0.0
        %793 = vmatprep.subr.mxu0 0.0
        %794 = vmatpush1.xpose.msra.mxu0 0.0
        %795 = vmatprep.subr.mxu0 0.0
        %796 = vmatpush1.xpose.msra.mxu0 0.0
        %797 = vmatprep.subr.mxu0 0.0
        %798 = vmatpush1.xpose.msra.mxu0 0.0
        %799 = vmatprep.subr.mxu0 0.0
        %800 = vmatpush1.xpose.msra.mxu0 0.0
        %801 = vmatprep.subr.mxu0 0.0
        %802 = vmatpush1.xpose.msra.mxu0 0.0
        %803 = vmatprep.subr.mxu0 0.0
        %804 = vmatpush1.xpose.msra.mxu0 0.0
        %805 = vmatprep.subr.mxu0 0.0
        %806 = vmatpush1.xpose.msra.mxu0 0.0
        %807 = vmatprep.subr.mxu0 0.0
        %808 = vmatpush1.xpose.msra.mxu0 0.0
        %809 = vmatprep.subr.mxu0 0.0
        %810 = vmatpush1.xpose.msra.mxu0 0.0
        %811 = vmatprep.subr.mxu0 0.0
        %812 = vmatpush1.xpose.msra.mxu0 0.0
        %813 = vmatprep.subr.mxu0 0.0
        %814 = vmatpush1.xpose.msra.mxu0 0.0
        %815 = vmatprep.subr.mxu0 0.0
        %816 = vmatpush1.xpose.msra.mxu0 0.0
        %817 = vmatprep.subr.mxu0 0.0
        %818 = vmatpush1.xpose.msra.mxu0 0.0
        %819 = vmatprep.subr.mxu0 0.0
        %820 = vmatpush1.xpose.msra.mxu0 0.0
        %821 = vmatprep.subr.mxu0 0.0
        %822 = vmatpush1.xpose.msra.mxu0 0.0
        %823 = vmatprep.subr.mxu0 0.0
        %824 = vmatpush1.xpose.msra.mxu0 0.0
        %825 = vmatprep.subr.mxu0 0.0
        %826 = vmatpush1.xpose.msra.mxu0 0.0
        %827 = vmatprep.subr.mxu0 0.0
        %828 = vmatpush1.xpose.msra.mxu0 0.0
        %829 = vmatprep.subr.mxu0 0.0
        %830 = vmatpush1.xpose.msra.mxu0 0.0
        %831 = vmatprep.subr.mxu0 0.0
        %832 = vmatpush1.xpose.msra.mxu0 0.0
        %833 = vmatprep.subr.mxu0 0.0
        %834 = vmatpush1.xpose.msra.mxu0 0.0
        %835 = vmatprep.subr.mxu0 0.0
        %836 = vmatpush1.xpose.msra.mxu0 0.0
        %837 = vmatprep.mubr.f32.mxu0 0.0
        %838 = vmatmul.mubr.f32.gmra.mrb[0].mxu0 %v769
        %v839 = vpop.f32.mrb[0].mxu0
        %v840 = vadd.f32 0.0, %v839
        %v841 = vpop.f32.mrb[0].mxu0
        %842 = vdwg.mxu0
        %844 = vrot.lane.b32.xlu0 %v372, 126
        %v845 = vpop.permute.xlu0 %844
        %v846 = vsel %vm383, %v372, 0
        %v848 = vsel %vm383, %v845, 0
        %850 = vmatprep.subr.mxu0 0.0
        %851 = vmatpush1.xpose.msra.mxu0 %v848
        %852 = vmatprep.subr.mxu0 0.0
        %853 = vmatpush1.xpose.msra.mxu0 0.0
        %854 = vmatprep.subr.mxu0 0.0
        %855 = vmatpush1.xpose.msra.mxu0 0.0
        %856 = vmatprep.subr.mxu0 0.0
        %857 = vmatpush1.xpose.msra.mxu0 0.0
        %858 = vmatprep.subr.mxu0 0.0
        %859 = vmatpush1.xpose.msra.mxu0 0.0
        %860 = vmatprep.subr.mxu0 0.0
        %861 = vmatpush1.xpose.msra.mxu0 0.0
        %862 = vmatprep.subr.mxu0 0.0
        %863 = vmatpush1.xpose.msra.mxu0 0.0
        %864 = vmatprep.subr.mxu0 0.0
        %865 = vmatpush1.xpose.msra.mxu0 0.0
        %866 = vmatprep.subr.mxu0 0.0
        %867 = vmatpush1.xpose.msra.mxu0 0.0
        %868 = vmatprep.subr.mxu0 0.0
        %869 = vmatpush1.xpose.msra.mxu0 0.0
        %870 = vmatprep.subr.mxu0 0.0
        %871 = vmatpush1.xpose.msra.mxu0 0.0
        %872 = vmatprep.subr.mxu0 0.0
        %873 = vmatpush1.xpose.msra.mxu0 0.0
        %874 = vmatprep.subr.mxu0 0.0
        %875 = vmatpush1.xpose.msra.mxu0 0.0
        %876 = vmatprep.subr.mxu0 0.0
        %877 = vmatpush1.xpose.msra.mxu0 0.0
        %878 = vmatprep.subr.mxu0 0.0
        %879 = vmatpush1.xpose.msra.mxu0 0.0
        %880 = vmatprep.subr.mxu0 0.0
        %881 = vmatpush1.xpose.msra.mxu0 0.0
        %882 = vmatprep.subr.mxu0 0.0
        %883 = vmatpush1.xpose.msra.mxu0 0.0
        %884 = vmatprep.subr.mxu0 0.0
        %885 = vmatpush1.xpose.msra.mxu0 0.0
        %886 = vmatprep.subr.mxu0 0.0
        %887 = vmatpush1.xpose.msra.mxu0 0.0
        %888 = vmatprep.subr.mxu0 0.0
        %889 = vmatpush1.xpose.msra.mxu0 0.0
        %890 = vmatprep.subr.mxu0 0.0
        %891 = vmatpush1.xpose.msra.mxu0 0.0
        %892 = vmatprep.subr.mxu0 0.0
        %893 = vmatpush1.xpose.msra.mxu0 0.0
        %894 = vmatprep.subr.mxu0 0.0
        %895 = vmatpush1.xpose.msra.mxu0 0.0
        %896 = vmatprep.subr.mxu0 0.0
        %897 = vmatpush1.xpose.msra.mxu0 0.0
        %898 = vmatprep.subr.mxu0 0.0
        %899 = vmatpush1.xpose.msra.mxu0 0.0
        %900 = vmatprep.subr.mxu0 0.0
        %901 = vmatpush1.xpose.msra.mxu0 0.0
        %902 = vmatprep.subr.mxu0 0.0
        %903 = vmatpush1.xpose.msra.mxu0 0.0
        %904 = vmatprep.subr.mxu0 0.0
        %905 = vmatpush1.xpose.msra.mxu0 0.0
        %906 = vmatprep.subr.mxu0 0.0
        %907 = vmatpush1.xpose.msra.mxu0 0.0
        %908 = vmatprep.subr.mxu0 0.0
        %909 = vmatpush1.xpose.msra.mxu0 0.0
        %910 = vmatprep.subr.mxu0 0.0
        %911 = vmatpush1.xpose.msra.mxu0 0.0
        %912 = vmatprep.subr.mxu0 0.0
        %913 = vmatpush1.xpose.msra.mxu0 0.0
        %914 = vmatprep.mubr.f32.mxu0 0.0
        %915 = vmatmul.mubr.f32.gmra.mrb[0].mxu0 %v846
        %v916 = vpop.f32.mrb[0].mxu0
        %v917 = vadd.f32 0.0, %v916
        %v918 = vpop.f32.mrb[0].mxu0
        %919 = vdwg.mxu0
        %921 = vrot.lane.b32.xlu0 %v377, 126
        %v922 = vpop.permute.xlu0 %921
        %v923 = vsel %vm383, %v377, 0
        %v925 = vsel %vm383, %v922, 0
        %927 = vmatprep.subr.mxu0 0.0
        %928 = vmatpush1.xpose.msra.mxu0 %v925
        %929 = vmatprep.subr.mxu0 0.0
        %930 = vmatpush1.xpose.msra.mxu0 0.0
        %931 = vmatprep.subr.mxu0 0.0
        %932 = vmatpush1.xpose.msra.mxu0 0.0
        %933 = vmatprep.subr.mxu0 0.0
        %934 = vmatpush1.xpose.msra.mxu0 0.0
        %935 = vmatprep.subr.mxu0 0.0
        %936 = vmatpush1.xpose.msra.mxu0 0.0
        %937 = vmatprep.subr.mxu0 0.0
        %938 = vmatpush1.xpose.msra.mxu0 0.0
        %939 = vmatprep.subr.mxu0 0.0
        %940 = vmatpush1.xpose.msra.mxu0 0.0
        %941 = vmatprep.subr.mxu0 0.0
        %942 = vmatpush1.xpose.msra.mxu0 0.0
        %943 = vmatprep.subr.mxu0 0.0
        %944 = vmatpush1.xpose.msra.mxu0 0.0
        %945 = vmatprep.subr.mxu0 0.0
        %946 = vmatpush1.xpose.msra.mxu0 0.0
        %947 = vmatprep.subr.mxu0 0.0
        %948 = vmatpush1.xpose.msra.mxu0 0.0
        %949 = vmatprep.subr.mxu0 0.0
        %950 = vmatpush1.xpose.msra.mxu0 0.0
        %951 = vmatprep.subr.mxu0 0.0
        %952 = vmatpush1.xpose.msra.mxu0 0.0
        %953 = vmatprep.subr.mxu0 0.0
        %954 = vmatpush1.xpose.msra.mxu0 0.0
        %955 = vmatprep.subr.mxu0 0.0
        %956 = vmatpush1.xpose.msra.mxu0 0.0
        %957 = vmatprep.subr.mxu0 0.0
        %958 = vmatpush1.xpose.msra.mxu0 0.0
        %959 = vmatprep.subr.mxu0 0.0
        %960 = vmatpush1.xpose.msra.mxu0 0.0
        %961 = vmatprep.subr.mxu0 0.0
        %962 = vmatpush1.xpose.msra.mxu0 0.0
        %963 = vmatprep.subr.mxu0 0.0
        %964 = vmatpush1.xpose.msra.mxu0 0.0
        %965 = vmatprep.subr.mxu0 0.0
        %966 = vmatpush1.xpose.msra.mxu0 0.0
        %967 = vmatprep.subr.mxu0 0.0
        %968 = vmatpush1.xpose.msra.mxu0 0.0
        %969 = vmatprep.subr.mxu0 0.0
        %970 = vmatpush1.xpose.msra.mxu0 0.0
        %971 = vmatprep.subr.mxu0 0.0
        %972 = vmatpush1.xpose.msra.mxu0 0.0
        %973 = vmatprep.subr.mxu0 0.0
        %974 = vmatpush1.xpose.msra.mxu0 0.0
        %975 = vmatprep.subr.mxu0 0.0
        %976 = vmatpush1.xpose.msra.mxu0 0.0
        %977 = vmatprep.subr.mxu0 0.0
        %978 = vmatpush1.xpose.msra.mxu0 0.0
        %979 = vmatprep.subr.mxu0 0.0
        %980 = vmatpush1.xpose.msra.mxu0 0.0
        %981 = vmatprep.subr.mxu0 0.0
        %982 = vmatpush1.xpose.msra.mxu0 0.0
        %983 = vmatprep.subr.mxu0 0.0
        %984 = vmatpush1.xpose.msra.mxu0 0.0
        %985 = vmatprep.subr.mxu0 0.0
        %986 = vmatpush1.xpose.msra.mxu0 0.0
        %987 = vmatprep.subr.mxu0 0.0
        %988 = vmatpush1.xpose.msra.mxu0 0.0
        %989 = vmatprep.subr.mxu0 0.0
        %990 = vmatpush1.xpose.msra.mxu0 0.0
        %991 = vmatprep.mubr.f32.mxu0 0.0
        %992 = vmatmul.mubr.f32.gmra.mrb[0].mxu0 %v923
        %v993 = vpop.f32.mrb[0].mxu0
        %v994 = vadd.f32 0.0, %v993
        %v995 = vpop.f32.mrb[0].mxu0
        %996 = vdwg.mxu0
        %v997 = vcombine.low %v342, %v352
        %v998 = vcombine.high %v342, %v352
        %v1000 = vunpack.c.l.s4 1983009808
        %v1001 = vunpack.c.0.s8 %v1000
        %v1002 = vlaneseq
        %v1003 = vshrl.u32 %v1002, 7
        %v1004 = vsub.s32 %v1001, %v1003
        %v1005 = vrot.slane %v997, %v1004
        %v1007 = vunpack.c.l.s4 1983009808
        %v1008 = vunpack.c.0.s8 %v1007
        %v1009 = vlaneseq
        %v1010 = vshrl.u32 %v1009, 7
        %v1011 = vsub.s32 %v1008, %v1010
        %v1012 = vrot.slane %v998, %v1011
        %v1013 = vcombine.low %v347, %v357
        %v1014 = vcombine.high %v347, %v357
        %v1016 = vunpack.c.l.s4 1983009808
        %v1017 = vunpack.c.0.s8 %v1016
        %v1018 = vlaneseq
        %v1019 = vshrl.u32 %v1018, 7
        %v1020 = vsub.s32 %v1017, %v1019
        %v1021 = vrot.slane %v1013, %v1020
        %v1023 = vunpack.c.l.s4 1983009808
        %v1024 = vunpack.c.0.s8 %v1023
        %v1025 = vlaneseq
        %v1026 = vshrl.u32 %v1025, 7
        %v1027 = vsub.s32 %v1024, %v1026
        %v1028 = vrot.slane %v1014, %v1027
        %v1029 = vcombine.low %v362, %v372
        %v1030 = vcombine.high %v362, %v372
        %v1032 = vunpack.c.l.s4 1983009808
        %v1033 = vunpack.c.0.s8 %v1032
        %v1034 = vlaneseq
        %v1035 = vshrl.u32 %v1034, 7
        %v1036 = vsub.s32 %v1033, %v1035
        %v1037 = vrot.slane %v1029, %v1036
        %v1039 = vunpack.c.l.s4 1983009808
        %v1040 = vunpack.c.0.s8 %v1039
        %v1041 = vlaneseq
        %v1042 = vshrl.u32 %v1041, 7
        %v1043 = vsub.s32 %v1040, %v1042
        %v1044 = vrot.slane %v1030, %v1043
        %v1045 = vcombine.low %v367, %v377
        %v1046 = vcombine.high %v367, %v377
        %v1048 = vunpack.c.l.s4 1983009808
        %v1049 = vunpack.c.0.s8 %v1048
        %v1050 = vlaneseq
        %v1051 = vshrl.u32 %v1050, 7
        %v1052 = vsub.s32 %v1049, %v1051
        %v1053 = vrot.slane %v1045, %v1052
        %v1055 = vunpack.c.l.s4 1983009808
        %v1056 = vunpack.c.0.s8 %v1055
        %v1057 = vlaneseq
        %v1058 = vshrl.u32 %v1057, 7
        %v1059 = vsub.s32 %v1056, %v1058
        %v1060 = vrot.slane %v1046, %v1059
        %v1061 = vcombine.low %v1005, %v1021
        %v1062 = vcombine.high %v1005, %v1021
        %v1064 = vunpack.c.l.s4 1934713408
        %v1065 = vunpack.c.0.s8 %v1064
        %v1066 = vlaneseq
        %v1067 = vshrl.u32 %v1066, 7
        %v1068 = vsub.s32 %v1065, %v1067
        %v1069 = vrot.slane %v1061, %v1068
        %v1071 = vunpack.c.l.s4 1934713408
        %v1072 = vunpack.c.0.s8 %v1071
        %v1073 = vlaneseq
        %v1074 = vshrl.u32 %v1073, 7
        %v1075 = vsub.s32 %v1072, %v1074
        %v1076 = vrot.slane %v1062, %v1075
        %v1077 = vcombine.low %v1012, %v1028
        %v1078 = vcombine.high %v1012, %v1028
        %v1080 = vunpack.c.l.s4 1934713408
        %v1081 = vunpack.c.0.s8 %v1080
        %v1082 = vlaneseq
        %v1083 = vshrl.u32 %v1082, 7
        %v1084 = vsub.s32 %v1081, %v1083
        %v1085 = vrot.slane %v1077, %v1084
        %v1087 = vunpack.c.l.s4 1934713408
        %v1088 = vunpack.c.0.s8 %v1087
        %v1089 = vlaneseq
        %v1090 = vshrl.u32 %v1089, 7
        %v1091 = vsub.s32 %v1088, %v1090
        %v1092 = vrot.slane %v1078, %v1091
        %v1093 = vcombine.low %v1037, %v1053
        %v1094 = vcombine.high %v1037, %v1053
        %v1096 = vunpack.c.l.s4 1934713408
        %v1097 = vunpack.c.0.s8 %v1096
        %v1098 = vlaneseq
        %v1099 = vshrl.u32 %v1098, 7
        %v1100 = vsub.s32 %v1097, %v1099
        %v1101 = vrot.slane %v1093, %v1100
        %v1103 = vunpack.c.l.s4 1934713408
        %v1104 = vunpack.c.0.s8 %v1103
        %v1105 = vlaneseq
        %v1106 = vshrl.u32 %v1105, 7
        %v1107 = vsub.s32 %v1104, %v1106
        %v1108 = vrot.slane %v1094, %v1107
        %v1109 = vcombine.low %v1044, %v1060
        %v1110 = vcombine.high %v1044, %v1060
        %v1112 = vunpack.c.l.s4 1934713408
        %v1113 = vunpack.c.0.s8 %v1112
        %v1114 = vlaneseq
        %v1115 = vshrl.u32 %v1114, 7
        %v1116 = vsub.s32 %v1113, %v1115
        %v1117 = vrot.slane %v1109, %v1116
        %v1119 = vunpack.c.l.s4 1934713408
        %v1120 = vunpack.c.0.s8 %v1119
        %v1121 = vlaneseq
        %v1122 = vshrl.u32 %v1121, 7
        %v1123 = vsub.s32 %v1120, %v1122
        %v1124 = vrot.slane %v1110, %v1123
        %v1125 = vcombine.low %v1069, %v1101
        %v1126 = vcombine.high %v1069, %v1101
        %v1127 = vcombine.low %v1076, %v1108
        %v1128 = vcombine.high %v1076, %v1108
        %v1129 = vcombine.low %v1085, %v1117
        %v1130 = vcombine.high %v1085, %v1117
        %v1131 = vcombine.low %v1092, %v1124
        %v1132 = vcombine.high %v1092, %v1124
        %v1141 = vcombine.low %v382, %v537
        %v1142 = vcombine.high %v382, %v537
        %v1144 = vunpack.c.l.s4 1983009808
        %v1145 = vunpack.c.0.s8 %v1144
        %v1146 = vlaneseq
        %v1147 = vshrl.u32 %v1146, 7
        %v1148 = vsub.s32 %v1145, %v1147
        %v1149 = vrot.slane %v1141, %v1148
        %v1151 = vunpack.c.l.s4 1983009808
        %v1152 = vunpack.c.0.s8 %v1151
        %v1153 = vlaneseq
        %v1154 = vshrl.u32 %v1153, 7
        %v1155 = vsub.s32 %v1152, %v1154
        %v1156 = vrot.slane %v1142, %v1155
        %v1157 = vcombine.low %v460, %v614
        %v1158 = vcombine.high %v460, %v614
        %v1160 = vunpack.c.l.s4 1983009808
        %v1161 = vunpack.c.0.s8 %v1160
        %v1162 = vlaneseq
        %v1163 = vshrl.u32 %v1162, 7
        %v1164 = vsub.s32 %v1161, %v1163
        %v1165 = vrot.slane %v1157, %v1164
        %v1167 = vunpack.c.l.s4 1983009808
        %v1168 = vunpack.c.0.s8 %v1167
        %v1169 = vlaneseq
        %v1170 = vshrl.u32 %v1169, 7
        %v1171 = vsub.s32 %v1168, %v1170
        %v1172 = vrot.slane %v1158, %v1171
        %v1173 = vcombine.low %v691, %v845
        %v1174 = vcombine.high %v691, %v845
        %v1176 = vunpack.c.l.s4 1983009808
        %v1177 = vunpack.c.0.s8 %v1176
        %v1178 = vlaneseq
        %v1179 = vshrl.u32 %v1178, 7
        %v1180 = vsub.s32 %v1177, %v1179
        %v1181 = vrot.slane %v1173, %v1180
        %v1183 = vunpack.c.l.s4 1983009808
        %v1184 = vunpack.c.0.s8 %v1183
        %v1185 = vlaneseq
        %v1186 = vshrl.u32 %v1185, 7
        %v1187 = vsub.s32 %v1184, %v1186
        %v1188 = vrot.slane %v1174, %v1187
        %v1189 = vcombine.low %v768, %v922
        %v1190 = vcombine.high %v768, %v922
        %v1192 = vunpack.c.l.s4 1983009808
        %v1193 = vunpack.c.0.s8 %v1192
        %v1194 = vlaneseq
        %v1195 = vshrl.u32 %v1194, 7
        %v1196 = vsub.s32 %v1193, %v1195
        %v1197 = vrot.slane %v1189, %v1196
        %v1199 = vunpack.c.l.s4 1983009808
        %v1200 = vunpack.c.0.s8 %v1199
        %v1201 = vlaneseq
        %v1202 = vshrl.u32 %v1201, 7
        %v1203 = vsub.s32 %v1200, %v1202
        %v1204 = vrot.slane %v1190, %v1203
        %v1205 = vcombine.low %v1149, %v1165
        %v1206 = vcombine.high %v1149, %v1165
        %v1208 = vunpack.c.l.s4 1934713408
        %v1209 = vunpack.c.0.s8 %v1208
        %v1210 = vlaneseq
        %v1211 = vshrl.u32 %v1210, 7
        %v1212 = vsub.s32 %v1209, %v1211
        %v1213 = vrot.slane %v1205, %v1212
        %v1215 = vunpack.c.l.s4 1934713408
        %v1216 = vunpack.c.0.s8 %v1215
        %v1217 = vlaneseq
        %v1218 = vshrl.u32 %v1217, 7
        %v1219 = vsub.s32 %v1216, %v1218
        %v1220 = vrot.slane %v1206, %v1219
        %v1221 = vcombine.low %v1156, %v1172
        %v1222 = vcombine.high %v1156, %v1172
        %v1224 = vunpack.c.l.s4 1934713408
        %v1225 = vunpack.c.0.s8 %v1224
        %v1226 = vlaneseq
        %v1227 = vshrl.u32 %v1226, 7
        %v1228 = vsub.s32 %v1225, %v1227
        %v1229 = vrot.slane %v1221, %v1228
        %v1231 = vunpack.c.l.s4 1934713408
        %v1232 = vunpack.c.0.s8 %v1231
        %v1233 = vlaneseq
        %v1234 = vshrl.u32 %v1233, 7
        %v1235 = vsub.s32 %v1232, %v1234
        %v1236 = vrot.slane %v1222, %v1235
        %v1237 = vcombine.low %v1181, %v1197
        %v1238 = vcombine.high %v1181, %v1197
        %v1240 = vunpack.c.l.s4 1934713408
        %v1241 = vunpack.c.0.s8 %v1240
        %v1242 = vlaneseq
        %v1243 = vshrl.u32 %v1242, 7
        %v1244 = vsub.s32 %v1241, %v1243
        %v1245 = vrot.slane %v1237, %v1244
        %v1247 = vunpack.c.l.s4 1934713408
        %v1248 = vunpack.c.0.s8 %v1247
        %v1249 = vlaneseq
        %v1250 = vshrl.u32 %v1249, 7
        %v1251 = vsub.s32 %v1248, %v1250
        %v1252 = vrot.slane %v1238, %v1251
        %v1253 = vcombine.low %v1188, %v1204
        %v1254 = vcombine.high %v1188, %v1204
        %v1256 = vunpack.c.l.s4 1934713408
        %v1257 = vunpack.c.0.s8 %v1256
        %v1258 = vlaneseq
        %v1259 = vshrl.u32 %v1258, 7
        %v1260 = vsub.s32 %v1257, %v1259
        %v1261 = vrot.slane %v1253, %v1260
        %v1263 = vunpack.c.l.s4 1934713408
        %v1264 = vunpack.c.0.s8 %v1263
        %v1265 = vlaneseq
        %v1266 = vshrl.u32 %v1265, 7
        %v1267 = vsub.s32 %v1264, %v1266
        %v1268 = vrot.slane %v1254, %v1267
        %v1269 = vcombine.low %v1213, %v1245
        %v1270 = vcombine.high %v1213, %v1245
        %v1271 = vcombine.low %v1220, %v1252
        %v1272 = vcombine.high %v1220, %v1252
        %v1273 = vcombine.low %v1229, %v1261
        %v1274 = vcombine.high %v1229, %v1261
        %v1275 = vcombine.low %v1236, %v1268
        %v1276 = vcombine.high %v1236, %v1268
        %v1278 = vsel %vm383, %v1125, 0
        %v1281 = vsel %vm383, %v1269, 0
        %1283 = vmatprep.subr.mxu0 0.0
        %1284 = vmatpush1.xpose.msra.mxu0 %v1281
        %1285 = vmatprep.subr.mxu0 0.0
        %1286 = vmatpush1.xpose.msra.mxu0 0.0
        %1287 = vmatprep.subr.mxu0 0.0
        %1288 = vmatpush1.xpose.msra.mxu0 0.0
        %1289 = vmatprep.subr.mxu0 0.0
        %1290 = vmatpush1.xpose.msra.mxu0 0.0
        %1291 = vmatprep.subr.mxu0 0.0
        %1292 = vmatpush1.xpose.msra.mxu0 0.0
        %1293 = vmatprep.subr.mxu0 0.0
        %1294 = vmatpush1.xpose.msra.mxu0 0.0
        %1295 = vmatprep.subr.mxu0 0.0
        %1296 = vmatpush1.xpose.msra.mxu0 0.0
        %1297 = vmatprep.subr.mxu0 0.0
        %1298 = vmatpush1.xpose.msra.mxu0 0.0
        %1299 = vmatprep.subr.mxu0 0.0
        %1300 = vmatpush1.xpose.msra.mxu0 0.0
        %1301 = vmatprep.subr.mxu0 0.0
        %1302 = vmatpush1.xpose.msra.mxu0 0.0
        %1303 = vmatprep.subr.mxu0 0.0
        %1304 = vmatpush1.xpose.msra.mxu0 0.0
        %1305 = vmatprep.subr.mxu0 0.0
        %1306 = vmatpush1.xpose.msra.mxu0 0.0
        %1307 = vmatprep.subr.mxu0 0.0
        %1308 = vmatpush1.xpose.msra.mxu0 0.0
        %1309 = vmatprep.subr.mxu0 0.0
        %1310 = vmatpush1.xpose.msra.mxu0 0.0
        %1311 = vmatprep.subr.mxu0 0.0
        %1312 = vmatpush1.xpose.msra.mxu0 0.0
        %1313 = vmatprep.subr.mxu0 0.0
        %1314 = vmatpush1.xpose.msra.mxu0 0.0
        %1315 = vmatprep.subr.mxu0 0.0
        %1316 = vmatpush1.xpose.msra.mxu0 0.0
        %1317 = vmatprep.subr.mxu0 0.0
        %1318 = vmatpush1.xpose.msra.mxu0 0.0
        %1319 = vmatprep.subr.mxu0 0.0
        %1320 = vmatpush1.xpose.msra.mxu0 0.0
        %1321 = vmatprep.subr.mxu0 0.0
        %1322 = vmatpush1.xpose.msra.mxu0 0.0
        %1323 = vmatprep.subr.mxu0 0.0
        %1324 = vmatpush1.xpose.msra.mxu0 0.0
        %1325 = vmatprep.subr.mxu0 0.0
        %1326 = vmatpush1.xpose.msra.mxu0 0.0
        %1327 = vmatprep.subr.mxu0 0.0
        %1328 = vmatpush1.xpose.msra.mxu0 0.0
        %1329 = vmatprep.subr.mxu0 0.0
        %1330 = vmatpush1.xpose.msra.mxu0 0.0
        %1331 = vmatprep.subr.mxu0 0.0
        %1332 = vmatpush1.xpose.msra.mxu0 0.0
        %1333 = vmatprep.subr.mxu0 0.0
        %1334 = vmatpush1.xpose.msra.mxu0 0.0
        %1335 = vmatprep.subr.mxu0 0.0
        %1336 = vmatpush1.xpose.msra.mxu0 0.0
        %1337 = vmatprep.subr.mxu0 0.0
        %1338 = vmatpush1.xpose.msra.mxu0 0.0
        %1339 = vmatprep.subr.mxu0 0.0
        %1340 = vmatpush1.xpose.msra.mxu0 0.0
        %1341 = vmatprep.subr.mxu0 0.0
        %1342 = vmatpush1.xpose.msra.mxu0 0.0
        %1343 = vmatprep.subr.mxu0 0.0
        %1344 = vmatpush1.xpose.msra.mxu0 0.0
        %1345 = vmatprep.subr.mxu0 0.0
        %1346 = vmatpush1.xpose.msra.mxu0 0.0
        %1347 = vmatprep.mubr.f32.mxu0 0.0
        %1348 = vmatmul.mubr.f32.gmra.mrb[0].mxu0 %v1278
        %v1349 = vpop.f32.mrb[0].mxu0
        %v1350 = vadd.f32 0.0, %v1349
        %v1351 = vpop.f32.mrb[0].mxu0
        %1352 = vdwg.mxu0
        %v1354 = vsel %vm383, %v1126, 0
        %v1357 = vsel %vm383, %v1270, 0
        %1359 = vmatprep.subr.mxu0 0.0
        %1360 = vmatpush1.xpose.msra.mxu0 %v1357
        %1361 = vmatprep.subr.mxu0 0.0
        %1362 = vmatpush1.xpose.msra.mxu0 0.0
        %1363 = vmatprep.subr.mxu0 0.0
        %1364 = vmatpush1.xpose.msra.mxu0 0.0
        %1365 = vmatprep.subr.mxu0 0.0
        %1366 = vmatpush1.xpose.msra.mxu0 0.0
        %1367 = vmatprep.subr.mxu0 0.0
        %1368 = vmatpush1.xpose.msra.mxu0 0.0
        %1369 = vmatprep.subr.mxu0 0.0
        %1370 = vmatpush1.xpose.msra.mxu0 0.0
        %1371 = vmatprep.subr.mxu0 0.0
        %1372 = vmatpush1.xpose.msra.mxu0 0.0
        %1373 = vmatprep.subr.mxu0 0.0
        %1374 = vmatpush1.xpose.msra.mxu0 0.0
        %1375 = vmatprep.subr.mxu0 0.0
        %1376 = vmatpush1.xpose.msra.mxu0 0.0
        %1377 = vmatprep.subr.mxu0 0.0
        %1378 = vmatpush1.xpose.msra.mxu0 0.0
        %1379 = vmatprep.subr.mxu0 0.0
        %1380 = vmatpush1.xpose.msra.mxu0 0.0
        %1381 = vmatprep.subr.mxu0 0.0
        %1382 = vmatpush1.xpose.msra.mxu0 0.0
        %1383 = vmatprep.subr.mxu0 0.0
        %1384 = vmatpush1.xpose.msra.mxu0 0.0
        %1385 = vmatprep.subr.mxu0 0.0
        %1386 = vmatpush1.xpose.msra.mxu0 0.0
        %1387 = vmatprep.subr.mxu0 0.0
        %1388 = vmatpush1.xpose.msra.mxu0 0.0
        %1389 = vmatprep.subr.mxu0 0.0
        %1390 = vmatpush1.xpose.msra.mxu0 0.0
        %1391 = vmatprep.subr.mxu0 0.0
        %1392 = vmatpush1.xpose.msra.mxu0 0.0
        %1393 = vmatprep.subr.mxu0 0.0
        %1394 = vmatpush1.xpose.msra.mxu0 0.0
        %1395 = vmatprep.subr.mxu0 0.0
        %1396 = vmatpush1.xpose.msra.mxu0 0.0
        %1397 = vmatprep.subr.mxu0 0.0
        %1398 = vmatpush1.xpose.msra.mxu0 0.0
        %1399 = vmatprep.subr.mxu0 0.0
        %1400 = vmatpush1.xpose.msra.mxu0 0.0
        %1401 = vmatprep.subr.mxu0 0.0
        %1402 = vmatpush1.xpose.msra.mxu0 0.0
        %1403 = vmatprep.subr.mxu0 0.0
        %1404 = vmatpush1.xpose.msra.mxu0 0.0
        %1405 = vmatprep.subr.mxu0 0.0
        %1406 = vmatpush1.xpose.msra.mxu0 0.0
        %1407 = vmatprep.subr.mxu0 0.0
        %1408 = vmatpush1.xpose.msra.mxu0 0.0
        %1409 = vmatprep.subr.mxu0 0.0
        %1410 = vmatpush1.xpose.msra.mxu0 0.0
        %1411 = vmatprep.subr.mxu0 0.0
        %1412 = vmatpush1.xpose.msra.mxu0 0.0
        %1413 = vmatprep.subr.mxu0 0.0
        %1414 = vmatpush1.xpose.msra.mxu0 0.0
        %1415 = vmatprep.subr.mxu0 0.0
        %1416 = vmatpush1.xpose.msra.mxu0 0.0
        %1417 = vmatprep.subr.mxu0 0.0
        %1418 = vmatpush1.xpose.msra.mxu0 0.0
        %1419 = vmatprep.subr.mxu0 0.0
        %1420 = vmatpush1.xpose.msra.mxu0 0.0
        %1421 = vmatprep.subr.mxu0 0.0
        %1422 = vmatpush1.xpose.msra.mxu0 0.0
        %1423 = vmatprep.mubr.f32.mxu0 0.0
        %1424 = vmatmul.mubr.f32.gmra.mrb[0].mxu0 %v1354
        %v1425 = vpop.f32.mrb[0].mxu0
        %v1426 = vadd.f32 0.0, %v1425
        %v1427 = vpop.f32.mrb[0].mxu0
        %1428 = vdwg.mxu0
        %v1430 = vsel %vm383, %v1127, 0
        %v1433 = vsel %vm383, %v1271, 0
        %1435 = vmatprep.subr.mxu0 0.0
        %1436 = vmatpush1.xpose.msra.mxu0 %v1433
        %1437 = vmatprep.subr.mxu0 0.0
        %1438 = vmatpush1.xpose.msra.mxu0 0.0
        %1439 = vmatprep.subr.mxu0 0.0
        %1440 = vmatpush1.xpose.msra.mxu0 0.0
        %1441 = vmatprep.subr.mxu0 0.0
        %1442 = vmatpush1.xpose.msra.mxu0 0.0
        %1443 = vmatprep.subr.mxu0 0.0
        %1444 = vmatpush1.xpose.msra.mxu0 0.0
        %1445 = vmatprep.subr.mxu0 0.0
        %1446 = vmatpush1.xpose.msra.mxu0 0.0
        %1447 = vmatprep.subr.mxu0 0.0
        %1448 = vmatpush1.xpose.msra.mxu0 0.0
        %1449 = vmatprep.subr.mxu0 0.0
        %1450 = vmatpush1.xpose.msra.mxu0 0.0
        %1451 = vmatprep.subr.mxu0 0.0
        %1452 = vmatpush1.xpose.msra.mxu0 0.0
        %1453 = vmatprep.subr.mxu0 0.0
        %1454 = vmatpush1.xpose.msra.mxu0 0.0
        %1455 = vmatprep.subr.mxu0 0.0
        %1456 = vmatpush1.xpose.msra.mxu0 0.0
        %1457 = vmatprep.subr.mxu0 0.0
        %1458 = vmatpush1.xpose.msra.mxu0 0.0
        %1459 = vmatprep.subr.mxu0 0.0
        %1460 = vmatpush1.xpose.msra.mxu0 0.0
        %1461 = vmatprep.subr.mxu0 0.0
        %1462 = vmatpush1.xpose.msra.mxu0 0.0
        %1463 = vmatprep.subr.mxu0 0.0
        %1464 = vmatpush1.xpose.msra.mxu0 0.0
        %1465 = vmatprep.subr.mxu0 0.0
        %1466 = vmatpush1.xpose.msra.mxu0 0.0
        %1467 = vmatprep.subr.mxu0 0.0
        %1468 = vmatpush1.xpose.msra.mxu0 0.0
        %1469 = vmatprep.subr.mxu0 0.0
        %1470 = vmatpush1.xpose.msra.mxu0 0.0
        %1471 = vmatprep.subr.mxu0 0.0
        %1472 = vmatpush1.xpose.msra.mxu0 0.0
        %1473 = vmatprep.subr.mxu0 0.0
        %1474 = vmatpush1.xpose.msra.mxu0 0.0
        %1475 = vmatprep.subr.mxu0 0.0
        %1476 = vmatpush1.xpose.msra.mxu0 0.0
        %1477 = vmatprep.subr.mxu0 0.0
        %1478 = vmatpush1.xpose.msra.mxu0 0.0
        %1479 = vmatprep.subr.mxu0 0.0
        %1480 = vmatpush1.xpose.msra.mxu0 0.0
        %1481 = vmatprep.subr.mxu0 0.0
        %1482 = vmatpush1.xpose.msra.mxu0 0.0
        %1483 = vmatprep.subr.mxu0 0.0
        %1484 = vmatpush1.xpose.msra.mxu0 0.0
        %1485 = vmatprep.subr.mxu0 0.0
        %1486 = vmatpush1.xpose.msra.mxu0 0.0
        %1487 = vmatprep.subr.mxu0 0.0
        %1488 = vmatpush1.xpose.msra.mxu0 0.0
        %1489 = vmatprep.subr.mxu0 0.0
        %1490 = vmatpush1.xpose.msra.mxu0 0.0
        %1491 = vmatprep.subr.mxu0 0.0
        %1492 = vmatpush1.xpose.msra.mxu0 0.0
        %1493 = vmatprep.subr.mxu0 0.0
        %1494 = vmatpush1.xpose.msra.mxu0 0.0
        %1495 = vmatprep.subr.mxu0 0.0
        %1496 = vmatpush1.xpose.msra.mxu0 0.0
        %1497 = vmatprep.subr.mxu0 0.0
        %1498 = vmatpush1.xpose.msra.mxu0 0.0
        %1499 = vmatprep.mubr.f32.mxu0 0.0
        %1500 = vmatmul.mubr.f32.gmra.mrb[0].mxu0 %v1430
        %v1501 = vpop.f32.mrb[0].mxu0
        %v1502 = vadd.f32 0.0, %v1501
        %v1503 = vpop.f32.mrb[0].mxu0
        %1504 = vdwg.mxu0
        %v1506 = vsel %vm383, %v1128, 0
        %v1509 = vsel %vm383, %v1272, 0
        %1511 = vmatprep.subr.mxu0 0.0
        %1512 = vmatpush1.xpose.msra.mxu0 %v1509
        %1513 = vmatprep.subr.mxu0 0.0
        %1514 = vmatpush1.xpose.msra.mxu0 0.0
        %1515 = vmatprep.subr.mxu0 0.0
        %1516 = vmatpush1.xpose.msra.mxu0 0.0
        %1517 = vmatprep.subr.mxu0 0.0
        %1518 = vmatpush1.xpose.msra.mxu0 0.0
        %1519 = vmatprep.subr.mxu0 0.0
        %1520 = vmatpush1.xpose.msra.mxu0 0.0
        %1521 = vmatprep.subr.mxu0 0.0
        %1522 = vmatpush1.xpose.msra.mxu0 0.0
        %1523 = vmatprep.subr.mxu0 0.0
        %1524 = vmatpush1.xpose.msra.mxu0 0.0
        %1525 = vmatprep.subr.mxu0 0.0
        %1526 = vmatpush1.xpose.msra.mxu0 0.0
        %1527 = vmatprep.subr.mxu0 0.0
        %1528 = vmatpush1.xpose.msra.mxu0 0.0
        %1529 = vmatprep.subr.mxu0 0.0
        %1530 = vmatpush1.xpose.msra.mxu0 0.0
        %1531 = vmatprep.subr.mxu0 0.0
        %1532 = vmatpush1.xpose.msra.mxu0 0.0
        %1533 = vmatprep.subr.mxu0 0.0
        %1534 = vmatpush1.xpose.msra.mxu0 0.0
        %1535 = vmatprep.subr.mxu0 0.0
        %1536 = vmatpush1.xpose.msra.mxu0 0.0
        %1537 = vmatprep.subr.mxu0 0.0
        %1538 = vmatpush1.xpose.msra.mxu0 0.0
        %1539 = vmatprep.subr.mxu0 0.0
        %1540 = vmatpush1.xpose.msra.mxu0 0.0
        %1541 = vmatprep.subr.mxu0 0.0
        %1542 = vmatpush1.xpose.msra.mxu0 0.0
        %1543 = vmatprep.subr.mxu0 0.0
        %1544 = vmatpush1.xpose.msra.mxu0 0.0
        %1545 = vmatprep.subr.mxu0 0.0
        %1546 = vmatpush1.xpose.msra.mxu0 0.0
        %1547 = vmatprep.subr.mxu0 0.0
        %1548 = vmatpush1.xpose.msra.mxu0 0.0
        %1549 = vmatprep.subr.mxu0 0.0
        %1550 = vmatpush1.xpose.msra.mxu0 0.0
        %1551 = vmatprep.subr.mxu0 0.0
        %1552 = vmatpush1.xpose.msra.mxu0 0.0
        %1553 = vmatprep.subr.mxu0 0.0
        %1554 = vmatpush1.xpose.msra.mxu0 0.0
        %1555 = vmatprep.subr.mxu0 0.0
        %1556 = vmatpush1.xpose.msra.mxu0 0.0
        %1557 = vmatprep.subr.mxu0 0.0
        %1558 = vmatpush1.xpose.msra.mxu0 0.0
        %1559 = vmatprep.subr.mxu0 0.0
        %1560 = vmatpush1.xpose.msra.mxu0 0.0
        %1561 = vmatprep.subr.mxu0 0.0
        %1562 = vmatpush1.xpose.msra.mxu0 0.0
        %1563 = vmatprep.subr.mxu0 0.0
        %1564 = vmatpush1.xpose.msra.mxu0 0.0
        %1565 = vmatprep.subr.mxu0 0.0
        %1566 = vmatpush1.xpose.msra.mxu0 0.0
        %1567 = vmatprep.subr.mxu0 0.0
        %1568 = vmatpush1.xpose.msra.mxu0 0.0
        %1569 = vmatprep.subr.mxu0 0.0
        %1570 = vmatpush1.xpose.msra.mxu0 0.0
        %1571 = vmatprep.subr.mxu0 0.0
        %1572 = vmatpush1.xpose.msra.mxu0 0.0
        %1573 = vmatprep.subr.mxu0 0.0
        %1574 = vmatpush1.xpose.msra.mxu0 0.0
        %1575 = vmatprep.mubr.f32.mxu0 0.0
        %1576 = vmatmul.mubr.f32.gmra.mrb[0].mxu0 %v1506
        %v1577 = vpop.f32.mrb[0].mxu0
        %v1578 = vadd.f32 0.0, %v1577
        %v1579 = vpop.f32.mrb[0].mxu0
        %1580 = vdwg.mxu0
        %v1582 = vsel %vm383, %v1129, 0
        %v1585 = vsel %vm383, %v1273, 0
        %1587 = vmatprep.subr.mxu0 0.0
        %1588 = vmatpush1.xpose.msra.mxu0 %v1585
        %1589 = vmatprep.subr.mxu0 0.0
        %1590 = vmatpush1.xpose.msra.mxu0 0.0
        %1591 = vmatprep.subr.mxu0 0.0
        %1592 = vmatpush1.xpose.msra.mxu0 0.0
        %1593 = vmatprep.subr.mxu0 0.0
        %1594 = vmatpush1.xpose.msra.mxu0 0.0
        %1595 = vmatprep.subr.mxu0 0.0
        %1596 = vmatpush1.xpose.msra.mxu0 0.0
        %1597 = vmatprep.subr.mxu0 0.0
        %1598 = vmatpush1.xpose.msra.mxu0 0.0
        %1599 = vmatprep.subr.mxu0 0.0
        %1600 = vmatpush1.xpose.msra.mxu0 0.0
        %1601 = vmatprep.subr.mxu0 0.0
        %1602 = vmatpush1.xpose.msra.mxu0 0.0
        %1603 = vmatprep.subr.mxu0 0.0
        %1604 = vmatpush1.xpose.msra.mxu0 0.0
        %1605 = vmatprep.subr.mxu0 0.0
        %1606 = vmatpush1.xpose.msra.mxu0 0.0
        %1607 = vmatprep.subr.mxu0 0.0
        %1608 = vmatpush1.xpose.msra.mxu0 0.0
        %1609 = vmatprep.subr.mxu0 0.0
        %1610 = vmatpush1.xpose.msra.mxu0 0.0
        %1611 = vmatprep.subr.mxu0 0.0
        %1612 = vmatpush1.xpose.msra.mxu0 0.0
        %1613 = vmatprep.subr.mxu0 0.0
        %1614 = vmatpush1.xpose.msra.mxu0 0.0
        %1615 = vmatprep.subr.mxu0 0.0
        %1616 = vmatpush1.xpose.msra.mxu0 0.0
        %1617 = vmatprep.subr.mxu0 0.0
        %1618 = vmatpush1.xpose.msra.mxu0 0.0
        %1619 = vmatprep.subr.mxu0 0.0
        %1620 = vmatpush1.xpose.msra.mxu0 0.0
        %1621 = vmatprep.subr.mxu0 0.0
        %1622 = vmatpush1.xpose.msra.mxu0 0.0
        %1623 = vmatprep.subr.mxu0 0.0
        %1624 = vmatpush1.xpose.msra.mxu0 0.0
        %1625 = vmatprep.subr.mxu0 0.0
        %1626 = vmatpush1.xpose.msra.mxu0 0.0
        %1627 = vmatprep.subr.mxu0 0.0
        %1628 = vmatpush1.xpose.msra.mxu0 0.0
        %1629 = vmatprep.subr.mxu0 0.0
        %1630 = vmatpush1.xpose.msra.mxu0 0.0
        %1631 = vmatprep.subr.mxu0 0.0
        %1632 = vmatpush1.xpose.msra.mxu0 0.0
        %1633 = vmatprep.subr.mxu0 0.0
        %1634 = vmatpush1.xpose.msra.mxu0 0.0
        %1635 = vmatprep.subr.mxu0 0.0
        %1636 = vmatpush1.xpose.msra.mxu0 0.0
        %1637 = vmatprep.subr.mxu0 0.0
        %1638 = vmatpush1.xpose.msra.mxu0 0.0
        %1639 = vmatprep.subr.mxu0 0.0
        %1640 = vmatpush1.xpose.msra.mxu0 0.0
        %1641 = vmatprep.subr.mxu0 0.0
        %1642 = vmatpush1.xpose.msra.mxu0 0.0
        %1643 = vmatprep.subr.mxu0 0.0
        %1644 = vmatpush1.xpose.msra.mxu0 0.0
        %1645 = vmatprep.subr.mxu0 0.0
        %1646 = vmatpush1.xpose.msra.mxu0 0.0
        %1647 = vmatprep.subr.mxu0 0.0
        %1648 = vmatpush1.xpose.msra.mxu0 0.0
        %1649 = vmatprep.subr.mxu0 0.0
        %1650 = vmatpush1.xpose.msra.mxu0 0.0
        %1651 = vmatprep.mubr.f32.mxu0 0.0
        %1652 = vmatmul.mubr.f32.gmra.mrb[0].mxu0 %v1582
        %v1653 = vpop.f32.mrb[0].mxu0
        %v1654 = vadd.f32 0.0, %v1653
        %v1655 = vpop.f32.mrb[0].mxu0
        %1656 = vdwg.mxu0
        %v1658 = vsel %vm383, %v1130, 0
        %v1661 = vsel %vm383, %v1274, 0
        %1663 = vmatprep.subr.mxu0 0.0
        %1664 = vmatpush1.xpose.msra.mxu0 %v1661
        %1665 = vmatprep.subr.mxu0 0.0
        %1666 = vmatpush1.xpose.msra.mxu0 0.0
        %1667 = vmatprep.subr.mxu0 0.0
        %1668 = vmatpush1.xpose.msra.mxu0 0.0
        %1669 = vmatprep.subr.mxu0 0.0
        %1670 = vmatpush1.xpose.msra.mxu0 0.0
        %1671 = vmatprep.subr.mxu0 0.0
        %1672 = vmatpush1.xpose.msra.mxu0 0.0
        %1673 = vmatprep.subr.mxu0 0.0
        %1674 = vmatpush1.xpose.msra.mxu0 0.0
        %1675 = vmatprep.subr.mxu0 0.0
        %1676 = vmatpush1.xpose.msra.mxu0 0.0
        %1677 = vmatprep.subr.mxu0 0.0
        %1678 = vmatpush1.xpose.msra.mxu0 0.0
        %1679 = vmatprep.subr.mxu0 0.0
        %1680 = vmatpush1.xpose.msra.mxu0 0.0
        %1681 = vmatprep.subr.mxu0 0.0
        %1682 = vmatpush1.xpose.msra.mxu0 0.0
        %1683 = vmatprep.subr.mxu0 0.0
        %1684 = vmatpush1.xpose.msra.mxu0 0.0
        %1685 = vmatprep.subr.mxu0 0.0
        %1686 = vmatpush1.xpose.msra.mxu0 0.0
        %1687 = vmatprep.subr.mxu0 0.0
        %1688 = vmatpush1.xpose.msra.mxu0 0.0
        %1689 = vmatprep.subr.mxu0 0.0
        %1690 = vmatpush1.xpose.msra.mxu0 0.0
        %1691 = vmatprep.subr.mxu0 0.0
        %1692 = vmatpush1.xpose.msra.mxu0 0.0
        %1693 = vmatprep.subr.mxu0 0.0
        %1694 = vmatpush1.xpose.msra.mxu0 0.0
        %1695 = vmatprep.subr.mxu0 0.0
        %1696 = vmatpush1.xpose.msra.mxu0 0.0
        %1697 = vmatprep.subr.mxu0 0.0
        %1698 = vmatpush1.xpose.msra.mxu0 0.0
        %1699 = vmatprep.subr.mxu0 0.0
        %1700 = vmatpush1.xpose.msra.mxu0 0.0
        %1701 = vmatprep.subr.mxu0 0.0
        %1702 = vmatpush1.xpose.msra.mxu0 0.0
        %1703 = vmatprep.subr.mxu0 0.0
        %1704 = vmatpush1.xpose.msra.mxu0 0.0
        %1705 = vmatprep.subr.mxu0 0.0
        %1706 = vmatpush1.xpose.msra.mxu0 0.0
        %1707 = vmatprep.subr.mxu0 0.0
        %1708 = vmatpush1.xpose.msra.mxu0 0.0
        %1709 = vmatprep.subr.mxu0 0.0
        %1710 = vmatpush1.xpose.msra.mxu0 0.0
        %1711 = vmatprep.subr.mxu0 0.0
        %1712 = vmatpush1.xpose.msra.mxu0 0.0
        %1713 = vmatprep.subr.mxu0 0.0
        %1714 = vmatpush1.xpose.msra.mxu0 0.0
        %1715 = vmatprep.subr.mxu0 0.0
        %1716 = vmatpush1.xpose.msra.mxu0 0.0
        %1717 = vmatprep.subr.mxu0 0.0
        %1718 = vmatpush1.xpose.msra.mxu0 0.0
        %1719 = vmatprep.subr.mxu0 0.0
        %1720 = vmatpush1.xpose.msra.mxu0 0.0
        %1721 = vmatprep.subr.mxu0 0.0
        %1722 = vmatpush1.xpose.msra.mxu0 0.0
        %1723 = vmatprep.subr.mxu0 0.0
        %1724 = vmatpush1.xpose.msra.mxu0 0.0
        %1725 = vmatprep.subr.mxu0 0.0
        %1726 = vmatpush1.xpose.msra.mxu0 0.0
        %1727 = vmatprep.mubr.f32.mxu0 0.0
        %1728 = vmatmul.mubr.f32.gmra.mrb[0].mxu0 %v1658
        %v1729 = vpop.f32.mrb[0].mxu0
        %v1730 = vadd.f32 0.0, %v1729
        %v1731 = vpop.f32.mrb[0].mxu0
        %1732 = vdwg.mxu0
        %v1734 = vsel %vm383, %v1131, 0
        %v1737 = vsel %vm383, %v1275, 0
        %1739 = vmatprep.subr.mxu0 0.0
        %1740 = vmatpush1.xpose.msra.mxu0 %v1737
        %1741 = vmatprep.subr.mxu0 0.0
        %1742 = vmatpush1.xpose.msra.mxu0 0.0
        %1743 = vmatprep.subr.mxu0 0.0
        %1744 = vmatpush1.xpose.msra.mxu0 0.0
        %1745 = vmatprep.subr.mxu0 0.0
        %1746 = vmatpush1.xpose.msra.mxu0 0.0
        %1747 = vmatprep.subr.mxu0 0.0
        %1748 = vmatpush1.xpose.msra.mxu0 0.0
        %1749 = vmatprep.subr.mxu0 0.0
        %1750 = vmatpush1.xpose.msra.mxu0 0.0
        %1751 = vmatprep.subr.mxu0 0.0
        %1752 = vmatpush1.xpose.msra.mxu0 0.0
        %1753 = vmatprep.subr.mxu0 0.0
        %1754 = vmatpush1.xpose.msra.mxu0 0.0
        %1755 = vmatprep.subr.mxu0 0.0
        %1756 = vmatpush1.xpose.msra.mxu0 0.0
        %1757 = vmatprep.subr.mxu0 0.0
        %1758 = vmatpush1.xpose.msra.mxu0 0.0
        %1759 = vmatprep.subr.mxu0 0.0
        %1760 = vmatpush1.xpose.msra.mxu0 0.0
        %1761 = vmatprep.subr.mxu0 0.0
        %1762 = vmatpush1.xpose.msra.mxu0 0.0
        %1763 = vmatprep.subr.mxu0 0.0
        %1764 = vmatpush1.xpose.msra.mxu0 0.0
        %1765 = vmatprep.subr.mxu0 0.0
        %1766 = vmatpush1.xpose.msra.mxu0 0.0
        %1767 = vmatprep.subr.mxu0 0.0
        %1768 = vmatpush1.xpose.msra.mxu0 0.0
        %1769 = vmatprep.subr.mxu0 0.0
        %1770 = vmatpush1.xpose.msra.mxu0 0.0
        %1771 = vmatprep.subr.mxu0 0.0
        %1772 = vmatpush1.xpose.msra.mxu0 0.0
        %1773 = vmatprep.subr.mxu0 0.0
        %1774 = vmatpush1.xpose.msra.mxu0 0.0
        %1775 = vmatprep.subr.mxu0 0.0
        %1776 = vmatpush1.xpose.msra.mxu0 0.0
        %1777 = vmatprep.subr.mxu0 0.0
        %1778 = vmatpush1.xpose.msra.mxu0 0.0
        %1779 = vmatprep.subr.mxu0 0.0
        %1780 = vmatpush1.xpose.msra.mxu0 0.0
        %1781 = vmatprep.subr.mxu0 0.0
        %1782 = vmatpush1.xpose.msra.mxu0 0.0
        %1783 = vmatprep.subr.mxu0 0.0
        %1784 = vmatpush1.xpose.msra.mxu0 0.0
        %1785 = vmatprep.subr.mxu0 0.0
        %1786 = vmatpush1.xpose.msra.mxu0 0.0
        %1787 = vmatprep.subr.mxu0 0.0
        %1788 = vmatpush1.xpose.msra.mxu0 0.0
        %1789 = vmatprep.subr.mxu0 0.0
        %1790 = vmatpush1.xpose.msra.mxu0 0.0
        %1791 = vmatprep.subr.mxu0 0.0
        %1792 = vmatpush1.xpose.msra.mxu0 0.0
        %1793 = vmatprep.subr.mxu0 0.0
        %1794 = vmatpush1.xpose.msra.mxu0 0.0
        %1795 = vmatprep.subr.mxu0 0.0
        %1796 = vmatpush1.xpose.msra.mxu0 0.0
        %1797 = vmatprep.subr.mxu0 0.0
        %1798 = vmatpush1.xpose.msra.mxu0 0.0
        %1799 = vmatprep.subr.mxu0 0.0
        %1800 = vmatpush1.xpose.msra.mxu0 0.0
        %1801 = vmatprep.subr.mxu0 0.0
        %1802 = vmatpush1.xpose.msra.mxu0 0.0
        %1803 = vmatprep.mubr.f32.mxu0 0.0
        %1804 = vmatmul.mubr.f32.gmra.mrb[0].mxu0 %v1734
        %v1805 = vpop.f32.mrb[0].mxu0
        %v1806 = vadd.f32 0.0, %v1805
        %v1807 = vpop.f32.mrb[0].mxu0
        %1808 = vdwg.mxu0
        %v1810 = vsel %vm383, %v1132, 0
        %v1813 = vsel %vm383, %v1276, 0
        %1815 = vmatprep.subr.mxu0 0.0
        %1816 = vmatpush1.xpose.msra.mxu0 %v1813
        %1817 = vmatprep.subr.mxu0 0.0
        %1818 = vmatpush1.xpose.msra.mxu0 0.0
        %1819 = vmatprep.subr.mxu0 0.0
        %1820 = vmatpush1.xpose.msra.mxu0 0.0
        %1821 = vmatprep.subr.mxu0 0.0
        %1822 = vmatpush1.xpose.msra.mxu0 0.0
        %1823 = vmatprep.subr.mxu0 0.0
        %1824 = vmatpush1.xpose.msra.mxu0 0.0
        %1825 = vmatprep.subr.mxu0 0.0
        %1826 = vmatpush1.xpose.msra.mxu0 0.0
        %1827 = vmatprep.subr.mxu0 0.0
        %1828 = vmatpush1.xpose.msra.mxu0 0.0
        %1829 = vmatprep.subr.mxu0 0.0
        %1830 = vmatpush1.xpose.msra.mxu0 0.0
        %1831 = vmatprep.subr.mxu0 0.0
        %1832 = vmatpush1.xpose.msra.mxu0 0.0
        %1833 = vmatprep.subr.mxu0 0.0
        %1834 = vmatpush1.xpose.msra.mxu0 0.0
        %1835 = vmatprep.subr.mxu0 0.0
        %1836 = vmatpush1.xpose.msra.mxu0 0.0
        %1837 = vmatprep.subr.mxu0 0.0
        %1838 = vmatpush1.xpose.msra.mxu0 0.0
        %1839 = vmatprep.subr.mxu0 0.0
        %1840 = vmatpush1.xpose.msra.mxu0 0.0
        %1841 = vmatprep.subr.mxu0 0.0
        %1842 = vmatpush1.xpose.msra.mxu0 0.0
        %1843 = vmatprep.subr.mxu0 0.0
        %1844 = vmatpush1.xpose.msra.mxu0 0.0
        %1845 = vmatprep.subr.mxu0 0.0
        %1846 = vmatpush1.xpose.msra.mxu0 0.0
        %1847 = vmatprep.subr.mxu0 0.0
        %1848 = vmatpush1.xpose.msra.mxu0 0.0
        %1849 = vmatprep.subr.mxu0 0.0
        %1850 = vmatpush1.xpose.msra.mxu0 0.0
        %1851 = vmatprep.subr.mxu0 0.0
        %1852 = vmatpush1.xpose.msra.mxu0 0.0
        %1853 = vmatprep.subr.mxu0 0.0
        %1854 = vmatpush1.xpose.msra.mxu0 0.0
        %1855 = vmatprep.subr.mxu0 0.0
        %1856 = vmatpush1.xpose.msra.mxu0 0.0
        %1857 = vmatprep.subr.mxu0 0.0
        %1858 = vmatpush1.xpose.msra.mxu0 0.0
        %1859 = vmatprep.subr.mxu0 0.0
        %1860 = vmatpush1.xpose.msra.mxu0 0.0
        %1861 = vmatprep.subr.mxu0 0.0
        %1862 = vmatpush1.xpose.msra.mxu0 0.0
        %1863 = vmatprep.subr.mxu0 0.0
        %1864 = vmatpush1.xpose.msra.mxu0 0.0
        %1865 = vmatprep.subr.mxu0 0.0
        %1866 = vmatpush1.xpose.msra.mxu0 0.0
        %1867 = vmatprep.subr.mxu0 0.0
        %1868 = vmatpush1.xpose.msra.mxu0 0.0
        %1869 = vmatprep.subr.mxu0 0.0
        %1870 = vmatpush1.xpose.msra.mxu0 0.0
        %1871 = vmatprep.subr.mxu0 0.0
        %1872 = vmatpush1.xpose.msra.mxu0 0.0
        %1873 = vmatprep.subr.mxu0 0.0
        %1874 = vmatpush1.xpose.msra.mxu0 0.0
        %1875 = vmatprep.subr.mxu0 0.0
        %1876 = vmatpush1.xpose.msra.mxu0 0.0
        %1877 = vmatprep.subr.mxu0 0.0
        %1878 = vmatpush1.xpose.msra.mxu0 0.0
        %1879 = vmatprep.mubr.f32.mxu0 0.0
        %1880 = vmatmul.mubr.f32.gmra.mrb[0].mxu0 %v1810
        %v1881 = vpop.f32.mrb[0].mxu0
        %v1882 = vadd.f32 0.0, %v1881
        %v1883 = vpop.f32.mrb[0].mxu0
        %1884 = vdwg.mxu0
        %v1885 = vlaneseq
        %v1886 = vshrl.u32 %v1885, 7
        %v1887 = vlaneseq
        %v1888 = vand.u32 %v1887, 127
        %vm1889 = vcmp.eq.s32.totalorder %v1886, %v1888
        %v1890 = vsel %vm1889, -1e+30, %v1350
        %v1891 = vsel %vm1889, -1e+30, %v1426
        %v1892 = vsel %vm1889, -1e+30, %v1502
        %v1893 = vsel %vm1889, -1e+30, %v1578
        %v1894 = vsel %vm1889, -1e+30, %v1654
        %v1895 = vsel %vm1889, -1e+30, %v1730
        %v1896 = vsel %vm1889, -1e+30, %v1806
        %v1897 = vsel %vm1889, -1e+30, %v1882
        %vm1898 = vcmask 64512
        %v1899 = vsel %vm1898, %v455, -inf
        %1900 = vmax.xlane.f32.xlu0 %v1899
        %v1901 = vpop.xlane.xlu0 %1900
        %v1902 = vsel %vm1898, %v532, -inf
        %1903 = vmax.xlane.f32.xlu0 %v1902
        %v1904 = vpop.xlane.xlu0 %1903
        %v1905 = vsel %vm1898, %v609, -inf
        %1906 = vmax.xlane.f32.xlu0 %v1905
        %v1907 = vpop.xlane.xlu0 %1906
        %v1908 = vsel %vm1898, %v686, -inf
        %1909 = vmax.xlane.f32.xlu0 %v1908
        %v1910 = vpop.xlane.xlu0 %1909
        %v1911 = vsel %vm1898, %v763, -inf
        %1912 = vmax.xlane.f32.xlu0 %v1911
        %v1913 = vpop.xlane.xlu0 %1912
        %v1914 = vsel %vm1898, %v840, -inf
        %1915 = vmax.xlane.f32.xlu0 %v1914
        %v1916 = vpop.xlane.xlu0 %1915
        %v1917 = vsel %vm1898, %v917, -inf
        %1918 = vmax.xlane.f32.xlu0 %v1917
        %v1919 = vpop.xlane.xlu0 %1918
        %v1920 = vsel %vm1898, %v994, -inf
        %1921 = vmax.xlane.f32.xlu0 %v1920
        %v1922 = vpop.xlane.xlu0 %1921
        %v1923 = vsel %vm1898, %v1890, -inf
        %1924 = vmax.xlane.f32.xlu0 %v1923
        %v1925 = vpop.xlane.xlu0 %1924
        %v1926 = vsel %vm1898, %v1891, -inf
        %1927 = vmax.xlane.f32.xlu0 %v1926
        %v1928 = vpop.xlane.xlu0 %1927
        %v1929 = vsel %vm1898, %v1892, -inf
        %1930 = vmax.xlane.f32.xlu0 %v1929
        %v1931 = vpop.xlane.xlu0 %1930
        %v1932 = vsel %vm1898, %v1893, -inf
        %1933 = vmax.xlane.f32.xlu0 %v1932
        %v1934 = vpop.xlane.xlu0 %1933
        %v1935 = vsel %vm1898, %v1894, -inf
        %1936 = vmax.xlane.f32.xlu0 %v1935
        %v1937 = vpop.xlane.xlu0 %1936
        %v1938 = vsel %vm1898, %v1895, -inf
        %1939 = vmax.xlane.f32.xlu0 %v1938
        %v1940 = vpop.xlane.xlu0 %1939
        %v1941 = vsel %vm1898, %v1896, -inf
        %1942 = vmax.xlane.f32.xlu0 %v1941
        %v1943 = vpop.xlane.xlu0 %1942
        %v1944 = vsel %vm1898, %v1897, -inf
        %1945 = vmax.xlane.f32.xlu0 %v1944
        %v1946 = vpop.xlane.xlu0 %1945
        %v1955 = vlaneseq
        %v1956 = vshrl.u32 %v1955, 7
        %v1957 = vsub.s32 %v1888, %v1956
        %v1958 = vrot.slane %v1925, %v1957
        %v1959 = vlaneseq
        %v1960 = vshrl.u32 %v1959, 7
        %v1961 = vsub.s32 %v1888, %v1960
        %v1962 = vrot.slane %v1928, %v1961
        %v1963 = vlaneseq
        %v1964 = vshrl.u32 %v1963, 7
        %v1965 = vsub.s32 %v1888, %v1964
        %v1966 = vrot.slane %v1931, %v1965
        %v1967 = vlaneseq
        %v1968 = vshrl.u32 %v1967, 7
        %v1969 = vsub.s32 %v1888, %v1968
        %v1970 = vrot.slane %v1934, %v1969
        %v1971 = vlaneseq
        %v1972 = vshrl.u32 %v1971, 7
        %v1973 = vsub.s32 %v1888, %v1972
        %v1974 = vrot.slane %v1937, %v1973
        %v1975 = vlaneseq
        %v1976 = vshrl.u32 %v1975, 7
        %v1977 = vsub.s32 %v1888, %v1976
        %v1978 = vrot.slane %v1940, %v1977
        %v1979 = vlaneseq
        %v1980 = vshrl.u32 %v1979, 7
        %v1981 = vsub.s32 %v1888, %v1980
        %v1982 = vrot.slane %v1943, %v1981
        %v1983 = vlaneseq
        %v1984 = vshrl.u32 %v1983, 7
        %v1985 = vsub.s32 %v1888, %v1984
        %v1986 = vrot.slane %v1946, %v1985
        %vm1987 = vcmask 1041409
        %v1988 = vsel %vm1987, %v1962, %v1958
        %vm1989 = vcmask 1042434
        %v1990 = vsel %vm1989, %v1966, %v1988
        %vm1991 = vcmask 1043459
        %v1992 = vsel %vm1991, %v1970, %v1990
        %vm1993 = vcmask 1044484
        %v1994 = vsel %vm1993, %v1974, %v1992
        %vm1995 = vcmask 1045509
        %v1996 = vsel %vm1995, %v1978, %v1994
        %vm1997 = vcmask 1046534
        %v1998 = vsel %vm1997, %v1982, %v1996
        %vm1999 = vcmask 1047559
        %v2000 = vsel %vm1999, %v1986, %v1998
        %2002 = vxpose.xlu0.b32.start [1/16] %v2000, 128
        %2003 = vxpose.xlu0.b32.cont [2/16] 0.0, 128
        %2004 = vxpose.xlu0.b32.cont [3/16] 0.0, 128
        %2005 = vxpose.xlu0.b32.cont [4/16] 0.0, 128
        %2006 = vxpose.xlu0.b32.cont [5/16] 0.0, 128
        %2007 = vxpose.xlu0.b32.cont [6/16] 0.0, 128
        %2008 = vxpose.xlu0.b32.cont [7/16] 0.0, 128
        %2009 = vxpose.xlu0.b32.cont [8/16] 0.0, 128
        %2010 = vxpose.xlu0.b32.cont [9/16] 0.0, 128
        %2011 = vxpose.xlu0.b32.cont [10/16] 0.0, 128
        %2012 = vxpose.xlu0.b32.cont [11/16] 0.0, 128
        %2013 = vxpose.xlu0.b32.cont [12/16] 0.0, 128
        %2014 = vxpose.xlu0.b32.cont [13/16] 0.0, 128
        %2015 = vxpose.xlu0.b32.cont [14/16] 0.0, 128
        %2016 = vxpose.xlu0.b32.cont [15/16] 0.0, 128
        %2017 = vxpose.xlu0.b32.end [16/16] 0.0, 128
        %v2018 = vpop.trf.xlu0
        %v2019 = vpop.trf.xlu0
        %v2020 = vpop.trf.xlu0
        %v2021 = vpop.trf.xlu0
        %v2022 = vpop.trf.xlu0
        %v2023 = vpop.trf.xlu0
        %v2024 = vpop.trf.xlu0
        %v2025 = vpop.trf.xlu0
        %v2026 = vpop.trf.xlu0
        %v2027 = vpop.trf.xlu0
        %v2028 = vpop.trf.xlu0
        %v2029 = vpop.trf.xlu0
        %v2030 = vpop.trf.xlu0
        %v2031 = vpop.trf.xlu0
        %v2032 = vpop.trf.xlu0
        %v2033 = vpop.trf.xlu0
        %v2035 = vlaneseq
        %v2036 = vshrl.u32 %v2035, 7
        %v2037 = vsub.s32 0, %v2036
        %v2038 = vrot.slane %v2018, %v2037
        %2040 = vbcast.lane.b32.xlu0 %v2038, 256
        %v2041 = vpop.permute.xlu0 %2040
        %v2042 = vlaneseq
        %v2043 = vshrl.u32 %v2042, 7
        %v2044 = vsub.s32 1, %v2043
        %v2045 = vrot.slane %v2018, %v2044
        %2047 = vbcast.lane.b32.xlu0 %v2045, 256
        %v2048 = vpop.permute.xlu0 %2047
        %v2049 = vlaneseq
        %v2050 = vshrl.u32 %v2049, 7
        %v2051 = vsub.s32 2, %v2050
        %v2052 = vrot.slane %v2018, %v2051
        %2054 = vbcast.lane.b32.xlu0 %v2052, 256
        %v2055 = vpop.permute.xlu0 %2054
        %v2056 = vlaneseq
        %v2057 = vshrl.u32 %v2056, 7
        %v2058 = vsub.s32 3, %v2057
        %v2059 = vrot.slane %v2018, %v2058
        %2061 = vbcast.lane.b32.xlu0 %v2059, 256
        %v2062 = vpop.permute.xlu0 %2061
        %v2063 = vlaneseq
        %v2064 = vshrl.u32 %v2063, 7
        %v2065 = vsub.s32 4, %v2064
        %v2066 = vrot.slane %v2018, %v2065
        %2068 = vbcast.lane.b32.xlu0 %v2066, 256
        %v2069 = vpop.permute.xlu0 %2068
        %v2070 = vlaneseq
        %v2071 = vshrl.u32 %v2070, 7
        %v2072 = vsub.s32 5, %v2071
        %v2073 = vrot.slane %v2018, %v2072
        %2075 = vbcast.lane.b32.xlu0 %v2073, 256
        %v2076 = vpop.permute.xlu0 %2075
        %v2077 = vlaneseq
        %v2078 = vshrl.u32 %v2077, 7
        %v2079 = vsub.s32 6, %v2078
        %v2080 = vrot.slane %v2018, %v2079
        %2082 = vbcast.lane.b32.xlu0 %v2080, 256
        %v2083 = vpop.permute.xlu0 %2082
        %v2084 = vlaneseq
        %v2085 = vshrl.u32 %v2084, 7
        %v2086 = vsub.s32 7, %v2085
        %v2087 = vrot.slane %v2018, %v2086
        %2089 = vbcast.lane.b32.xlu0 %v2087, 256
        %v2090 = vpop.permute.xlu0 %2089
        %v2099 = vmax.f32 %v1901, %v2041
        %v2100 = vmax.f32 %v1904, %v2048
        %v2101 = vmax.f32 %v1907, %v2055
        %v2102 = vmax.f32 %v1910, %v2062
        %v2103 = vmax.f32 %v1913, %v2069
        %v2104 = vmax.f32 %v1916, %v2076
        %v2105 = vmax.f32 %v1919, %v2083
        %v2106 = vmax.f32 %v1922, %v2090
        %2115 = vset.pattern.permute.xlu0 0
        %2116 = vperm.xlu0 %2115, %v2099
        %v2117 = vpop.permute.xlu0 %2116
        %2118 = vset.pattern.permute.xlu0 0
        %2119 = vperm.xlu0 %2118, %v2100
        %v2120 = vpop.permute.xlu0 %2119
        %2121 = vset.pattern.permute.xlu0 0
        %2122 = vperm.xlu0 %2121, %v2101
        %v2123 = vpop.permute.xlu0 %2122
        %2124 = vset.pattern.permute.xlu0 0
        %2125 = vperm.xlu0 %2124, %v2102
        %v2126 = vpop.permute.xlu0 %2125
        %2127 = vset.pattern.permute.xlu0 0
        %2128 = vperm.xlu0 %2127, %v2103
        %v2129 = vpop.permute.xlu0 %2128
        %2130 = vset.pattern.permute.xlu0 0
        %2131 = vperm.xlu0 %2130, %v2104
        %v2132 = vpop.permute.xlu0 %2131
        %2133 = vset.pattern.permute.xlu0 0
        %2134 = vperm.xlu0 %2133, %v2105
        %v2135 = vpop.permute.xlu0 %2134
        %2136 = vset.pattern.permute.xlu0 0
        %2137 = vperm.xlu0 %2136, %v2106
        %v2138 = vpop.permute.xlu0 %2137
        %v2139 = vlaneseq
        %v2140 = vshrl.u32 %v2139, 7
        %v2141 = vsub.s32 %v1888, %v2140
        %v2142 = vrot.slane %v2117, %v2141
        %v2143 = vlaneseq
        %v2144 = vshrl.u32 %v2143, 7
        %v2145 = vsub.s32 %v1888, %v2144
        %v2146 = vrot.slane %v2120, %v2145
        %v2147 = vlaneseq
        %v2148 = vshrl.u32 %v2147, 7
        %v2149 = vsub.s32 %v1888, %v2148
        %v2150 = vrot.slane %v2123, %v2149
        %v2151 = vlaneseq
        %v2152 = vshrl.u32 %v2151, 7
        %v2153 = vsub.s32 %v1888, %v2152
        %v2154 = vrot.slane %v2126, %v2153
        %v2155 = vlaneseq
        %v2156 = vshrl.u32 %v2155, 7
        %v2157 = vsub.s32 %v1888, %v2156
        %v2158 = vrot.slane %v2129, %v2157
        %v2159 = vlaneseq
        %v2160 = vshrl.u32 %v2159, 7
        %v2161 = vsub.s32 %v1888, %v2160
        %v2162 = vrot.slane %v2132, %v2161
        %v2163 = vlaneseq
        %v2164 = vshrl.u32 %v2163, 7
        %v2165 = vsub.s32 %v1888, %v2164
        %v2166 = vrot.slane %v2135, %v2165
        %v2167 = vlaneseq
        %v2168 = vshrl.u32 %v2167, 7
        %v2169 = vsub.s32 %v1888, %v2168
        %v2170 = vrot.slane %v2138, %v2169
        %v2171 = vsel %vm1987, %v2146, %v2142
        %v2172 = vsel %vm1989, %v2150, %v2171
        %v2173 = vsel %vm1991, %v2154, %v2172
        %v2174 = vsel %vm1993, %v2158, %v2173
        %v2175 = vsel %vm1995, %v2162, %v2174
        %v2176 = vsel %vm1997, %v2166, %v2175
        %v2177 = vsel %vm1999, %v2170, %v2176
        %2179 = vxpose.xlu0.b32.start [1/16] %v2177, 128
        %2180 = vxpose.xlu0.b32.cont [2/16] 0.0, 128
        %2181 = vxpose.xlu0.b32.cont [3/16] 0.0, 128
        %2182 = vxpose.xlu0.b32.cont [4/16] 0.0, 128
        %2183 = vxpose.xlu0.b32.cont [5/16] 0.0, 128
        %2184 = vxpose.xlu0.b32.cont [6/16] 0.0, 128
        %2185 = vxpose.xlu0.b32.cont [7/16] 0.0, 128
        %2186 = vxpose.xlu0.b32.cont [8/16] 0.0, 128
        %2187 = vxpose.xlu0.b32.cont [9/16] 0.0, 128
        %2188 = vxpose.xlu0.b32.cont [10/16] 0.0, 128
        %2189 = vxpose.xlu0.b32.cont [11/16] 0.0, 128
        %2190 = vxpose.xlu0.b32.cont [12/16] 0.0, 128
        %2191 = vxpose.xlu0.b32.cont [13/16] 0.0, 128
        %2192 = vxpose.xlu0.b32.cont [14/16] 0.0, 128
        %2193 = vxpose.xlu0.b32.cont [15/16] 0.0, 128
        %2194 = vxpose.xlu0.b32.end [16/16] 0.0, 128
        %v2195 = vpop.trf.xlu0
        %v2196 = vpop.trf.xlu0
        %v2197 = vpop.trf.xlu0
        %v2198 = vpop.trf.xlu0
        %v2199 = vpop.trf.xlu0
        %v2200 = vpop.trf.xlu0
        %v2201 = vpop.trf.xlu0
        %v2202 = vpop.trf.xlu0
        %v2203 = vpop.trf.xlu0
        %v2204 = vpop.trf.xlu0
        %v2205 = vpop.trf.xlu0
        %v2206 = vpop.trf.xlu0
        %v2207 = vpop.trf.xlu0
        %v2208 = vpop.trf.xlu0
        %v2209 = vpop.trf.xlu0
        %v2210 = vpop.trf.xlu0
        %v2219 = vsub.f32 %v455, %v2117
        %v2220 = vsub.f32 %v532, %v2120
        %v2221 = vsub.f32 %v609, %v2123
        %v2222 = vsub.f32 %v686, %v2126
        %v2223 = vsub.f32 %v763, %v2129
        %v2224 = vsub.f32 %v840, %v2132
        %v2225 = vsub.f32 %v917, %v2135
        %v2226 = vsub.f32 %v994, %v2138
        %v2227 = vmul.f32 %v2219, 1.442695
        %v2228 = vpow.pop %v2227
        %v2229 = vmul.f32 %v2220, 1.442695
        %v2230 = vpow.pop %v2229
        %v2231 = vmul.f32 %v2221, 1.442695
        %v2232 = vpow.pop %v2231
        %v2233 = vmul.f32 %v2222, 1.442695
        %v2234 = vpow.pop %v2233
        %v2235 = vmul.f32 %v2223, 1.442695
        %v2236 = vpow.pop %v2235
        %v2237 = vmul.f32 %v2224, 1.442695
        %v2238 = vpow.pop %v2237
        %v2239 = vmul.f32 %v2225, 1.442695
        %v2240 = vpow.pop %v2239
        %v2241 = vmul.f32 %v2226, 1.442695
        %v2242 = vpow.pop %v2241
        %v2243 = vlaneseq
        %v2244 = vshrl.u32 %v2243, 7
        %v2245 = vsub.s32 0, %v2244
        %v2246 = vrot.slane %v2195, %v2245
        %2248 = vbcast.lane.b32.xlu0 %v2246, 256
        %v2249 = vpop.permute.xlu0 %2248
        %v2250 = vlaneseq
        %v2251 = vshrl.u32 %v2250, 7
        %v2252 = vsub.s32 1, %v2251
        %v2253 = vrot.slane %v2195, %v2252
        %2255 = vbcast.lane.b32.xlu0 %v2253, 256
        %v2256 = vpop.permute.xlu0 %2255
        %v2257 = vlaneseq
        %v2258 = vshrl.u32 %v2257, 7
        %v2259 = vsub.s32 2, %v2258
        %v2260 = vrot.slane %v2195, %v2259
        %2262 = vbcast.lane.b32.xlu0 %v2260, 256
        %v2263 = vpop.permute.xlu0 %2262
        %v2264 = vlaneseq
        %v2265 = vshrl.u32 %v2264, 7
        %v2266 = vsub.s32 3, %v2265
        %v2267 = vrot.slane %v2195, %v2266
        %2269 = vbcast.lane.b32.xlu0 %v2267, 256
        %v2270 = vpop.permute.xlu0 %2269
        %v2271 = vlaneseq
        %v2272 = vshrl.u32 %v2271, 7
        %v2273 = vsub.s32 4, %v2272
        %v2274 = vrot.slane %v2195, %v2273
        %2276 = vbcast.lane.b32.xlu0 %v2274, 256
        %v2277 = vpop.permute.xlu0 %2276
        %v2278 = vlaneseq
        %v2279 = vshrl.u32 %v2278, 7
        %v2280 = vsub.s32 5, %v2279
        %v2281 = vrot.slane %v2195, %v2280
        %2283 = vbcast.lane.b32.xlu0 %v2281, 256
        %v2284 = vpop.permute.xlu0 %2283
        %v2285 = vlaneseq
        %v2286 = vshrl.u32 %v2285, 7
        %v2287 = vsub.s32 6, %v2286
        %v2288 = vrot.slane %v2195, %v2287
        %2290 = vbcast.lane.b32.xlu0 %v2288, 256
        %v2291 = vpop.permute.xlu0 %2290
        %v2292 = vlaneseq
        %v2293 = vshrl.u32 %v2292, 7
        %v2294 = vsub.s32 7, %v2293
        %v2295 = vrot.slane %v2195, %v2294
        %2297 = vbcast.lane.b32.xlu0 %v2295, 256
        %v2298 = vpop.permute.xlu0 %2297
        %v2299 = vsub.f32 %v1890, %v2249
        %v2300 = vsub.f32 %v1891, %v2256
        %v2301 = vsub.f32 %v1892, %v2263
        %v2302 = vsub.f32 %v1893, %v2270
        %v2303 = vsub.f32 %v1894, %v2277
        %v2304 = vsub.f32 %v1895, %v2284
        %v2305 = vsub.f32 %v1896, %v2291
        %v2306 = vsub.f32 %v1897, %v2298
        %v2307 = vmul.f32 %v2299, 1.442695
        %v2308 = vpow.pop %v2307
        %v2309 = vmul.f32 %v2300, 1.442695
        %v2310 = vpow.pop %v2309
        %v2311 = vmul.f32 %v2301, 1.442695
        %v2312 = vpow.pop %v2311
        %v2313 = vmul.f32 %v2302, 1.442695
        %v2314 = vpow.pop %v2313
        %v2315 = vmul.f32 %v2303, 1.442695
        %v2316 = vpow.pop %v2315
        %v2317 = vmul.f32 %v2304, 1.442695
        %v2318 = vpow.pop %v2317
        %v2319 = vmul.f32 %v2305, 1.442695
        %v2320 = vpow.pop %v2319
        %v2321 = vmul.f32 %v2306, 1.442695
        %v2322 = vpow.pop %v2321
        %v2323 = vsel %vm1898, %v2228, 0.0
        %2324 = vadd.xlane.f32.xlu0 %v2323
        %v2325 = vpop.xlane.xlu0 %2324
        %v2326 = vsel %vm1898, %v2230, 0.0
        %2327 = vadd.xlane.f32.xlu0 %v2326
        %v2328 = vpop.xlane.xlu0 %2327
        %v2329 = vsel %vm1898, %v2232, 0.0
        %2330 = vadd.xlane.f32.xlu0 %v2329
        %v2331 = vpop.xlane.xlu0 %2330
        %v2332 = vsel %vm1898, %v2234, 0.0
        %2333 = vadd.xlane.f32.xlu0 %v2332
        %v2334 = vpop.xlane.xlu0 %2333
        %v2335 = vsel %vm1898, %v2236, 0.0
        %2336 = vadd.xlane.f32.xlu0 %v2335
        %v2337 = vpop.xlane.xlu0 %2336
        %v2338 = vsel %vm1898, %v2238, 0.0
        %2339 = vadd.xlane.f32.xlu0 %v2338
        %v2340 = vpop.xlane.xlu0 %2339
        %v2341 = vsel %vm1898, %v2240, 0.0
        %2342 = vadd.xlane.f32.xlu0 %v2341
        %v2343 = vpop.xlane.xlu0 %2342
        %v2344 = vsel %vm1898, %v2242, 0.0
        %2345 = vadd.xlane.f32.xlu0 %v2344
        %v2346 = vpop.xlane.xlu0 %2345
        %v2347 = vsel %vm1898, %v2308, 0.0
        %2348 = vadd.xlane.f32.xlu0 %v2347
        %v2349 = vpop.xlane.xlu0 %2348
        %v2350 = vsel %vm1898, %v2310, 0.0
        %2351 = vadd.xlane.f32.xlu0 %v2350
        %v2352 = vpop.xlane.xlu0 %2351
        %v2353 = vsel %vm1898, %v2312, 0.0
        %2354 = vadd.xlane.f32.xlu0 %v2353
        %v2355 = vpop.xlane.xlu0 %2354
        %v2356 = vsel %vm1898, %v2314, 0.0
        %2357 = vadd.xlane.f32.xlu0 %v2356
        %v2358 = vpop.xlane.xlu0 %2357
        %v2359 = vsel %vm1898, %v2316, 0.0
        %2360 = vadd.xlane.f32.xlu0 %v2359
        %v2361 = vpop.xlane.xlu0 %2360
        %v2362 = vsel %vm1898, %v2318, 0.0
        %2363 = vadd.xlane.f32.xlu0 %v2362
        %v2364 = vpop.xlane.xlu0 %2363
        %v2365 = vsel %vm1898, %v2320, 0.0
        %2366 = vadd.xlane.f32.xlu0 %v2365
        %v2367 = vpop.xlane.xlu0 %2366
        %v2368 = vsel %vm1898, %v2322, 0.0
        %2369 = vadd.xlane.f32.xlu0 %v2368
        %v2370 = vpop.xlane.xlu0 %2369
        %v2379 = vlaneseq
        %v2380 = vshrl.u32 %v2379, 7
        %v2381 = vsub.s32 %v1888, %v2380
        %v2382 = vrot.slane %v2349, %v2381
        %v2383 = vlaneseq
        %v2384 = vshrl.u32 %v2383, 7
        %v2385 = vsub.s32 %v1888, %v2384
        %v2386 = vrot.slane %v2352, %v2385
        %v2387 = vlaneseq
        %v2388 = vshrl.u32 %v2387, 7
        %v2389 = vsub.s32 %v1888, %v2388
        %v2390 = vrot.slane %v2355, %v2389
        %v2391 = vlaneseq
        %v2392 = vshrl.u32 %v2391, 7
        %v2393 = vsub.s32 %v1888, %v2392
        %v2394 = vrot.slane %v2358, %v2393
        %v2395 = vlaneseq
        %v2396 = vshrl.u32 %v2395, 7
        %v2397 = vsub.s32 %v1888, %v2396
        %v2398 = vrot.slane %v2361, %v2397
        %v2399 = vlaneseq
        %v2400 = vshrl.u32 %v2399, 7
        %v2401 = vsub.s32 %v1888, %v2400
        %v2402 = vrot.slane %v2364, %v2401
        %v2403 = vlaneseq
        %v2404 = vshrl.u32 %v2403, 7
        %v2405 = vsub.s32 %v1888, %v2404
        %v2406 = vrot.slane %v2367, %v2405
        %v2407 = vlaneseq
        %v2408 = vshrl.u32 %v2407, 7
        %v2409 = vsub.s32 %v1888, %v2408
        %v2410 = vrot.slane %v2370, %v2409
        %v2411 = vsel %vm1987, %v2386, %v2382
        %v2412 = vsel %vm1989, %v2390, %v2411
        %v2413 = vsel %vm1991, %v2394, %v2412
        %v2414 = vsel %vm1993, %v2398, %v2413
        %v2415 = vsel %vm1995, %v2402, %v2414
        %v2416 = vsel %vm1997, %v2406, %v2415
        %v2417 = vsel %vm1999, %v2410, %v2416
        %2419 = vxpose.xlu0.b32.start [1/16] %v2417, 128
        %2420 = vxpose.xlu0.b32.cont [2/16] 0.0, 128
        %2421 = vxpose.xlu0.b32.cont [3/16] 0.0, 128
        %2422 = vxpose.xlu0.b32.cont [4/16] 0.0, 128
        %2423 = vxpose.xlu0.b32.cont [5/16] 0.0, 128
        %2424 = vxpose.xlu0.b32.cont [6/16] 0.0, 128
        %2425 = vxpose.xlu0.b32.cont [7/16] 0.0, 128
        %2426 = vxpose.xlu0.b32.cont [8/16] 0.0, 128
        %2427 = vxpose.xlu0.b32.cont [9/16] 0.0, 128
        %2428 = vxpose.xlu0.b32.cont [10/16] 0.0, 128
        %2429 = vxpose.xlu0.b32.cont [11/16] 0.0, 128
        %2430 = vxpose.xlu0.b32.cont [12/16] 0.0, 128
        %2431 = vxpose.xlu0.b32.cont [13/16] 0.0, 128
        %2432 = vxpose.xlu0.b32.cont [14/16] 0.0, 128
        %2433 = vxpose.xlu0.b32.cont [15/16] 0.0, 128
        %2434 = vxpose.xlu0.b32.end [16/16] 0.0, 128
        %v2435 = vpop.trf.xlu0
        %v2436 = vpop.trf.xlu0
        %v2437 = vpop.trf.xlu0
        %v2438 = vpop.trf.xlu0
        %v2439 = vpop.trf.xlu0
        %v2440 = vpop.trf.xlu0
        %v2441 = vpop.trf.xlu0
        %v2442 = vpop.trf.xlu0
        %v2443 = vpop.trf.xlu0
        %v2444 = vpop.trf.xlu0
        %v2445 = vpop.trf.xlu0
        %v2446 = vpop.trf.xlu0
        %v2447 = vpop.trf.xlu0
        %v2448 = vpop.trf.xlu0
        %v2449 = vpop.trf.xlu0
        %v2450 = vpop.trf.xlu0
        %v2452 = vlaneseq
        %v2453 = vshrl.u32 %v2452, 7
        %v2454 = vsub.s32 0, %v2453
        %v2455 = vrot.slane %v2435, %v2454
        %2457 = vbcast.lane.b32.xlu0 %v2455, 256
        %v2458 = vpop.permute.xlu0 %2457
        %v2459 = vlaneseq
        %v2460 = vshrl.u32 %v2459, 7
        %v2461 = vsub.s32 1, %v2460
        %v2462 = vrot.slane %v2435, %v2461
        %2464 = vbcast.lane.b32.xlu0 %v2462, 256
        %v2465 = vpop.permute.xlu0 %2464
        %v2466 = vlaneseq
        %v2467 = vshrl.u32 %v2466, 7
        %v2468 = vsub.s32 2, %v2467
        %v2469 = vrot.slane %v2435, %v2468
        %2471 = vbcast.lane.b32.xlu0 %v2469, 256
        %v2472 = vpop.permute.xlu0 %2471
        %v2473 = vlaneseq
        %v2474 = vshrl.u32 %v2473, 7
        %v2475 = vsub.s32 3, %v2474
        %v2476 = vrot.slane %v2435, %v2475
        %2478 = vbcast.lane.b32.xlu0 %v2476, 256
        %v2479 = vpop.permute.xlu0 %2478
        %v2480 = vlaneseq
        %v2481 = vshrl.u32 %v2480, 7
        %v2482 = vsub.s32 4, %v2481
        %v2483 = vrot.slane %v2435, %v2482
        %2485 = vbcast.lane.b32.xlu0 %v2483, 256
        %v2486 = vpop.permute.xlu0 %2485
        %v2487 = vlaneseq
        %v2488 = vshrl.u32 %v2487, 7
        %v2489 = vsub.s32 5, %v2488
        %v2490 = vrot.slane %v2435, %v2489
        %2492 = vbcast.lane.b32.xlu0 %v2490, 256
        %v2493 = vpop.permute.xlu0 %2492
        %v2494 = vlaneseq
        %v2495 = vshrl.u32 %v2494, 7
        %v2496 = vsub.s32 6, %v2495
        %v2497 = vrot.slane %v2435, %v2496
        %2499 = vbcast.lane.b32.xlu0 %v2497, 256
        %v2500 = vpop.permute.xlu0 %2499
        %v2501 = vlaneseq
        %v2502 = vshrl.u32 %v2501, 7
        %v2503 = vsub.s32 7, %v2502
        %v2504 = vrot.slane %v2435, %v2503
        %2506 = vbcast.lane.b32.xlu0 %v2504, 256
        %v2507 = vpop.permute.xlu0 %2506
        %v2516 = vadd.f32 %v2325, %v2458
        %v2517 = vadd.f32 %v2328, %v2465
        %v2518 = vadd.f32 %v2331, %v2472
        %v2519 = vadd.f32 %v2334, %v2479
        %v2520 = vadd.f32 %v2337, %v2486
        %v2521 = vadd.f32 %v2340, %v2493
        %v2522 = vadd.f32 %v2343, %v2500
        %v2523 = vadd.f32 %v2346, %v2507
        %v2524 = vrcp.pop %v2516
        %v2525 = vrcp.pop %v2517
        %v2526 = vrcp.pop %v2518
        %v2527 = vrcp.pop %v2519
        %v2528 = vrcp.pop %v2520
        %v2529 = vrcp.pop %v2521
        %v2530 = vrcp.pop %v2522
        %v2531 = vrcp.pop %v2523
        %2540 = vset.pattern.permute.xlu0 0
        %2541 = vperm.xlu0 %2540, %v2524
        %v2542 = vpop.permute.xlu0 %2541
        %2543 = vset.pattern.permute.xlu0 0
        %2544 = vperm.xlu0 %2543, %v2525
        %v2545 = vpop.permute.xlu0 %2544
        %2546 = vset.pattern.permute.xlu0 0
        %2547 = vperm.xlu0 %2546, %v2526
        %v2548 = vpop.permute.xlu0 %2547
        %2549 = vset.pattern.permute.xlu0 0
        %2550 = vperm.xlu0 %2549, %v2527
        %v2551 = vpop.permute.xlu0 %2550
        %2552 = vset.pattern.permute.xlu0 0
        %2553 = vperm.xlu0 %2552, %v2528
        %v2554 = vpop.permute.xlu0 %2553
        %2555 = vset.pattern.permute.xlu0 0
        %2556 = vperm.xlu0 %2555, %v2529
        %v2557 = vpop.permute.xlu0 %2556
        %2558 = vset.pattern.permute.xlu0 0
        %2559 = vperm.xlu0 %2558, %v2530
        %v2560 = vpop.permute.xlu0 %2559
        %2561 = vset.pattern.permute.xlu0 0
        %2562 = vperm.xlu0 %2561, %v2531
        %v2563 = vpop.permute.xlu0 %2562
        %v2564 = vlaneseq
        %v2565 = vshrl.u32 %v2564, 7
        %v2566 = vsub.s32 %v1888, %v2565
        %v2567 = vrot.slane %v2542, %v2566
        %v2568 = vlaneseq
        %v2569 = vshrl.u32 %v2568, 7
        %v2570 = vsub.s32 %v1888, %v2569
        %v2571 = vrot.slane %v2545, %v2570
        %v2572 = vlaneseq
        %v2573 = vshrl.u32 %v2572, 7
        %v2574 = vsub.s32 %v1888, %v2573
        %v2575 = vrot.slane %v2548, %v2574
        %v2576 = vlaneseq
        %v2577 = vshrl.u32 %v2576, 7
        %v2578 = vsub.s32 %v1888, %v2577
        %v2579 = vrot.slane %v2551, %v2578
        %v2580 = vlaneseq
        %v2581 = vshrl.u32 %v2580, 7
        %v2582 = vsub.s32 %v1888, %v2581
        %v2583 = vrot.slane %v2554, %v2582
        %v2584 = vlaneseq
        %v2585 = vshrl.u32 %v2584, 7
        %v2586 = vsub.s32 %v1888, %v2585
        %v2587 = vrot.slane %v2557, %v2586
        %v2588 = vlaneseq
        %v2589 = vshrl.u32 %v2588, 7
        %v2590 = vsub.s32 %v1888, %v2589
        %v2591 = vrot.slane %v2560, %v2590
        %v2592 = vlaneseq
        %v2593 = vshrl.u32 %v2592, 7
        %v2594 = vsub.s32 %v1888, %v2593
        %v2595 = vrot.slane %v2563, %v2594
        %v2596 = vsel %vm1987, %v2571, %v2567
        %v2597 = vsel %vm1989, %v2575, %v2596
        %v2598 = vsel %vm1991, %v2579, %v2597
        %v2599 = vsel %vm1993, %v2583, %v2598
        %v2600 = vsel %vm1995, %v2587, %v2599
        %v2601 = vsel %vm1997, %v2591, %v2600
        %v2602 = vsel %vm1999, %v2595, %v2601
        %2604 = vxpose.xlu0.b32.start [1/16] %v2602, 128
        %2605 = vxpose.xlu0.b32.cont [2/16] 0.0, 128
        %2606 = vxpose.xlu0.b32.cont [3/16] 0.0, 128
        %2607 = vxpose.xlu0.b32.cont [4/16] 0.0, 128
        %2608 = vxpose.xlu0.b32.cont [5/16] 0.0, 128
        %2609 = vxpose.xlu0.b32.cont [6/16] 0.0, 128
        %2610 = vxpose.xlu0.b32.cont [7/16] 0.0, 128
        %2611 = vxpose.xlu0.b32.cont [8/16] 0.0, 128
        %2612 = vxpose.xlu0.b32.cont [9/16] 0.0, 128
        %2613 = vxpose.xlu0.b32.cont [10/16] 0.0, 128
        %2614 = vxpose.xlu0.b32.cont [11/16] 0.0, 128
        %2615 = vxpose.xlu0.b32.cont [12/16] 0.0, 128
        %2616 = vxpose.xlu0.b32.cont [13/16] 0.0, 128
        %2617 = vxpose.xlu0.b32.cont [14/16] 0.0, 128
        %2618 = vxpose.xlu0.b32.cont [15/16] 0.0, 128
        %2619 = vxpose.xlu0.b32.end [16/16] 0.0, 128
        %v2620 = vpop.trf.xlu0
        %v2621 = vpop.trf.xlu0
        %v2622 = vpop.trf.xlu0
        %v2623 = vpop.trf.xlu0
        %v2624 = vpop.trf.xlu0
        %v2625 = vpop.trf.xlu0
        %v2626 = vpop.trf.xlu0
        %v2627 = vpop.trf.xlu0
        %v2628 = vpop.trf.xlu0
        %v2629 = vpop.trf.xlu0
        %v2630 = vpop.trf.xlu0
        %v2631 = vpop.trf.xlu0
        %v2632 = vpop.trf.xlu0
        %v2633 = vpop.trf.xlu0
        %v2634 = vpop.trf.xlu0
        %v2635 = vpop.trf.xlu0
        %v2644 = vmul.f32 %v2228, %v2542
        %v2645 = vmul.f32 %v2230, %v2545
        %v2646 = vmul.f32 %v2232, %v2548
        %v2647 = vmul.f32 %v2234, %v2551
        %v2648 = vmul.f32 %v2236, %v2554
        %v2649 = vmul.f32 %v2238, %v2557
        %v2650 = vmul.f32 %v2240, %v2560
        %v2651 = vmul.f32 %v2242, %v2563
        %v2652 = vlaneseq
        %v2653 = vshrl.u32 %v2652, 7
        %v2654 = vsub.s32 0, %v2653
        %v2655 = vrot.slane %v2620, %v2654
        %2657 = vbcast.lane.b32.xlu0 %v2655, 256
        %v2658 = vpop.permute.xlu0 %2657
        %v2659 = vlaneseq
        %v2660 = vshrl.u32 %v2659, 7
        %v2661 = vsub.s32 1, %v2660
        %v2662 = vrot.slane %v2620, %v2661
        %2664 = vbcast.lane.b32.xlu0 %v2662, 256
        %v2665 = vpop.permute.xlu0 %2664
        %v2666 = vlaneseq
        %v2667 = vshrl.u32 %v2666, 7
        %v2668 = vsub.s32 2, %v2667
        %v2669 = vrot.slane %v2620, %v2668
        %2671 = vbcast.lane.b32.xlu0 %v2669, 256
        %v2672 = vpop.permute.xlu0 %2671
        %v2673 = vlaneseq
        %v2674 = vshrl.u32 %v2673, 7
        %v2675 = vsub.s32 3, %v2674
        %v2676 = vrot.slane %v2620, %v2675
        %2678 = vbcast.lane.b32.xlu0 %v2676, 256
        %v2679 = vpop.permute.xlu0 %2678
        %v2680 = vlaneseq
        %v2681 = vshrl.u32 %v2680, 7
        %v2682 = vsub.s32 4, %v2681
        %v2683 = vrot.slane %v2620, %v2682
        %2685 = vbcast.lane.b32.xlu0 %v2683, 256
        %v2686 = vpop.permute.xlu0 %2685
        %v2687 = vlaneseq
        %v2688 = vshrl.u32 %v2687, 7
        %v2689 = vsub.s32 5, %v2688
        %v2690 = vrot.slane %v2620, %v2689
        %2692 = vbcast.lane.b32.xlu0 %v2690, 256
        %v2693 = vpop.permute.xlu0 %2692
        %v2694 = vlaneseq
        %v2695 = vshrl.u32 %v2694, 7
        %v2696 = vsub.s32 6, %v2695
        %v2697 = vrot.slane %v2620, %v2696
        %2699 = vbcast.lane.b32.xlu0 %v2697, 256
        %v2700 = vpop.permute.xlu0 %2699
        %v2701 = vlaneseq
        %v2702 = vshrl.u32 %v2701, 7
        %v2703 = vsub.s32 7, %v2702
        %v2704 = vrot.slane %v2620, %v2703
        %2706 = vbcast.lane.b32.xlu0 %v2704, 256
        %v2707 = vpop.permute.xlu0 %2706
        %v2708 = vmul.f32 %v2308, %v2658
        %v2709 = vmul.f32 %v2310, %v2665
        %v2710 = vmul.f32 %v2312, %v2672
        %v2711 = vmul.f32 %v2314, %v2679
        %v2712 = vmul.f32 %v2316, %v2686
        %v2713 = vmul.f32 %v2318, %v2693
        %v2714 = vmul.f32 %v2320, %v2700
        %v2715 = vmul.f32 %v2322, %v2707
        %2716 = vrot.lane.b32.xlu0 %v342, 124
        %v2717 = vpop.permute.xlu0 %2716
        %v2720 = vsel %vm1898, %v2644, 0
        %2722 = vmatprep.subr.mxu0 0.0
        %2723 = vmatpush1.msra.mxu0 %v2717
        %2724 = vmatprep.subr.mxu0 0.0
        %2725 = vmatpush1.msra.mxu0 0.0
        %2726 = vmatprep.subr.mxu0 0.0
        %2727 = vmatpush1.msra.mxu0 0.0
        %2728 = vmatprep.subr.mxu0 0.0
        %2729 = vmatpush1.msra.mxu0 0.0
        %2730 = vmatprep.subr.mxu0 0.0
        %2731 = vmatpush1.msra.mxu0 0.0
        %2732 = vmatprep.subr.mxu0 0.0
        %2733 = vmatpush1.msra.mxu0 0.0
        %2734 = vmatprep.subr.mxu0 0.0
        %2735 = vmatpush1.msra.mxu0 0.0
        %2736 = vmatprep.subr.mxu0 0.0
        %2737 = vmatpush1.msra.mxu0 0.0
        %2738 = vmatprep.subr.mxu0 0.0
        %2739 = vmatpush1.msra.mxu0 0.0
        %2740 = vmatprep.subr.mxu0 0.0
        %2741 = vmatpush1.msra.mxu0 0.0
        %2742 = vmatprep.subr.mxu0 0.0
        %2743 = vmatpush1.msra.mxu0 0.0
        %2744 = vmatprep.subr.mxu0 0.0
        %2745 = vmatpush1.msra.mxu0 0.0
        %2746 = vmatprep.subr.mxu0 0.0
        %2747 = vmatpush1.msra.mxu0 0.0
        %2748 = vmatprep.subr.mxu0 0.0
        %2749 = vmatpush1.msra.mxu0 0.0
        %2750 = vmatprep.subr.mxu0 0.0
        %2751 = vmatpush1.msra.mxu0 0.0
        %2752 = vmatprep.subr.mxu0 0.0
        %2753 = vmatpush1.msra.mxu0 0.0
        %2754 = vmatprep.subr.mxu0 0.0
        %2755 = vmatpush1.msra.mxu0 0.0
        %2756 = vmatprep.subr.mxu0 0.0
        %2757 = vmatpush1.msra.mxu0 0.0
        %2758 = vmatprep.subr.mxu0 0.0
        %2759 = vmatpush1.msra.mxu0 0.0
        %2760 = vmatprep.subr.mxu0 0.0
        %2761 = vmatpush1.msra.mxu0 0.0
        %2762 = vmatprep.subr.mxu0 0.0
        %2763 = vmatpush1.msra.mxu0 0.0
        %2764 = vmatprep.subr.mxu0 0.0
        %2765 = vmatpush1.msra.mxu0 0.0
        %2766 = vmatprep.subr.mxu0 0.0
        %2767 = vmatpush1.msra.mxu0 0.0
        %2768 = vmatprep.subr.mxu0 0.0
        %2769 = vmatpush1.msra.mxu0 0.0
        %2770 = vmatprep.subr.mxu0 0.0
        %2771 = vmatpush1.msra.mxu0 0.0
        %2772 = vmatprep.subr.mxu0 0.0
        %2773 = vmatpush1.msra.mxu0 0.0
        %2774 = vmatprep.subr.mxu0 0.0
        %2775 = vmatpush1.msra.mxu0 0.0
        %2776 = vmatprep.subr.mxu0 0.0
        %2777 = vmatpush1.msra.mxu0 0.0
        %2778 = vmatprep.subr.mxu0 0.0
        %2779 = vmatpush1.msra.mxu0 0.0
        %2780 = vmatprep.subr.mxu0 0.0
        %2781 = vmatpush1.msra.mxu0 0.0
        %2782 = vmatprep.subr.mxu0 0.0
        %2783 = vmatpush1.msra.mxu0 0.0
        %2784 = vmatprep.subr.mxu0 0.0
        %2785 = vmatpush1.msra.mxu0 0.0
        %2786 = vmatprep.mubr.f32.mxu0 0.0
        %2787 = vmatmul.mubr.f32.gmra.mrb[0].mxu0 %v2720
        %v2788 = vpop.f32.mrb[0].mxu0
        %v2789 = vadd.f32 0.0, %v2788
        %v2790 = vpop.f32.mrb[0].mxu0
        %2791 = vdwg.mxu0
        %2792 = vrot.lane.b32.xlu0 %v347, 124
        %v2793 = vpop.permute.xlu0 %2792
        %v2796 = vsel %vm1898, %v2645, 0
        %2798 = vmatprep.subr.mxu0 0.0
        %2799 = vmatpush1.msra.mxu0 %v2793
        %2800 = vmatprep.subr.mxu0 0.0
        %2801 = vmatpush1.msra.mxu0 0.0
        %2802 = vmatprep.subr.mxu0 0.0
        %2803 = vmatpush1.msra.mxu0 0.0
        %2804 = vmatprep.subr.mxu0 0.0
        %2805 = vmatpush1.msra.mxu0 0.0
        %2806 = vmatprep.subr.mxu0 0.0
        %2807 = vmatpush1.msra.mxu0 0.0
        %2808 = vmatprep.subr.mxu0 0.0
        %2809 = vmatpush1.msra.mxu0 0.0
        %2810 = vmatprep.subr.mxu0 0.0
        %2811 = vmatpush1.msra.mxu0 0.0
        %2812 = vmatprep.subr.mxu0 0.0
        %2813 = vmatpush1.msra.mxu0 0.0
        %2814 = vmatprep.subr.mxu0 0.0
        %2815 = vmatpush1.msra.mxu0 0.0
        %2816 = vmatprep.subr.mxu0 0.0
        %2817 = vmatpush1.msra.mxu0 0.0
        %2818 = vmatprep.subr.mxu0 0.0
        %2819 = vmatpush1.msra.mxu0 0.0
        %2820 = vmatprep.subr.mxu0 0.0
        %2821 = vmatpush1.msra.mxu0 0.0
        %2822 = vmatprep.subr.mxu0 0.0
        %2823 = vmatpush1.msra.mxu0 0.0
        %2824 = vmatprep.subr.mxu0 0.0
        %2825 = vmatpush1.msra.mxu0 0.0
        %2826 = vmatprep.subr.mxu0 0.0
        %2827 = vmatpush1.msra.mxu0 0.0
        %2828 = vmatprep.subr.mxu0 0.0
        %2829 = vmatpush1.msra.mxu0 0.0
        %2830 = vmatprep.subr.mxu0 0.0
        %2831 = vmatpush1.msra.mxu0 0.0
        %2832 = vmatprep.subr.mxu0 0.0
        %2833 = vmatpush1.msra.mxu0 0.0
        %2834 = vmatprep.subr.mxu0 0.0
        %2835 = vmatpush1.msra.mxu0 0.0
        %2836 = vmatprep.subr.mxu0 0.0
        %2837 = vmatpush1.msra.mxu0 0.0
        %2838 = vmatprep.subr.mxu0 0.0
        %2839 = vmatpush1.msra.mxu0 0.0
        %2840 = vmatprep.subr.mxu0 0.0
        %2841 = vmatpush1.msra.mxu0 0.0
        %2842 = vmatprep.subr.mxu0 0.0
        %2843 = vmatpush1.msra.mxu0 0.0
        %2844 = vmatprep.subr.mxu0 0.0
        %2845 = vmatpush1.msra.mxu0 0.0
        %2846 = vmatprep.subr.mxu0 0.0
        %2847 = vmatpush1.msra.mxu0 0.0
        %2848 = vmatprep.subr.mxu0 0.0
        %2849 = vmatpush1.msra.mxu0 0.0
        %2850 = vmatprep.subr.mxu0 0.0
        %2851 = vmatpush1.msra.mxu0 0.0
        %2852 = vmatprep.subr.mxu0 0.0
        %2853 = vmatpush1.msra.mxu0 0.0
        %2854 = vmatprep.subr.mxu0 0.0
        %2855 = vmatpush1.msra.mxu0 0.0
        %2856 = vmatprep.subr.mxu0 0.0
        %2857 = vmatpush1.msra.mxu0 0.0
        %2858 = vmatprep.subr.mxu0 0.0
        %2859 = vmatpush1.msra.mxu0 0.0
        %2860 = vmatprep.subr.mxu0 0.0
        %2861 = vmatpush1.msra.mxu0 0.0
        %2862 = vmatprep.mubr.f32.mxu0 0.0
        %2863 = vmatmul.mubr.f32.gmra.mrb[0].mxu0 %v2796
        %v2864 = vpop.f32.mrb[0].mxu0
        %v2865 = vadd.f32 0.0, %v2864
        %v2866 = vpop.f32.mrb[0].mxu0
        %2867 = vdwg.mxu0
        %2868 = vrot.lane.b32.xlu0 %v352, 124
        %v2869 = vpop.permute.xlu0 %2868
        %v2872 = vsel %vm1898, %v2646, 0
        %2874 = vmatprep.subr.mxu0 0.0
        %2875 = vmatpush1.msra.mxu0 %v2869
        %2876 = vmatprep.subr.mxu0 0.0
        %2877 = vmatpush1.msra.mxu0 0.0
        %2878 = vmatprep.subr.mxu0 0.0
        %2879 = vmatpush1.msra.mxu0 0.0
        %2880 = vmatprep.subr.mxu0 0.0
        %2881 = vmatpush1.msra.mxu0 0.0
        %2882 = vmatprep.subr.mxu0 0.0
        %2883 = vmatpush1.msra.mxu0 0.0
        %2884 = vmatprep.subr.mxu0 0.0
        %2885 = vmatpush1.msra.mxu0 0.0
        %2886 = vmatprep.subr.mxu0 0.0
        %2887 = vmatpush1.msra.mxu0 0.0
        %2888 = vmatprep.subr.mxu0 0.0
        %2889 = vmatpush1.msra.mxu0 0.0
        %2890 = vmatprep.subr.mxu0 0.0
        %2891 = vmatpush1.msra.mxu0 0.0
        %2892 = vmatprep.subr.mxu0 0.0
        %2893 = vmatpush1.msra.mxu0 0.0
        %2894 = vmatprep.subr.mxu0 0.0
        %2895 = vmatpush1.msra.mxu0 0.0
        %2896 = vmatprep.subr.mxu0 0.0
        %2897 = vmatpush1.msra.mxu0 0.0
        %2898 = vmatprep.subr.mxu0 0.0
        %2899 = vmatpush1.msra.mxu0 0.0
        %2900 = vmatprep.subr.mxu0 0.0
        %2901 = vmatpush1.msra.mxu0 0.0
        %2902 = vmatprep.subr.mxu0 0.0
        %2903 = vmatpush1.msra.mxu0 0.0
        %2904 = vmatprep.subr.mxu0 0.0
        %2905 = vmatpush1.msra.mxu0 0.0
        %2906 = vmatprep.subr.mxu0 0.0
        %2907 = vmatpush1.msra.mxu0 0.0
        %2908 = vmatprep.subr.mxu0 0.0
        %2909 = vmatpush1.msra.mxu0 0.0
        %2910 = vmatprep.subr.mxu0 0.0
        %2911 = vmatpush1.msra.mxu0 0.0
        %2912 = vmatprep.subr.mxu0 0.0
        %2913 = vmatpush1.msra.mxu0 0.0
        %2914 = vmatprep.subr.mxu0 0.0
        %2915 = vmatpush1.msra.mxu0 0.0
        %2916 = vmatprep.subr.mxu0 0.0
        %2917 = vmatpush1.msra.mxu0 0.0
        %2918 = vmatprep.subr.mxu0 0.0
        %2919 = vmatpush1.msra.mxu0 0.0
        %2920 = vmatprep.subr.mxu0 0.0
        %2921 = vmatpush1.msra.mxu0 0.0
        %2922 = vmatprep.subr.mxu0 0.0
        %2923 = vmatpush1.msra.mxu0 0.0
        %2924 = vmatprep.subr.mxu0 0.0
        %2925 = vmatpush1.msra.mxu0 0.0
        %2926 = vmatprep.subr.mxu0 0.0
        %2927 = vmatpush1.msra.mxu0 0.0
        %2928 = vmatprep.subr.mxu0 0.0
        %2929 = vmatpush1.msra.mxu0 0.0
        %2930 = vmatprep.subr.mxu0 0.0
        %2931 = vmatpush1.msra.mxu0 0.0
        %2932 = vmatprep.subr.mxu0 0.0
        %2933 = vmatpush1.msra.mxu0 0.0
        %2934 = vmatprep.subr.mxu0 0.0
        %2935 = vmatpush1.msra.mxu0 0.0
        %2936 = vmatprep.subr.mxu0 0.0
        %2937 = vmatpush1.msra.mxu0 0.0
        %2938 = vmatprep.mubr.f32.mxu0 0.0
        %2939 = vmatmul.mubr.f32.gmra.mrb[0].mxu0 %v2872
        %v2940 = vpop.f32.mrb[0].mxu0
        %v2941 = vadd.f32 0.0, %v2940
        %v2942 = vpop.f32.mrb[0].mxu0
        %2943 = vdwg.mxu0
        %2944 = vrot.lane.b32.xlu0 %v357, 124
        %v2945 = vpop.permute.xlu0 %2944
        %v2948 = vsel %vm1898, %v2647, 0
        %2950 = vmatprep.subr.mxu0 0.0
        %2951 = vmatpush1.msra.mxu0 %v2945
        %2952 = vmatprep.subr.mxu0 0.0
        %2953 = vmatpush1.msra.mxu0 0.0
        %2954 = vmatprep.subr.mxu0 0.0
        %2955 = vmatpush1.msra.mxu0 0.0
        %2956 = vmatprep.subr.mxu0 0.0
        %2957 = vmatpush1.msra.mxu0 0.0
        %2958 = vmatprep.subr.mxu0 0.0
        %2959 = vmatpush1.msra.mxu0 0.0
        %2960 = vmatprep.subr.mxu0 0.0
        %2961 = vmatpush1.msra.mxu0 0.0
        %2962 = vmatprep.subr.mxu0 0.0
        %2963 = vmatpush1.msra.mxu0 0.0
        %2964 = vmatprep.subr.mxu0 0.0
        %2965 = vmatpush1.msra.mxu0 0.0
        %2966 = vmatprep.subr.mxu0 0.0
        %2967 = vmatpush1.msra.mxu0 0.0
        %2968 = vmatprep.subr.mxu0 0.0
        %2969 = vmatpush1.msra.mxu0 0.0
        %2970 = vmatprep.subr.mxu0 0.0
        %2971 = vmatpush1.msra.mxu0 0.0
        %2972 = vmatprep.subr.mxu0 0.0
        %2973 = vmatpush1.msra.mxu0 0.0
        %2974 = vmatprep.subr.mxu0 0.0
        %2975 = vmatpush1.msra.mxu0 0.0
        %2976 = vmatprep.subr.mxu0 0.0
        %2977 = vmatpush1.msra.mxu0 0.0
        %2978 = vmatprep.subr.mxu0 0.0
        %2979 = vmatpush1.msra.mxu0 0.0
        %2980 = vmatprep.subr.mxu0 0.0
        %2981 = vmatpush1.msra.mxu0 0.0
        %2982 = vmatprep.subr.mxu0 0.0
        %2983 = vmatpush1.msra.mxu0 0.0
        %2984 = vmatprep.subr.mxu0 0.0
        %2985 = vmatpush1.msra.mxu0 0.0
        %2986 = vmatprep.subr.mxu0 0.0
        %2987 = vmatpush1.msra.mxu0 0.0
        %2988 = vmatprep.subr.mxu0 0.0
        %2989 = vmatpush1.msra.mxu0 0.0
        %2990 = vmatprep.subr.mxu0 0.0
        %2991 = vmatpush1.msra.mxu0 0.0
        %2992 = vmatprep.subr.mxu0 0.0
        %2993 = vmatpush1.msra.mxu0 0.0
        %2994 = vmatprep.subr.mxu0 0.0
        %2995 = vmatpush1.msra.mxu0 0.0
        %2996 = vmatprep.subr.mxu0 0.0
        %2997 = vmatpush1.msra.mxu0 0.0
        %2998 = vmatprep.subr.mxu0 0.0
        %2999 = vmatpush1.msra.mxu0 0.0
        %3000 = vmatprep.subr.mxu0 0.0
        %3001 = vmatpush1.msra.mxu0 0.0
        %3002 = vmatprep.subr.mxu0 0.0
        %3003 = vmatpush1.msra.mxu0 0.0
        %3004 = vmatprep.subr.mxu0 0.0
        %3005 = vmatpush1.msra.mxu0 0.0
        %3006 = vmatprep.subr.mxu0 0.0
        %3007 = vmatpush1.msra.mxu0 0.0
        %3008 = vmatprep.subr.mxu0 0.0
        %3009 = vmatpush1.msra.mxu0 0.0
        %3010 = vmatprep.subr.mxu0 0.0
        %3011 = vmatpush1.msra.mxu0 0.0
        %3012 = vmatprep.subr.mxu0 0.0
        %3013 = vmatpush1.msra.mxu0 0.0
        %3014 = vmatprep.mubr.f32.mxu0 0.0
        %3015 = vmatmul.mubr.f32.gmra.mrb[0].mxu0 %v2948
        %v3016 = vpop.f32.mrb[0].mxu0
        %v3017 = vadd.f32 0.0, %v3016
        %v3018 = vpop.f32.mrb[0].mxu0
        %3019 = vdwg.mxu0
        %3020 = vrot.lane.b32.xlu0 %v362, 124
        %v3021 = vpop.permute.xlu0 %3020
        %v3024 = vsel %vm1898, %v2648, 0
        %3026 = vmatprep.subr.mxu0 0.0
        %3027 = vmatpush1.msra.mxu0 %v3021
        %3028 = vmatprep.subr.mxu0 0.0
        %3029 = vmatpush1.msra.mxu0 0.0
        %3030 = vmatprep.subr.mxu0 0.0
        %3031 = vmatpush1.msra.mxu0 0.0
        %3032 = vmatprep.subr.mxu0 0.0
        %3033 = vmatpush1.msra.mxu0 0.0
        %3034 = vmatprep.subr.mxu0 0.0
        %3035 = vmatpush1.msra.mxu0 0.0
        %3036 = vmatprep.subr.mxu0 0.0
        %3037 = vmatpush1.msra.mxu0 0.0
        %3038 = vmatprep.subr.mxu0 0.0
        %3039 = vmatpush1.msra.mxu0 0.0
        %3040 = vmatprep.subr.mxu0 0.0
        %3041 = vmatpush1.msra.mxu0 0.0
        %3042 = vmatprep.subr.mxu0 0.0
        %3043 = vmatpush1.msra.mxu0 0.0
        %3044 = vmatprep.subr.mxu0 0.0
        %3045 = vmatpush1.msra.mxu0 0.0
        %3046 = vmatprep.subr.mxu0 0.0
        %3047 = vmatpush1.msra.mxu0 0.0
        %3048 = vmatprep.subr.mxu0 0.0
        %3049 = vmatpush1.msra.mxu0 0.0
        %3050 = vmatprep.subr.mxu0 0.0
        %3051 = vmatpush1.msra.mxu0 0.0
        %3052 = vmatprep.subr.mxu0 0.0
        %3053 = vmatpush1.msra.mxu0 0.0
        %3054 = vmatprep.subr.mxu0 0.0
        %3055 = vmatpush1.msra.mxu0 0.0
        %3056 = vmatprep.subr.mxu0 0.0
        %3057 = vmatpush1.msra.mxu0 0.0
        %3058 = vmatprep.subr.mxu0 0.0
        %3059 = vmatpush1.msra.mxu0 0.0
        %3060 = vmatprep.subr.mxu0 0.0
        %3061 = vmatpush1.msra.mxu0 0.0
        %3062 = vmatprep.subr.mxu0 0.0
        %3063 = vmatpush1.msra.mxu0 0.0
        %3064 = vmatprep.subr.mxu0 0.0
        %3065 = vmatpush1.msra.mxu0 0.0
        %3066 = vmatprep.subr.mxu0 0.0
        %3067 = vmatpush1.msra.mxu0 0.0
        %3068 = vmatprep.subr.mxu0 0.0
        %3069 = vmatpush1.msra.mxu0 0.0
        %3070 = vmatprep.subr.mxu0 0.0
        %3071 = vmatpush1.msra.mxu0 0.0
        %3072 = vmatprep.subr.mxu0 0.0
        %3073 = vmatpush1.msra.mxu0 0.0
        %3074 = vmatprep.subr.mxu0 0.0
        %3075 = vmatpush1.msra.mxu0 0.0
        %3076 = vmatprep.subr.mxu0 0.0
        %3077 = vmatpush1.msra.mxu0 0.0
        %3078 = vmatprep.subr.mxu0 0.0
        %3079 = vmatpush1.msra.mxu0 0.0
        %3080 = vmatprep.subr.mxu0 0.0
        %3081 = vmatpush1.msra.mxu0 0.0
        %3082 = vmatprep.subr.mxu0 0.0
        %3083 = vmatpush1.msra.mxu0 0.0
        %3084 = vmatprep.subr.mxu0 0.0
        %3085 = vmatpush1.msra.mxu0 0.0
        %3086 = vmatprep.subr.mxu0 0.0
        %3087 = vmatpush1.msra.mxu0 0.0
        %3088 = vmatprep.subr.mxu0 0.0
        %3089 = vmatpush1.msra.mxu0 0.0
        %3090 = vmatprep.mubr.f32.mxu0 0.0
        %3091 = vmatmul.mubr.f32.gmra.mrb[0].mxu0 %v3024
        %v3092 = vpop.f32.mrb[0].mxu0
        %v3093 = vadd.f32 0.0, %v3092
        %v3094 = vpop.f32.mrb[0].mxu0
        %3095 = vdwg.mxu0
        %3096 = vrot.lane.b32.xlu0 %v367, 124
        %v3097 = vpop.permute.xlu0 %3096
        %v3100 = vsel %vm1898, %v2649, 0
        %3102 = vmatprep.subr.mxu0 0.0
        %3103 = vmatpush1.msra.mxu0 %v3097
        %3104 = vmatprep.subr.mxu0 0.0
        %3105 = vmatpush1.msra.mxu0 0.0
        %3106 = vmatprep.subr.mxu0 0.0
        %3107 = vmatpush1.msra.mxu0 0.0
        %3108 = vmatprep.subr.mxu0 0.0
        %3109 = vmatpush1.msra.mxu0 0.0
        %3110 = vmatprep.subr.mxu0 0.0
        %3111 = vmatpush1.msra.mxu0 0.0
        %3112 = vmatprep.subr.mxu0 0.0
        %3113 = vmatpush1.msra.mxu0 0.0
        %3114 = vmatprep.subr.mxu0 0.0
        %3115 = vmatpush1.msra.mxu0 0.0
        %3116 = vmatprep.subr.mxu0 0.0
        %3117 = vmatpush1.msra.mxu0 0.0
        %3118 = vmatprep.subr.mxu0 0.0
        %3119 = vmatpush1.msra.mxu0 0.0
        %3120 = vmatprep.subr.mxu0 0.0
        %3121 = vmatpush1.msra.mxu0 0.0
        %3122 = vmatprep.subr.mxu0 0.0
        %3123 = vmatpush1.msra.mxu0 0.0
        %3124 = vmatprep.subr.mxu0 0.0
        %3125 = vmatpush1.msra.mxu0 0.0
        %3126 = vmatprep.subr.mxu0 0.0
        %3127 = vmatpush1.msra.mxu0 0.0
        %3128 = vmatprep.subr.mxu0 0.0
        %3129 = vmatpush1.msra.mxu0 0.0
        %3130 = vmatprep.subr.mxu0 0.0
        %3131 = vmatpush1.msra.mxu0 0.0
        %3132 = vmatprep.subr.mxu0 0.0
        %3133 = vmatpush1.msra.mxu0 0.0
        %3134 = vmatprep.subr.mxu0 0.0
        %3135 = vmatpush1.msra.mxu0 0.0
        %3136 = vmatprep.subr.mxu0 0.0
        %3137 = vmatpush1.msra.mxu0 0.0
        %3138 = vmatprep.subr.mxu0 0.0
        %3139 = vmatpush1.msra.mxu0 0.0
        %3140 = vmatprep.subr.mxu0 0.0
        %3141 = vmatpush1.msra.mxu0 0.0
        %3142 = vmatprep.subr.mxu0 0.0
        %3143 = vmatpush1.msra.mxu0 0.0
        %3144 = vmatprep.subr.mxu0 0.0
        %3145 = vmatpush1.msra.mxu0 0.0
        %3146 = vmatprep.subr.mxu0 0.0
        %3147 = vmatpush1.msra.mxu0 0.0
        %3148 = vmatprep.subr.mxu0 0.0
        %3149 = vmatpush1.msra.mxu0 0.0
        %3150 = vmatprep.subr.mxu0 0.0
        %3151 = vmatpush1.msra.mxu0 0.0
        %3152 = vmatprep.subr.mxu0 0.0
        %3153 = vmatpush1.msra.mxu0 0.0
        %3154 = vmatprep.subr.mxu0 0.0
        %3155 = vmatpush1.msra.mxu0 0.0
        %3156 = vmatprep.subr.mxu0 0.0
        %3157 = vmatpush1.msra.mxu0 0.0
        %3158 = vmatprep.subr.mxu0 0.0
        %3159 = vmatpush1.msra.mxu0 0.0
        %3160 = vmatprep.subr.mxu0 0.0
        %3161 = vmatpush1.msra.mxu0 0.0
        %3162 = vmatprep.subr.mxu0 0.0
        %3163 = vmatpush1.msra.mxu0 0.0
        %3164 = vmatprep.subr.mxu0 0.0
        %3165 = vmatpush1.msra.mxu0 0.0
        %3166 = vmatprep.mubr.f32.mxu0 0.0
        %3167 = vmatmul.mubr.f32.gmra.mrb[0].mxu0 %v3100
        %v3168 = vpop.f32.mrb[0].mxu0
        %v3169 = vadd.f32 0.0, %v3168
        %v3170 = vpop.f32.mrb[0].mxu0
        %3171 = vdwg.mxu0
        %3172 = vrot.lane.b32.xlu0 %v372, 124
        %v3173 = vpop.permute.xlu0 %3172
        %v3176 = vsel %vm1898, %v2650, 0
        %3178 = vmatprep.subr.mxu0 0.0
        %3179 = vmatpush1.msra.mxu0 %v3173
        %3180 = vmatprep.subr.mxu0 0.0
        %3181 = vmatpush1.msra.mxu0 0.0
        %3182 = vmatprep.subr.mxu0 0.0
        %3183 = vmatpush1.msra.mxu0 0.0
        %3184 = vmatprep.subr.mxu0 0.0
        %3185 = vmatpush1.msra.mxu0 0.0
        %3186 = vmatprep.subr.mxu0 0.0
        %3187 = vmatpush1.msra.mxu0 0.0
        %3188 = vmatprep.subr.mxu0 0.0
        %3189 = vmatpush1.msra.mxu0 0.0
        %3190 = vmatprep.subr.mxu0 0.0
        %3191 = vmatpush1.msra.mxu0 0.0
        %3192 = vmatprep.subr.mxu0 0.0
        %3193 = vmatpush1.msra.mxu0 0.0
        %3194 = vmatprep.subr.mxu0 0.0
        %3195 = vmatpush1.msra.mxu0 0.0
        %3196 = vmatprep.subr.mxu0 0.0
        %3197 = vmatpush1.msra.mxu0 0.0
        %3198 = vmatprep.subr.mxu0 0.0
        %3199 = vmatpush1.msra.mxu0 0.0
        %3200 = vmatprep.subr.mxu0 0.0
        %3201 = vmatpush1.msra.mxu0 0.0
        %3202 = vmatprep.subr.mxu0 0.0
        %3203 = vmatpush1.msra.mxu0 0.0
        %3204 = vmatprep.subr.mxu0 0.0
        %3205 = vmatpush1.msra.mxu0 0.0
        %3206 = vmatprep.subr.mxu0 0.0
        %3207 = vmatpush1.msra.mxu0 0.0
        %3208 = vmatprep.subr.mxu0 0.0
        %3209 = vmatpush1.msra.mxu0 0.0
        %3210 = vmatprep.subr.mxu0 0.0
        %3211 = vmatpush1.msra.mxu0 0.0
        %3212 = vmatprep.subr.mxu0 0.0
        %3213 = vmatpush1.msra.mxu0 0.0
        %3214 = vmatprep.subr.mxu0 0.0
        %3215 = vmatpush1.msra.mxu0 0.0
        %3216 = vmatprep.subr.mxu0 0.0
        %3217 = vmatpush1.msra.mxu0 0.0
        %3218 = vmatprep.subr.mxu0 0.0
        %3219 = vmatpush1.msra.mxu0 0.0
        %3220 = vmatprep.subr.mxu0 0.0
        %3221 = vmatpush1.msra.mxu0 0.0
        %3222 = vmatprep.subr.mxu0 0.0
        %3223 = vmatpush1.msra.mxu0 0.0
        %3224 = vmatprep.subr.mxu0 0.0
        %3225 = vmatpush1.msra.mxu0 0.0
        %3226 = vmatprep.subr.mxu0 0.0
        %3227 = vmatpush1.msra.mxu0 0.0
        %3228 = vmatprep.subr.mxu0 0.0
        %3229 = vmatpush1.msra.mxu0 0.0
        %3230 = vmatprep.subr.mxu0 0.0
        %3231 = vmatpush1.msra.mxu0 0.0
        %3232 = vmatprep.subr.mxu0 0.0
        %3233 = vmatpush1.msra.mxu0 0.0
        %3234 = vmatprep.subr.mxu0 0.0
        %3235 = vmatpush1.msra.mxu0 0.0
        %3236 = vmatprep.subr.mxu0 0.0
        %3237 = vmatpush1.msra.mxu0 0.0
        %3238 = vmatprep.subr.mxu0 0.0
        %3239 = vmatpush1.msra.mxu0 0.0
        %3240 = vmatprep.subr.mxu0 0.0
        %3241 = vmatpush1.msra.mxu0 0.0
        %3242 = vmatprep.mubr.f32.mxu0 0.0
        %3243 = vmatmul.mubr.f32.gmra.mrb[0].mxu0 %v3176
        %v3244 = vpop.f32.mrb[0].mxu0
        %v3245 = vadd.f32 0.0, %v3244
        %v3246 = vpop.f32.mrb[0].mxu0
        %3247 = vdwg.mxu0
        %3248 = vrot.lane.b32.xlu0 %v377, 124
        %v3249 = vpop.permute.xlu0 %3248
        %v3252 = vsel %vm1898, %v2651, 0
        %3254 = vmatprep.subr.mxu0 0.0
        %3255 = vmatpush1.msra.mxu0 %v3249
        %3256 = vmatprep.subr.mxu0 0.0
        %3257 = vmatpush1.msra.mxu0 0.0
        %3258 = vmatprep.subr.mxu0 0.0
        %3259 = vmatpush1.msra.mxu0 0.0
        %3260 = vmatprep.subr.mxu0 0.0
        %3261 = vmatpush1.msra.mxu0 0.0
        %3262 = vmatprep.subr.mxu0 0.0
        %3263 = vmatpush1.msra.mxu0 0.0
        %3264 = vmatprep.subr.mxu0 0.0
        %3265 = vmatpush1.msra.mxu0 0.0
        %3266 = vmatprep.subr.mxu0 0.0
        %3267 = vmatpush1.msra.mxu0 0.0
        %3268 = vmatprep.subr.mxu0 0.0
        %3269 = vmatpush1.msra.mxu0 0.0
        %3270 = vmatprep.subr.mxu0 0.0
        %3271 = vmatpush1.msra.mxu0 0.0
        %3272 = vmatprep.subr.mxu0 0.0
        %3273 = vmatpush1.msra.mxu0 0.0
        %3274 = vmatprep.subr.mxu0 0.0
        %3275 = vmatpush1.msra.mxu0 0.0
        %3276 = vmatprep.subr.mxu0 0.0
        %3277 = vmatpush1.msra.mxu0 0.0
        %3278 = vmatprep.subr.mxu0 0.0
        %3279 = vmatpush1.msra.mxu0 0.0
        %3280 = vmatprep.subr.mxu0 0.0
        %3281 = vmatpush1.msra.mxu0 0.0
        %3282 = vmatprep.subr.mxu0 0.0
        %3283 = vmatpush1.msra.mxu0 0.0
        %3284 = vmatprep.subr.mxu0 0.0
        %3285 = vmatpush1.msra.mxu0 0.0
        %3286 = vmatprep.subr.mxu0 0.0
        %3287 = vmatpush1.msra.mxu0 0.0
        %3288 = vmatprep.subr.mxu0 0.0
        %3289 = vmatpush1.msra.mxu0 0.0
        %3290 = vmatprep.subr.mxu0 0.0
        %3291 = vmatpush1.msra.mxu0 0.0
        %3292 = vmatprep.subr.mxu0 0.0
        %3293 = vmatpush1.msra.mxu0 0.0
        %3294 = vmatprep.subr.mxu0 0.0
        %3295 = vmatpush1.msra.mxu0 0.0
        %3296 = vmatprep.subr.mxu0 0.0
        %3297 = vmatpush1.msra.mxu0 0.0
        %3298 = vmatprep.subr.mxu0 0.0
        %3299 = vmatpush1.msra.mxu0 0.0
        %3300 = vmatprep.subr.mxu0 0.0
        %3301 = vmatpush1.msra.mxu0 0.0
        %3302 = vmatprep.subr.mxu0 0.0
        %3303 = vmatpush1.msra.mxu0 0.0
        %3304 = vmatprep.subr.mxu0 0.0
        %3305 = vmatpush1.msra.mxu0 0.0
        %3306 = vmatprep.subr.mxu0 0.0
        %3307 = vmatpush1.msra.mxu0 0.0
        %3308 = vmatprep.subr.mxu0 0.0
        %3309 = vmatpush1.msra.mxu0 0.0
        %3310 = vmatprep.subr.mxu0 0.0
        %3311 = vmatpush1.msra.mxu0 0.0
        %3312 = vmatprep.subr.mxu0 0.0
        %3313 = vmatpush1.msra.mxu0 0.0
        %3314 = vmatprep.subr.mxu0 0.0
        %3315 = vmatpush1.msra.mxu0 0.0
        %3316 = vmatprep.subr.mxu0 0.0
        %3317 = vmatpush1.msra.mxu0 0.0
        %3318 = vmatprep.mubr.f32.mxu0 0.0
        %3319 = vmatmul.mubr.f32.gmra.mrb[0].mxu0 %v3252
        %v3320 = vpop.f32.mrb[0].mxu0
        %v3321 = vadd.f32 0.0, %v3320
        %v3322 = vpop.f32.mrb[0].mxu0
        %3323 = vdwg.mxu0
        %v3324 = vcombine.low %v2717, %v2869
        %v3325 = vcombine.high %v2717, %v2869
        %v3327 = vunpack.c.l.s4 1983009808
        %v3328 = vunpack.c.0.s8 %v3327
        %v3329 = vlaneseq
        %v3330 = vshrl.u32 %v3329, 7
        %v3331 = vsub.s32 %v3328, %v3330
        %v3332 = vrot.slane %v3324, %v3331
        %v3334 = vunpack.c.l.s4 1983009808
        %v3335 = vunpack.c.0.s8 %v3334
        %v3336 = vlaneseq
        %v3337 = vshrl.u32 %v3336, 7
        %v3338 = vsub.s32 %v3335, %v3337
        %v3339 = vrot.slane %v3325, %v3338
        %v3340 = vcombine.low %v2793, %v2945
        %v3341 = vcombine.high %v2793, %v2945
        %v3343 = vunpack.c.l.s4 1983009808
        %v3344 = vunpack.c.0.s8 %v3343
        %v3345 = vlaneseq
        %v3346 = vshrl.u32 %v3345, 7
        %v3347 = vsub.s32 %v3344, %v3346
        %v3348 = vrot.slane %v3340, %v3347
        %v3350 = vunpack.c.l.s4 1983009808
        %v3351 = vunpack.c.0.s8 %v3350
        %v3352 = vlaneseq
        %v3353 = vshrl.u32 %v3352, 7
        %v3354 = vsub.s32 %v3351, %v3353
        %v3355 = vrot.slane %v3341, %v3354
        %v3356 = vcombine.low %v3021, %v3173
        %v3357 = vcombine.high %v3021, %v3173
        %v3359 = vunpack.c.l.s4 1983009808
        %v3360 = vunpack.c.0.s8 %v3359
        %v3361 = vlaneseq
        %v3362 = vshrl.u32 %v3361, 7
        %v3363 = vsub.s32 %v3360, %v3362
        %v3364 = vrot.slane %v3356, %v3363
        %v3366 = vunpack.c.l.s4 1983009808
        %v3367 = vunpack.c.0.s8 %v3366
        %v3368 = vlaneseq
        %v3369 = vshrl.u32 %v3368, 7
        %v3370 = vsub.s32 %v3367, %v3369
        %v3371 = vrot.slane %v3357, %v3370
        %v3372 = vcombine.low %v3097, %v3249
        %v3373 = vcombine.high %v3097, %v3249
        %v3375 = vunpack.c.l.s4 1983009808
        %v3376 = vunpack.c.0.s8 %v3375
        %v3377 = vlaneseq
        %v3378 = vshrl.u32 %v3377, 7
        %v3379 = vsub.s32 %v3376, %v3378
        %v3380 = vrot.slane %v3372, %v3379
        %v3382 = vunpack.c.l.s4 1983009808
        %v3383 = vunpack.c.0.s8 %v3382
        %v3384 = vlaneseq
        %v3385 = vshrl.u32 %v3384, 7
        %v3386 = vsub.s32 %v3383, %v3385
        %v3387 = vrot.slane %v3373, %v3386
        %v3388 = vcombine.low %v3332, %v3348
        %v3389 = vcombine.high %v3332, %v3348
        %v3391 = vunpack.c.l.s4 1934713408
        %v3392 = vunpack.c.0.s8 %v3391
        %v3393 = vlaneseq
        %v3394 = vshrl.u32 %v3393, 7
        %v3395 = vsub.s32 %v3392, %v3394
        %v3396 = vrot.slane %v3388, %v3395
        %v3398 = vunpack.c.l.s4 1934713408
        %v3399 = vunpack.c.0.s8 %v3398
        %v3400 = vlaneseq
        %v3401 = vshrl.u32 %v3400, 7
        %v3402 = vsub.s32 %v3399, %v3401
        %v3403 = vrot.slane %v3389, %v3402
        %v3404 = vcombine.low %v3339, %v3355
        %v3405 = vcombine.high %v3339, %v3355
        %v3407 = vunpack.c.l.s4 1934713408
        %v3408 = vunpack.c.0.s8 %v3407
        %v3409 = vlaneseq
        %v3410 = vshrl.u32 %v3409, 7
        %v3411 = vsub.s32 %v3408, %v3410
        %v3412 = vrot.slane %v3404, %v3411
        %v3414 = vunpack.c.l.s4 1934713408
        %v3415 = vunpack.c.0.s8 %v3414
        %v3416 = vlaneseq
        %v3417 = vshrl.u32 %v3416, 7
        %v3418 = vsub.s32 %v3415, %v3417
        %v3419 = vrot.slane %v3405, %v3418
        %v3420 = vcombine.low %v3364, %v3380
        %v3421 = vcombine.high %v3364, %v3380
        %v3423 = vunpack.c.l.s4 1934713408
        %v3424 = vunpack.c.0.s8 %v3423
        %v3425 = vlaneseq
        %v3426 = vshrl.u32 %v3425, 7
        %v3427 = vsub.s32 %v3424, %v3426
        %v3428 = vrot.slane %v3420, %v3427
        %v3430 = vunpack.c.l.s4 1934713408
        %v3431 = vunpack.c.0.s8 %v3430
        %v3432 = vlaneseq
        %v3433 = vshrl.u32 %v3432, 7
        %v3434 = vsub.s32 %v3431, %v3433
        %v3435 = vrot.slane %v3421, %v3434
        %v3436 = vcombine.low %v3371, %v3387
        %v3437 = vcombine.high %v3371, %v3387
        %v3439 = vunpack.c.l.s4 1934713408
        %v3440 = vunpack.c.0.s8 %v3439
        %v3441 = vlaneseq
        %v3442 = vshrl.u32 %v3441, 7
        %v3443 = vsub.s32 %v3440, %v3442
        %v3444 = vrot.slane %v3436, %v3443
        %v3446 = vunpack.c.l.s4 1934713408
        %v3447 = vunpack.c.0.s8 %v3446
        %v3448 = vlaneseq
        %v3449 = vshrl.u32 %v3448, 7
        %v3450 = vsub.s32 %v3447, %v3449
        %v3451 = vrot.slane %v3437, %v3450
        %v3452 = vcombine.low %v3396, %v3428
        %v3453 = vcombine.high %v3396, %v3428
        %v3454 = vcombine.low %v3403, %v3435
        %v3455 = vcombine.high %v3403, %v3435
        %v3456 = vcombine.low %v3412, %v3444
        %v3457 = vcombine.high %v3412, %v3444
        %v3458 = vcombine.low %v3419, %v3451
        %v3459 = vcombine.high %v3419, %v3451
        %v3461 = vsel %vm1898, %v2708, 0
        %3463 = vmatprep.subr.mxu0 0.0
        %3464 = vmatpush1.msra.mxu0 %v3452
        %3465 = vmatprep.subr.mxu0 0.0
        %3466 = vmatpush1.msra.mxu0 0.0
        %3467 = vmatprep.subr.mxu0 0.0
        %3468 = vmatpush1.msra.mxu0 0.0
        %3469 = vmatprep.subr.mxu0 0.0
        %3470 = vmatpush1.msra.mxu0 0.0
        %3471 = vmatprep.subr.mxu0 0.0
        %3472 = vmatpush1.msra.mxu0 0.0
        %3473 = vmatprep.subr.mxu0 0.0
        %3474 = vmatpush1.msra.mxu0 0.0
        %3475 = vmatprep.subr.mxu0 0.0
        %3476 = vmatpush1.msra.mxu0 0.0
        %3477 = vmatprep.subr.mxu0 0.0
        %3478 = vmatpush1.msra.mxu0 0.0
        %3479 = vmatprep.subr.mxu0 0.0
        %3480 = vmatpush1.msra.mxu0 0.0
        %3481 = vmatprep.subr.mxu0 0.0
        %3482 = vmatpush1.msra.mxu0 0.0
        %3483 = vmatprep.subr.mxu0 0.0
        %3484 = vmatpush1.msra.mxu0 0.0
        %3485 = vmatprep.subr.mxu0 0.0
        %3486 = vmatpush1.msra.mxu0 0.0
        %3487 = vmatprep.subr.mxu0 0.0
        %3488 = vmatpush1.msra.mxu0 0.0
        %3489 = vmatprep.subr.mxu0 0.0
        %3490 = vmatpush1.msra.mxu0 0.0
        %3491 = vmatprep.subr.mxu0 0.0
        %3492 = vmatpush1.msra.mxu0 0.0
        %3493 = vmatprep.subr.mxu0 0.0
        %3494 = vmatpush1.msra.mxu0 0.0
        %3495 = vmatprep.subr.mxu0 0.0
        %3496 = vmatpush1.msra.mxu0 0.0
        %3497 = vmatprep.subr.mxu0 0.0
        %3498 = vmatpush1.msra.mxu0 0.0
        %3499 = vmatprep.subr.mxu0 0.0
        %3500 = vmatpush1.msra.mxu0 0.0
        %3501 = vmatprep.subr.mxu0 0.0
        %3502 = vmatpush1.msra.mxu0 0.0
        %3503 = vmatprep.subr.mxu0 0.0
        %3504 = vmatpush1.msra.mxu0 0.0
        %3505 = vmatprep.subr.mxu0 0.0
        %3506 = vmatpush1.msra.mxu0 0.0
        %3507 = vmatprep.subr.mxu0 0.0
        %3508 = vmatpush1.msra.mxu0 0.0
        %3509 = vmatprep.subr.mxu0 0.0
        %3510 = vmatpush1.msra.mxu0 0.0
        %3511 = vmatprep.subr.mxu0 0.0
        %3512 = vmatpush1.msra.mxu0 0.0
        %3513 = vmatprep.subr.mxu0 0.0
        %3514 = vmatpush1.msra.mxu0 0.0
        %3515 = vmatprep.subr.mxu0 0.0
        %3516 = vmatpush1.msra.mxu0 0.0
        %3517 = vmatprep.subr.mxu0 0.0
        %3518 = vmatpush1.msra.mxu0 0.0
        %3519 = vmatprep.subr.mxu0 0.0
        %3520 = vmatpush1.msra.mxu0 0.0
        %3521 = vmatprep.subr.mxu0 0.0
        %3522 = vmatpush1.msra.mxu0 0.0
        %3523 = vmatprep.subr.mxu0 0.0
        %3524 = vmatpush1.msra.mxu0 0.0
        %3525 = vmatprep.subr.mxu0 0.0
        %3526 = vmatpush1.msra.mxu0 0.0
        %3527 = vmatprep.mubr.f32.mxu0 0.0
        %3528 = vmatmul.mubr.f32.gmra.mrb[0].mxu0 %v3461
        %v3529 = vpop.f32.mrb[0].mxu0
        %v3530 = vadd.f32 0.0, %v3529
        %v3531 = vpop.f32.mrb[0].mxu0
        %3532 = vdwg.mxu0
        %v3534 = vsel %vm1898, %v2709, 0
        %3536 = vmatprep.subr.mxu0 0.0
        %3537 = vmatpush1.msra.mxu0 %v3453
        %3538 = vmatprep.subr.mxu0 0.0
        %3539 = vmatpush1.msra.mxu0 0.0
        %3540 = vmatprep.subr.mxu0 0.0
        %3541 = vmatpush1.msra.mxu0 0.0
        %3542 = vmatprep.subr.mxu0 0.0
        %3543 = vmatpush1.msra.mxu0 0.0
        %3544 = vmatprep.subr.mxu0 0.0
        %3545 = vmatpush1.msra.mxu0 0.0
        %3546 = vmatprep.subr.mxu0 0.0
        %3547 = vmatpush1.msra.mxu0 0.0
        %3548 = vmatprep.subr.mxu0 0.0
        %3549 = vmatpush1.msra.mxu0 0.0
        %3550 = vmatprep.subr.mxu0 0.0
        %3551 = vmatpush1.msra.mxu0 0.0
        %3552 = vmatprep.subr.mxu0 0.0
        %3553 = vmatpush1.msra.mxu0 0.0
        %3554 = vmatprep.subr.mxu0 0.0
        %3555 = vmatpush1.msra.mxu0 0.0
        %3556 = vmatprep.subr.mxu0 0.0
        %3557 = vmatpush1.msra.mxu0 0.0
        %3558 = vmatprep.subr.mxu0 0.0
        %3559 = vmatpush1.msra.mxu0 0.0
        %3560 = vmatprep.subr.mxu0 0.0
        %3561 = vmatpush1.msra.mxu0 0.0
        %3562 = vmatprep.subr.mxu0 0.0
        %3563 = vmatpush1.msra.mxu0 0.0
        %3564 = vmatprep.subr.mxu0 0.0
        %3565 = vmatpush1.msra.mxu0 0.0
        %3566 = vmatprep.subr.mxu0 0.0
        %3567 = vmatpush1.msra.mxu0 0.0
        %3568 = vmatprep.subr.mxu0 0.0
        %3569 = vmatpush1.msra.mxu0 0.0
        %3570 = vmatprep.subr.mxu0 0.0
        %3571 = vmatpush1.msra.mxu0 0.0
        %3572 = vmatprep.subr.mxu0 0.0
        %3573 = vmatpush1.msra.mxu0 0.0
        %3574 = vmatprep.subr.mxu0 0.0
        %3575 = vmatpush1.msra.mxu0 0.0
        %3576 = vmatprep.subr.mxu0 0.0
        %3577 = vmatpush1.msra.mxu0 0.0
        %3578 = vmatprep.subr.mxu0 0.0
        %3579 = vmatpush1.msra.mxu0 0.0
        %3580 = vmatprep.subr.mxu0 0.0
        %3581 = vmatpush1.msra.mxu0 0.0
        %3582 = vmatprep.subr.mxu0 0.0
        %3583 = vmatpush1.msra.mxu0 0.0
        %3584 = vmatprep.subr.mxu0 0.0
        %3585 = vmatpush1.msra.mxu0 0.0
        %3586 = vmatprep.subr.mxu0 0.0
        %3587 = vmatpush1.msra.mxu0 0.0
        %3588 = vmatprep.subr.mxu0 0.0
        %3589 = vmatpush1.msra.mxu0 0.0
        %3590 = vmatprep.subr.mxu0 0.0
        %3591 = vmatpush1.msra.mxu0 0.0
        %3592 = vmatprep.subr.mxu0 0.0
        %3593 = vmatpush1.msra.mxu0 0.0
        %3594 = vmatprep.subr.mxu0 0.0
        %3595 = vmatpush1.msra.mxu0 0.0
        %3596 = vmatprep.subr.mxu0 0.0
        %3597 = vmatpush1.msra.mxu0 0.0
        %3598 = vmatprep.subr.mxu0 0.0
        %3599 = vmatpush1.msra.mxu0 0.0
        %3600 = vmatprep.mubr.f32.mxu0 0.0
        %3601 = vmatmul.mubr.f32.gmra.mrb[0].mxu0 %v3534
        %v3602 = vpop.f32.mrb[0].mxu0
        %v3603 = vadd.f32 0.0, %v3602
        %v3604 = vpop.f32.mrb[0].mxu0
        %3605 = vdwg.mxu0
        %v3607 = vsel %vm1898, %v2710, 0
        %3609 = vmatprep.subr.mxu0 0.0
        %3610 = vmatpush1.msra.mxu0 %v3454
        %3611 = vmatprep.subr.mxu0 0.0
        %3612 = vmatpush1.msra.mxu0 0.0
        %3613 = vmatprep.subr.mxu0 0.0
        %3614 = vmatpush1.msra.mxu0 0.0
        %3615 = vmatprep.subr.mxu0 0.0
        %3616 = vmatpush1.msra.mxu0 0.0
        %3617 = vmatprep.subr.mxu0 0.0
        %3618 = vmatpush1.msra.mxu0 0.0
        %3619 = vmatprep.subr.mxu0 0.0
        %3620 = vmatpush1.msra.mxu0 0.0
        %3621 = vmatprep.subr.mxu0 0.0
        %3622 = vmatpush1.msra.mxu0 0.0
        %3623 = vmatprep.subr.mxu0 0.0
        %3624 = vmatpush1.msra.mxu0 0.0
        %3625 = vmatprep.subr.mxu0 0.0
        %3626 = vmatpush1.msra.mxu0 0.0
        %3627 = vmatprep.subr.mxu0 0.0
        %3628 = vmatpush1.msra.mxu0 0.0
        %3629 = vmatprep.subr.mxu0 0.0
        %3630 = vmatpush1.msra.mxu0 0.0
        %3631 = vmatprep.subr.mxu0 0.0
        %3632 = vmatpush1.msra.mxu0 0.0
        %3633 = vmatprep.subr.mxu0 0.0
        %3634 = vmatpush1.msra.mxu0 0.0
        %3635 = vmatprep.subr.mxu0 0.0
        %3636 = vmatpush1.msra.mxu0 0.0
        %3637 = vmatprep.subr.mxu0 0.0
        %3638 = vmatpush1.msra.mxu0 0.0
        %3639 = vmatprep.subr.mxu0 0.0
        %3640 = vmatpush1.msra.mxu0 0.0
        %3641 = vmatprep.subr.mxu0 0.0
        %3642 = vmatpush1.msra.mxu0 0.0
        %3643 = vmatprep.subr.mxu0 0.0
        %3644 = vmatpush1.msra.mxu0 0.0
        %3645 = vmatprep.subr.mxu0 0.0
        %3646 = vmatpush1.msra.mxu0 0.0
        %3647 = vmatprep.subr.mxu0 0.0
        %3648 = vmatpush1.msra.mxu0 0.0
        %3649 = vmatprep.subr.mxu0 0.0
        %3650 = vmatpush1.msra.mxu0 0.0
        %3651 = vmatprep.subr.mxu0 0.0
        %3652 = vmatpush1.msra.mxu0 0.0
        %3653 = vmatprep.subr.mxu0 0.0
        %3654 = vmatpush1.msra.mxu0 0.0
        %3655 = vmatprep.subr.mxu0 0.0
        %3656 = vmatpush1.msra.mxu0 0.0
        %3657 = vmatprep.subr.mxu0 0.0
        %3658 = vmatpush1.msra.mxu0 0.0
        %3659 = vmatprep.subr.mxu0 0.0
        %3660 = vmatpush1.msra.mxu0 0.0
        %3661 = vmatprep.subr.mxu0 0.0
        %3662 = vmatpush1.msra.mxu0 0.0
        %3663 = vmatprep.subr.mxu0 0.0
        %3664 = vmatpush1.msra.mxu0 0.0
        %3665 = vmatprep.subr.mxu0 0.0
        %3666 = vmatpush1.msra.mxu0 0.0
        %3667 = vmatprep.subr.mxu0 0.0
        %3668 = vmatpush1.msra.mxu0 0.0
        %3669 = vmatprep.subr.mxu0 0.0
        %3670 = vmatpush1.msra.mxu0 0.0
        %3671 = vmatprep.subr.mxu0 0.0
        %3672 = vmatpush1.msra.mxu0 0.0
        %3673 = vmatprep.mubr.f32.mxu0 0.0
        %3674 = vmatmul.mubr.f32.gmra.mrb[0].mxu0 %v3607
        %v3675 = vpop.f32.mrb[0].mxu0
        %v3676 = vadd.f32 0.0, %v3675
        %v3677 = vpop.f32.mrb[0].mxu0
        %3678 = vdwg.mxu0
        %v3680 = vsel %vm1898, %v2711, 0
        %3682 = vmatprep.subr.mxu0 0.0
        %3683 = vmatpush1.msra.mxu0 %v3455
        %3684 = vmatprep.subr.mxu0 0.0
        %3685 = vmatpush1.msra.mxu0 0.0
        %3686 = vmatprep.subr.mxu0 0.0
        %3687 = vmatpush1.msra.mxu0 0.0
        %3688 = vmatprep.subr.mxu0 0.0
        %3689 = vmatpush1.msra.mxu0 0.0
        %3690 = vmatprep.subr.mxu0 0.0
        %3691 = vmatpush1.msra.mxu0 0.0
        %3692 = vmatprep.subr.mxu0 0.0
        %3693 = vmatpush1.msra.mxu0 0.0
        %3694 = vmatprep.subr.mxu0 0.0
        %3695 = vmatpush1.msra.mxu0 0.0
        %3696 = vmatprep.subr.mxu0 0.0
        %3697 = vmatpush1.msra.mxu0 0.0
        %3698 = vmatprep.subr.mxu0 0.0
        %3699 = vmatpush1.msra.mxu0 0.0
        %3700 = vmatprep.subr.mxu0 0.0
        %3701 = vmatpush1.msra.mxu0 0.0
        %3702 = vmatprep.subr.mxu0 0.0
        %3703 = vmatpush1.msra.mxu0 0.0
        %3704 = vmatprep.subr.mxu0 0.0
        %3705 = vmatpush1.msra.mxu0 0.0
        %3706 = vmatprep.subr.mxu0 0.0
        %3707 = vmatpush1.msra.mxu0 0.0
        %3708 = vmatprep.subr.mxu0 0.0
        %3709 = vmatpush1.msra.mxu0 0.0
        %3710 = vmatprep.subr.mxu0 0.0
        %3711 = vmatpush1.msra.mxu0 0.0
        %3712 = vmatprep.subr.mxu0 0.0
        %3713 = vmatpush1.msra.mxu0 0.0
        %3714 = vmatprep.subr.mxu0 0.0
        %3715 = vmatpush1.msra.mxu0 0.0
        %3716 = vmatprep.subr.mxu0 0.0
        %3717 = vmatpush1.msra.mxu0 0.0
        %3718 = vmatprep.subr.mxu0 0.0
        %3719 = vmatpush1.msra.mxu0 0.0
        %3720 = vmatprep.subr.mxu0 0.0
        %3721 = vmatpush1.msra.mxu0 0.0
        %3722 = vmatprep.subr.mxu0 0.0
        %3723 = vmatpush1.msra.mxu0 0.0
        %3724 = vmatprep.subr.mxu0 0.0
        %3725 = vmatpush1.msra.mxu0 0.0
        %3726 = vmatprep.subr.mxu0 0.0
        %3727 = vmatpush1.msra.mxu0 0.0
        %3728 = vmatprep.subr.mxu0 0.0
        %3729 = vmatpush1.msra.mxu0 0.0
        %3730 = vmatprep.subr.mxu0 0.0
        %3731 = vmatpush1.msra.mxu0 0.0
        %3732 = vmatprep.subr.mxu0 0.0
        %3733 = vmatpush1.msra.mxu0 0.0
        %3734 = vmatprep.subr.mxu0 0.0
        %3735 = vmatpush1.msra.mxu0 0.0
        %3736 = vmatprep.subr.mxu0 0.0
        %3737 = vmatpush1.msra.mxu0 0.0
        %3738 = vmatprep.subr.mxu0 0.0
        %3739 = vmatpush1.msra.mxu0 0.0
        %3740 = vmatprep.subr.mxu0 0.0
        %3741 = vmatpush1.msra.mxu0 0.0
        %3742 = vmatprep.subr.mxu0 0.0
        %3743 = vmatpush1.msra.mxu0 0.0
        %3744 = vmatprep.subr.mxu0 0.0
        %3745 = vmatpush1.msra.mxu0 0.0
        %3746 = vmatprep.mubr.f32.mxu0 0.0
        %3747 = vmatmul.mubr.f32.gmra.mrb[0].mxu0 %v3680
        %v3748 = vpop.f32.mrb[0].mxu0
        %v3749 = vadd.f32 0.0, %v3748
        %v3750 = vpop.f32.mrb[0].mxu0
        %3751 = vdwg.mxu0
        %v3753 = vsel %vm1898, %v2712, 0
        %3755 = vmatprep.subr.mxu0 0.0
        %3756 = vmatpush1.msra.mxu0 %v3456
        %3757 = vmatprep.subr.mxu0 0.0
        %3758 = vmatpush1.msra.mxu0 0.0
        %3759 = vmatprep.subr.mxu0 0.0
        %3760 = vmatpush1.msra.mxu0 0.0
        %3761 = vmatprep.subr.mxu0 0.0
        %3762 = vmatpush1.msra.mxu0 0.0
        %3763 = vmatprep.subr.mxu0 0.0
        %3764 = vmatpush1.msra.mxu0 0.0
        %3765 = vmatprep.subr.mxu0 0.0
        %3766 = vmatpush1.msra.mxu0 0.0
        %3767 = vmatprep.subr.mxu0 0.0
        %3768 = vmatpush1.msra.mxu0 0.0
        %3769 = vmatprep.subr.mxu0 0.0
        %3770 = vmatpush1.msra.mxu0 0.0
        %3771 = vmatprep.subr.mxu0 0.0
        %3772 = vmatpush1.msra.mxu0 0.0
        %3773 = vmatprep.subr.mxu0 0.0
        %3774 = vmatpush1.msra.mxu0 0.0
        %3775 = vmatprep.subr.mxu0 0.0
        %3776 = vmatpush1.msra.mxu0 0.0
        %3777 = vmatprep.subr.mxu0 0.0
        %3778 = vmatpush1.msra.mxu0 0.0
        %3779 = vmatprep.subr.mxu0 0.0
        %3780 = vmatpush1.msra.mxu0 0.0
        %3781 = vmatprep.subr.mxu0 0.0
        %3782 = vmatpush1.msra.mxu0 0.0
        %3783 = vmatprep.subr.mxu0 0.0
        %3784 = vmatpush1.msra.mxu0 0.0
        %3785 = vmatprep.subr.mxu0 0.0
        %3786 = vmatpush1.msra.mxu0 0.0
        %3787 = vmatprep.subr.mxu0 0.0
        %3788 = vmatpush1.msra.mxu0 0.0
        %3789 = vmatprep.subr.mxu0 0.0
        %3790 = vmatpush1.msra.mxu0 0.0
        %3791 = vmatprep.subr.mxu0 0.0
        %3792 = vmatpush1.msra.mxu0 0.0
        %3793 = vmatprep.subr.mxu0 0.0
        %3794 = vmatpush1.msra.mxu0 0.0
        %3795 = vmatprep.subr.mxu0 0.0
        %3796 = vmatpush1.msra.mxu0 0.0
        %3797 = vmatprep.subr.mxu0 0.0
        %3798 = vmatpush1.msra.mxu0 0.0
        %3799 = vmatprep.subr.mxu0 0.0
        %3800 = vmatpush1.msra.mxu0 0.0
        %3801 = vmatprep.subr.mxu0 0.0
        %3802 = vmatpush1.msra.mxu0 0.0
        %3803 = vmatprep.subr.mxu0 0.0
        %3804 = vmatpush1.msra.mxu0 0.0
        %3805 = vmatprep.subr.mxu0 0.0
        %3806 = vmatpush1.msra.mxu0 0.0
        %3807 = vmatprep.subr.mxu0 0.0
        %3808 = vmatpush1.msra.mxu0 0.0
        %3809 = vmatprep.subr.mxu0 0.0
        %3810 = vmatpush1.msra.mxu0 0.0
        %3811 = vmatprep.subr.mxu0 0.0
        %3812 = vmatpush1.msra.mxu0 0.0
        %3813 = vmatprep.subr.mxu0 0.0
        %3814 = vmatpush1.msra.mxu0 0.0
        %3815 = vmatprep.subr.mxu0 0.0
        %3816 = vmatpush1.msra.mxu0 0.0
        %3817 = vmatprep.subr.mxu0 0.0
        %3818 = vmatpush1.msra.mxu0 0.0
        %3819 = vmatprep.mubr.f32.mxu0 0.0
        %3820 = vmatmul.mubr.f32.gmra.mrb[0].mxu0 %v3753
        %v3821 = vpop.f32.mrb[0].mxu0
        %v3822 = vadd.f32 0.0, %v3821
        %v3823 = vpop.f32.mrb[0].mxu0
        %3824 = vdwg.mxu0
        %v3826 = vsel %vm1898, %v2713, 0
        %3828 = vmatprep.subr.mxu0 0.0
        %3829 = vmatpush1.msra.mxu0 %v3457
        %3830 = vmatprep.subr.mxu0 0.0
        %3831 = vmatpush1.msra.mxu0 0.0
        %3832 = vmatprep.subr.mxu0 0.0
        %3833 = vmatpush1.msra.mxu0 0.0
        %3834 = vmatprep.subr.mxu0 0.0
        %3835 = vmatpush1.msra.mxu0 0.0
        %3836 = vmatprep.subr.mxu0 0.0
        %3837 = vmatpush1.msra.mxu0 0.0
        %3838 = vmatprep.subr.mxu0 0.0
        %3839 = vmatpush1.msra.mxu0 0.0
        %3840 = vmatprep.subr.mxu0 0.0
        %3841 = vmatpush1.msra.mxu0 0.0
        %3842 = vmatprep.subr.mxu0 0.0
        %3843 = vmatpush1.msra.mxu0 0.0
        %3844 = vmatprep.subr.mxu0 0.0
        %3845 = vmatpush1.msra.mxu0 0.0
        %3846 = vmatprep.subr.mxu0 0.0
        %3847 = vmatpush1.msra.mxu0 0.0
        %3848 = vmatprep.subr.mxu0 0.0
        %3849 = vmatpush1.msra.mxu0 0.0
        %3850 = vmatprep.subr.mxu0 0.0
        %3851 = vmatpush1.msra.mxu0 0.0
        %3852 = vmatprep.subr.mxu0 0.0
        %3853 = vmatpush1.msra.mxu0 0.0
        %3854 = vmatprep.subr.mxu0 0.0
        %3855 = vmatpush1.msra.mxu0 0.0
        %3856 = vmatprep.subr.mxu0 0.0
        %3857 = vmatpush1.msra.mxu0 0.0
        %3858 = vmatprep.subr.mxu0 0.0
        %3859 = vmatpush1.msra.mxu0 0.0
        %3860 = vmatprep.subr.mxu0 0.0
        %3861 = vmatpush1.msra.mxu0 0.0
        %3862 = vmatprep.subr.mxu0 0.0
        %3863 = vmatpush1.msra.mxu0 0.0
        %3864 = vmatprep.subr.mxu0 0.0
        %3865 = vmatpush1.msra.mxu0 0.0
        %3866 = vmatprep.subr.mxu0 0.0
        %3867 = vmatpush1.msra.mxu0 0.0
        %3868 = vmatprep.subr.mxu0 0.0
        %3869 = vmatpush1.msra.mxu0 0.0
        %3870 = vmatprep.subr.mxu0 0.0
        %3871 = vmatpush1.msra.mxu0 0.0
        %3872 = vmatprep.subr.mxu0 0.0
        %3873 = vmatpush1.msra.mxu0 0.0
        %3874 = vmatprep.subr.mxu0 0.0
        %3875 = vmatpush1.msra.mxu0 0.0
        %3876 = vmatprep.subr.mxu0 0.0
        %3877 = vmatpush1.msra.mxu0 0.0
        %3878 = vmatprep.subr.mxu0 0.0
        %3879 = vmatpush1.msra.mxu0 0.0
        %3880 = vmatprep.subr.mxu0 0.0
        %3881 = vmatpush1.msra.mxu0 0.0
        %3882 = vmatprep.subr.mxu0 0.0
        %3883 = vmatpush1.msra.mxu0 0.0
        %3884 = vmatprep.subr.mxu0 0.0
        %3885 = vmatpush1.msra.mxu0 0.0
        %3886 = vmatprep.subr.mxu0 0.0
        %3887 = vmatpush1.msra.mxu0 0.0
        %3888 = vmatprep.subr.mxu0 0.0
        %3889 = vmatpush1.msra.mxu0 0.0
        %3890 = vmatprep.subr.mxu0 0.0
        %3891 = vmatpush1.msra.mxu0 0.0
        %3892 = vmatprep.mubr.f32.mxu0 0.0
        %3893 = vmatmul.mubr.f32.gmra.mrb[0].mxu0 %v3826
        %v3894 = vpop.f32.mrb[0].mxu0
        %v3895 = vadd.f32 0.0, %v3894
        %v3896 = vpop.f32.mrb[0].mxu0
        %3897 = vdwg.mxu0
        %v3899 = vsel %vm1898, %v2714, 0
        %3901 = vmatprep.subr.mxu0 0.0
        %3902 = vmatpush1.msra.mxu0 %v3458
        %3903 = vmatprep.subr.mxu0 0.0
        %3904 = vmatpush1.msra.mxu0 0.0
        %3905 = vmatprep.subr.mxu0 0.0
        %3906 = vmatpush1.msra.mxu0 0.0
        %3907 = vmatprep.subr.mxu0 0.0
        %3908 = vmatpush1.msra.mxu0 0.0
        %3909 = vmatprep.subr.mxu0 0.0
        %3910 = vmatpush1.msra.mxu0 0.0
        %3911 = vmatprep.subr.mxu0 0.0
        %3912 = vmatpush1.msra.mxu0 0.0
        %3913 = vmatprep.subr.mxu0 0.0
        %3914 = vmatpush1.msra.mxu0 0.0
        %3915 = vmatprep.subr.mxu0 0.0
        %3916 = vmatpush1.msra.mxu0 0.0
        %3917 = vmatprep.subr.mxu0 0.0
        %3918 = vmatpush1.msra.mxu0 0.0
        %3919 = vmatprep.subr.mxu0 0.0
        %3920 = vmatpush1.msra.mxu0 0.0
        %3921 = vmatprep.subr.mxu0 0.0
        %3922 = vmatpush1.msra.mxu0 0.0
        %3923 = vmatprep.subr.mxu0 0.0
        %3924 = vmatpush1.msra.mxu0 0.0
        %3925 = vmatprep.subr.mxu0 0.0
        %3926 = vmatpush1.msra.mxu0 0.0
        %3927 = vmatprep.subr.mxu0 0.0
        %3928 = vmatpush1.msra.mxu0 0.0
        %3929 = vmatprep.subr.mxu0 0.0
        %3930 = vmatpush1.msra.mxu0 0.0
        %3931 = vmatprep.subr.mxu0 0.0
        %3932 = vmatpush1.msra.mxu0 0.0
        %3933 = vmatprep.subr.mxu0 0.0
        %3934 = vmatpush1.msra.mxu0 0.0
        %3935 = vmatprep.subr.mxu0 0.0
        %3936 = vmatpush1.msra.mxu0 0.0
        %3937 = vmatprep.subr.mxu0 0.0
        %3938 = vmatpush1.msra.mxu0 0.0
        %3939 = vmatprep.subr.mxu0 0.0
        %3940 = vmatpush1.msra.mxu0 0.0
        %3941 = vmatprep.subr.mxu0 0.0
        %3942 = vmatpush1.msra.mxu0 0.0
        %3943 = vmatprep.subr.mxu0 0.0
        %3944 = vmatpush1.msra.mxu0 0.0
        %3945 = vmatprep.subr.mxu0 0.0
        %3946 = vmatpush1.msra.mxu0 0.0
        %3947 = vmatprep.subr.mxu0 0.0
        %3948 = vmatpush1.msra.mxu0 0.0
        %3949 = vmatprep.subr.mxu0 0.0
        %3950 = vmatpush1.msra.mxu0 0.0
        %3951 = vmatprep.subr.mxu0 0.0
        %3952 = vmatpush1.msra.mxu0 0.0
        %3953 = vmatprep.subr.mxu0 0.0
        %3954 = vmatpush1.msra.mxu0 0.0
        %3955 = vmatprep.subr.mxu0 0.0
        %3956 = vmatpush1.msra.mxu0 0.0
        %3957 = vmatprep.subr.mxu0 0.0
        %3958 = vmatpush1.msra.mxu0 0.0
        %3959 = vmatprep.subr.mxu0 0.0
        %3960 = vmatpush1.msra.mxu0 0.0
        %3961 = vmatprep.subr.mxu0 0.0
        %3962 = vmatpush1.msra.mxu0 0.0
        %3963 = vmatprep.subr.mxu0 0.0
        %3964 = vmatpush1.msra.mxu0 0.0
        %3965 = vmatprep.mubr.f32.mxu0 0.0
        %3966 = vmatmul.mubr.f32.gmra.mrb[0].mxu0 %v3899
        %v3967 = vpop.f32.mrb[0].mxu0
        %v3968 = vadd.f32 0.0, %v3967
        %v3969 = vpop.f32.mrb[0].mxu0
        %3970 = vdwg.mxu0
        %v3972 = vsel %vm1898, %v2715, 0
        %3974 = vmatprep.subr.mxu0 0.0
        %3975 = vmatpush1.msra.mxu0 %v3459
        %3976 = vmatprep.subr.mxu0 0.0
        %3977 = vmatpush1.msra.mxu0 0.0
        %3978 = vmatprep.subr.mxu0 0.0
        %3979 = vmatpush1.msra.mxu0 0.0
        %3980 = vmatprep.subr.mxu0 0.0
        %3981 = vmatpush1.msra.mxu0 0.0
        %3982 = vmatprep.subr.mxu0 0.0
        %3983 = vmatpush1.msra.mxu0 0.0
        %3984 = vmatprep.subr.mxu0 0.0
        %3985 = vmatpush1.msra.mxu0 0.0
        %3986 = vmatprep.subr.mxu0 0.0
        %3987 = vmatpush1.msra.mxu0 0.0
        %3988 = vmatprep.subr.mxu0 0.0
        %3989 = vmatpush1.msra.mxu0 0.0
        %3990 = vmatprep.subr.mxu0 0.0
        %3991 = vmatpush1.msra.mxu0 0.0
        %3992 = vmatprep.subr.mxu0 0.0
        %3993 = vmatpush1.msra.mxu0 0.0
        %3994 = vmatprep.subr.mxu0 0.0
        %3995 = vmatpush1.msra.mxu0 0.0
        %3996 = vmatprep.subr.mxu0 0.0
        %3997 = vmatpush1.msra.mxu0 0.0
        %3998 = vmatprep.subr.mxu0 0.0
        %3999 = vmatpush1.msra.mxu0 0.0
        %4000 = vmatprep.subr.mxu0 0.0
        %4001 = vmatpush1.msra.mxu0 0.0
        %4002 = vmatprep.subr.mxu0 0.0
        %4003 = vmatpush1.msra.mxu0 0.0
        %4004 = vmatprep.subr.mxu0 0.0
        %4005 = vmatpush1.msra.mxu0 0.0
        %4006 = vmatprep.subr.mxu0 0.0
        %4007 = vmatpush1.msra.mxu0 0.0
        %4008 = vmatprep.subr.mxu0 0.0
        %4009 = vmatpush1.msra.mxu0 0.0
        %4010 = vmatprep.subr.mxu0 0.0
        %4011 = vmatpush1.msra.mxu0 0.0
        %4012 = vmatprep.subr.mxu0 0.0
        %4013 = vmatpush1.msra.mxu0 0.0
        %4014 = vmatprep.subr.mxu0 0.0
        %4015 = vmatpush1.msra.mxu0 0.0
        %4016 = vmatprep.subr.mxu0 0.0
        %4017 = vmatpush1.msra.mxu0 0.0
        %4018 = vmatprep.subr.mxu0 0.0
        %4019 = vmatpush1.msra.mxu0 0.0
        %4020 = vmatprep.subr.mxu0 0.0
        %4021 = vmatpush1.msra.mxu0 0.0
        %4022 = vmatprep.subr.mxu0 0.0
        %4023 = vmatpush1.msra.mxu0 0.0
        %4024 = vmatprep.subr.mxu0 0.0
        %4025 = vmatpush1.msra.mxu0 0.0
        %4026 = vmatprep.subr.mxu0 0.0
        %4027 = vmatpush1.msra.mxu0 0.0
        %4028 = vmatprep.subr.mxu0 0.0
        %4029 = vmatpush1.msra.mxu0 0.0
        %4030 = vmatprep.subr.mxu0 0.0
        %4031 = vmatpush1.msra.mxu0 0.0
        %4032 = vmatprep.subr.mxu0 0.0
        %4033 = vmatpush1.msra.mxu0 0.0
        %4034 = vmatprep.subr.mxu0 0.0
        %4035 = vmatpush1.msra.mxu0 0.0
        %4036 = vmatprep.subr.mxu0 0.0
        %4037 = vmatpush1.msra.mxu0 0.0
        %4038 = vmatprep.mubr.f32.mxu0 0.0
        %4039 = vmatmul.mubr.f32.gmra.mrb[0].mxu0 %v3972
        %v4040 = vpop.f32.mrb[0].mxu0
        %v4041 = vadd.f32 0.0, %v4040
        %v4042 = vpop.f32.mrb[0].mxu0
        %4043 = vdwg.mxu0
        %v4044 = vcombine.low %v3530, %v3676
        %v4045 = vcombine.high %v3530, %v3676
        %v4047 = vunpack.c.l.s4 1983009808
        %v4048 = vunpack.c.0.s8 %v4047
        %v4049 = vlaneseq
        %v4050 = vshrl.u32 %v4049, 7
        %v4051 = vsub.s32 %v4048, %v4050
        %v4052 = vrot.slane %v4044, %v4051
        %v4054 = vunpack.c.l.s4 1983009808
        %v4055 = vunpack.c.0.s8 %v4054
        %v4056 = vlaneseq
        %v4057 = vshrl.u32 %v4056, 7
        %v4058 = vsub.s32 %v4055, %v4057
        %v4059 = vrot.slane %v4045, %v4058
        %v4060 = vcombine.low %v3603, %v3749
        %v4061 = vcombine.high %v3603, %v3749
        %v4063 = vunpack.c.l.s4 1983009808
        %v4064 = vunpack.c.0.s8 %v4063
        %v4065 = vlaneseq
        %v4066 = vshrl.u32 %v4065, 7
        %v4067 = vsub.s32 %v4064, %v4066
        %v4068 = vrot.slane %v4060, %v4067
        %v4070 = vunpack.c.l.s4 1983009808
        %v4071 = vunpack.c.0.s8 %v4070
        %v4072 = vlaneseq
        %v4073 = vshrl.u32 %v4072, 7
        %v4074 = vsub.s32 %v4071, %v4073
        %v4075 = vrot.slane %v4061, %v4074
        %v4076 = vcombine.low %v3822, %v3968
        %v4077 = vcombine.high %v3822, %v3968
        %v4079 = vunpack.c.l.s4 1983009808
        %v4080 = vunpack.c.0.s8 %v4079
        %v4081 = vlaneseq
        %v4082 = vshrl.u32 %v4081, 7
        %v4083 = vsub.s32 %v4080, %v4082
        %v4084 = vrot.slane %v4076, %v4083
        %v4086 = vunpack.c.l.s4 1983009808
        %v4087 = vunpack.c.0.s8 %v4086
        %v4088 = vlaneseq
        %v4089 = vshrl.u32 %v4088, 7
        %v4090 = vsub.s32 %v4087, %v4089
        %v4091 = vrot.slane %v4077, %v4090
        %v4092 = vcombine.low %v3895, %v4041
        %v4093 = vcombine.high %v3895, %v4041
        %v4095 = vunpack.c.l.s4 1983009808
        %v4096 = vunpack.c.0.s8 %v4095
        %v4097 = vlaneseq
        %v4098 = vshrl.u32 %v4097, 7
        %v4099 = vsub.s32 %v4096, %v4098
        %v4100 = vrot.slane %v4092, %v4099
        %v4102 = vunpack.c.l.s4 1983009808
        %v4103 = vunpack.c.0.s8 %v4102
        %v4104 = vlaneseq
        %v4105 = vshrl.u32 %v4104, 7
        %v4106 = vsub.s32 %v4103, %v4105
        %v4107 = vrot.slane %v4093, %v4106
        %v4108 = vcombine.low %v4052, %v4068
        %v4109 = vcombine.high %v4052, %v4068
        %v4111 = vunpack.c.l.s4 1934713408
        %v4112 = vunpack.c.0.s8 %v4111
        %v4113 = vlaneseq
        %v4114 = vshrl.u32 %v4113, 7
        %v4115 = vsub.s32 %v4112, %v4114
        %v4116 = vrot.slane %v4108, %v4115
        %v4118 = vunpack.c.l.s4 1934713408
        %v4119 = vunpack.c.0.s8 %v4118
        %v4120 = vlaneseq
        %v4121 = vshrl.u32 %v4120, 7
        %v4122 = vsub.s32 %v4119, %v4121
        %v4123 = vrot.slane %v4109, %v4122
        %v4124 = vcombine.low %v4059, %v4075
        %v4125 = vcombine.high %v4059, %v4075
        %v4127 = vunpack.c.l.s4 1934713408
        %v4128 = vunpack.c.0.s8 %v4127
        %v4129 = vlaneseq
        %v4130 = vshrl.u32 %v4129, 7
        %v4131 = vsub.s32 %v4128, %v4130
        %v4132 = vrot.slane %v4124, %v4131
        %v4134 = vunpack.c.l.s4 1934713408
        %v4135 = vunpack.c.0.s8 %v4134
        %v4136 = vlaneseq
        %v4137 = vshrl.u32 %v4136, 7
        %v4138 = vsub.s32 %v4135, %v4137
        %v4139 = vrot.slane %v4125, %v4138
        %v4140 = vcombine.low %v4084, %v4100
        %v4141 = vcombine.high %v4084, %v4100
        %v4143 = vunpack.c.l.s4 1934713408
        %v4144 = vunpack.c.0.s8 %v4143
        %v4145 = vlaneseq
        %v4146 = vshrl.u32 %v4145, 7
        %v4147 = vsub.s32 %v4144, %v4146
        %v4148 = vrot.slane %v4140, %v4147
        %v4150 = vunpack.c.l.s4 1934713408
        %v4151 = vunpack.c.0.s8 %v4150
        %v4152 = vlaneseq
        %v4153 = vshrl.u32 %v4152, 7
        %v4154 = vsub.s32 %v4151, %v4153
        %v4155 = vrot.slane %v4141, %v4154
        %v4156 = vcombine.low %v4091, %v4107
        %v4157 = vcombine.high %v4091, %v4107
        %v4159 = vunpack.c.l.s4 1934713408
        %v4160 = vunpack.c.0.s8 %v4159
        %v4161 = vlaneseq
        %v4162 = vshrl.u32 %v4161, 7
        %v4163 = vsub.s32 %v4160, %v4162
        %v4164 = vrot.slane %v4156, %v4163
        %v4166 = vunpack.c.l.s4 1934713408
        %v4167 = vunpack.c.0.s8 %v4166
        %v4168 = vlaneseq
        %v4169 = vshrl.u32 %v4168, 7
        %v4170 = vsub.s32 %v4167, %v4169
        %v4171 = vrot.slane %v4157, %v4170
        %v4172 = vcombine.low %v4116, %v4148
        %v4173 = vcombine.high %v4116, %v4148
        %v4174 = vcombine.low %v4123, %v4155
        %v4175 = vcombine.high %v4123, %v4155
        %v4176 = vcombine.low %v4132, %v4164
        %v4177 = vcombine.high %v4132, %v4164
        %v4178 = vcombine.low %v4139, %v4171
        %v4179 = vcombine.high %v4139, %v4171
        %v4180 = vadd.f32 %v4172, %v2789
        %v4181 = vadd.f32 %v4173, %v2865
        %v4182 = vadd.f32 %v4174, %v2941
        %v4183 = vadd.f32 %v4175, %v3017
        %v4184 = vadd.f32 %v4176, %v3093
        %v4185 = vadd.f32 %v4177, %v3169
        %v4186 = vadd.f32 %v4178, %v3245
        %v4187 = vadd.f32 %v4179, %v3321
        %v4188 = vstv %s232
        %v4189 = vmul.f32 %v4188, %v4180
        %v4190 = vmul.f32 %v4188, %v4181
        %v4191 = vmul.f32 %v4188, %v4182
        %v4192 = vmul.f32 %v4188, %v4183
        %v4193 = vmul.f32 %v4188, %v4184
        %v4194 = vmul.f32 %v4188, %v4185
        %v4195 = vmul.f32 %v4188, %v4186
        %v4196 = vmul.f32 %v4188, %v4187
        %v4197 = vadd.f32 %v233, %v4189
        %v4198 = vadd.f32 %v234, %v4190
        %v4199 = vadd.f32 %v235, %v4191
        %v4200 = vadd.f32 %v236, %v4192
        %v4201 = vadd.f32 %v237, %v4193
        %v4202 = vadd.f32 %v238, %v4194
        %v4203 = vadd.f32 %v239, %v4195
        %v4204 = vadd.f32 %v240, %v4196
        %4205 = vst.msk [vmem:[%s231] sm:$0xff] %vm250, %v4197
        %4206 = vst.msk [vmem:[%s231 + $0x8] sm:$0xff] %vm250, %v4198
        %4207 = vst.msk [vmem:[%s231 + $0x10] sm:$0xff] %vm250, %v4199
        %4208 = vst.msk [vmem:[%s231 + $0x18] sm:$0xff] %vm250, %v4200
        %4209 = vst.msk [vmem:[%s231 + $0x20] sm:$0xff] %vm250, %v4201
        %4210 = vst.msk [vmem:[%s231 + $0x28] sm:$0xff] %vm250, %v4202
        %4211 = vst.msk [vmem:[%s231 + $0x30] sm:$0xff] %vm250, %v4203
        %4212 = vst.msk [vmem:[%s231 + $0x38] sm:$0xff] %vm250, %v4204
        %s4213 = sand.u32 %s120, 1
        %s4214 = scalar_lea.sflag [#allocation5], %s4213
        %s4215 = sand.u32 %s120, 1
        %s4216 = smul.addr %s4215, 64
        %s4217 = scalar_lea.vmem [#allocation8], %s4216
        // Predicated region
        $region45: #{tpu_custom_call.1} parent=35 // pred_check
          %p4218 = pneg %p130
        $region46: #{tpu_custom_call.1} parent=35 // pred_check_branch
          %4220 = sbr.rel (%p4218) target = $region48
        $region47: #{tpu_custom_call.1} parent=35 // pred_region
          %s4222 = ssub.s32 1024, 1024
          %4223 = vsyncadd %s4214, %s4222
          %s4224 = smul.addr %s23, 8
          %s4225 = smul.addr %s4224, 128
          %s4226 = scalar_lea.hbm %s4, %s4225
          %s4227 = sshll.u32 %s4217, 4
          %s4228 = int_to_ptr.vmem [resolvable:$true] %s4227
          %4233 = dma.vmem_to_hbm [thread:$0]  %s4228, 1024, %s4226, %s4214, 128, 128, 8
        $region48: #{tpu_custom_call.1} parent=35 // pred_fallthru
          _
      $region36: #{tpu_custom_call.1} parent=5 // pred_fallthru
        _
      %p4234 = scmp.le.s32.totalorder 2, %s18
      // Predicated region
      $region49: #{tpu_custom_call.1} parent=5 // pred_check
        %p4235 = pneg %p4234
      $region50: #{tpu_custom_call.1} parent=5 // pred_check_branch
        %4237 = sbr.rel (%p4235) target = $region52
      $region51: #{tpu_custom_call.1} parent=5 // pred_region
        %s4238 = ssub.s32 %s18, 2
        // Predicated region
        $region53: #{tpu_custom_call.1} parent=51 // pred_check
          %p4239 = pneg %p136
        $region54: #{tpu_custom_call.1} parent=51 // pred_check_branch
          %4241 = sbr.rel (%p4239) target = $region56
        $region55: #{tpu_custom_call.1} parent=51 // pred_region
          %s4242 = sand.u32 %s121, 1
          %s4243 = scalar_lea.sflag [#allocation5], %s4242
          %s4244 = sand.u32 %s121, 1
          %s4245 = smul.addr %s4244, 64
          %s4246 = scalar_lea.vmem [#allocation8], %s4245
          %4247 = dma.done %s4243, 1024
        $region56: #{tpu_custom_call.1} parent=51 // pred_fallthru
          _
      $region52: #{tpu_custom_call.1} parent=5 // pred_fallthru
        _
    $region6: #{tpu_custom_call.1} parent=1 // loop_footer
      %s22 = sadd.s32 1, %s18
    $region7: #{tpu_custom_call.1} parent=1 // loop_footer_branch
      %17 = sbr.rel target = $region3
    $region8: #{tpu_custom_call.1} parent=1 // loop_exit
      _
    %4248 = vsyncpa [#allocation4], 1
    %s4249 = scalar_lea.sflag [#allocation4], 1
    %4250 = vsyncpa %s4249, 1
    %4251 = vsyncpa [#allocation7], 1
    %4252 = vsyncpa [#allocation5], 1
    %s4253 = scalar_lea.sflag [#allocation5], 1
    %4254 = vsyncpa %s4253, 1

</llo_original>
